<compile_context>
chip_gen: v7x
topology: tpu7x:2x2x1
jax: 0.10.0
libtpu: 0.0.40
codegen_flags: <defaults>
</compile_context>

<pallas_src>
import math

import jax
import jax.numpy as jnp
from jax.experimental import pallas as pl
from jax.experimental.pallas import tpu as pltpu  # noqa: F401  (TPU backend assumed)

# ----------------------------- model config ---------------------------------
VOCAB = 128
SEQ = 8
HIDDEN = 32            # BERT hidden size == LSTM input_size
NUM_LAYERS = 2
NUM_HEADS = 2
HEAD_DIM = HIDDEN // NUM_HEADS
INTERMEDIATE = 64
LSTM_HIDDEN = 16       # LSTM hidden_size; fc maps 2*LSTM_HIDDEN -> 1
BATCH = 2
LN_EPS = 1e-12
BS = BATCH * SEQ


# ------------------------------ kernel helpers ------------------------------
def _layer_norm(x, gamma, beta):
    mu = jnp.mean(x, axis=-1, keepdims=True)
    var = jnp.mean((x - mu) ** 2, axis=-1, keepdims=True)
    return (x - mu) * jax.lax.rsqrt(var + LN_EPS) * gamma + beta


def _gelu(x):
    # TODO(synk): HF BERT default is exact erf-GELU; tanh approximation kept
    # (tanh goes to the EUP, so it is cheap and safe to lower).
    c = math.sqrt(2.0 / math.pi)
    return 0.5 * x * (1.0 + jnp.tanh(c * (x + 0.044715 * x * x * x)))


# ------------------------------ fused kernel --------------------------------
def fused_forward_kernel(*refs):
    """Entire BertForClassify forward, fully VMEM-resident.

    refs layout (all inputs, then the single output):
      [0] ids (BS,1) i32   [1] word_emb (VOCAB,H)   [2] pos_type (BS,H)
      [3] emb_ln_g (1,H)   [4] emb_ln_b (1,H)
      then NUM_LAYERS x 12 refs per encoder layer:
        wqkv(H,3H) bqkv(1,3H) wo(H,H) bo(1,H) ln1_g ln1_b
        w1(H,I) b1(1,I) w2(I,H) b2(1,H) ln2_g ln2_b
      then LSTM/FC: wih_f(H,4HL) b_f(1,4HL) wih_b(H,4HL) b_b(1,4HL)
                    fcw_f(1,HL) fcw_b(1,HL) fc_b(1,1)
      [-1] out (B,1)
    """
    ids_ref, wemb_ref, pt_ref, eg_ref, eb_ref = refs[:5]
    layer_refs = refs[5:5 + 12 * NUM_LAYERS]
    (wihf_ref, bf_ref, wihb_ref, bb_ref,
     fcwf_ref, fcwb_ref, fcb_ref) = refs[5 + 12 * NUM_LAYERS:5 + 12 * NUM_LAYERS + 7]
    out_ref = refs[-1]

    f32 = jnp.float32

    # ---- embeddings: gather as one-hot MXU matmul, add pos/type, LayerNorm ----
    one_hot = (ids_ref[...] ==
               jax.lax.broadcasted_iota(jnp.int32, (BS, VOCAB), 1)).astype(f32)
    emb = jnp.dot(one_hot, wemb_ref[...], preferred_element_type=f32) + pt_ref[...]
    x = _layer_norm(emb, eg_ref[...], eb_ref[...])                       # (BS, H)

    scale = 1.0 / math.sqrt(HEAD_DIM)

    # ---- encoder layers (statically unrolled) ----
    for l in range(NUM_LAYERS):
        (wqkv, bqkv, wo, bo, l1g, l1b,
         w1, b1, w2, b2, l2g, l2b) = layer_refs[12 * l:12 * (l + 1)]

        # Fused QKV projection over all B*S rows (one MXU pass, 96 output lanes).
        qkv = jnp.dot(x, wqkv[...], preferred_element_type=f32) + bqkv[...]   # (BS, 3H)
        # Transpose K once per layer -> natural contraction for the score matmul.
        kT = qkv[:, HIDDEN:2 * HIDDEN].T                                       # (H, BS)

        attn_rows = []
        for b in range(BATCH):                       # static unroll over batch
            rs = b * SEQ
            acc = None
            for h in range(NUM_HEADS):               # static unroll over heads
                lo = h * HEAD_DIM
                qh = qkv[rs:rs + SEQ, lo:lo + HEAD_DIM]                       # (S, D)
                khT = kT[lo:lo + HEAD_DIM, rs:rs + SEQ]                       # (D, S)
                vh = qkv[rs:rs + SEQ, 2 * HIDDEN + lo:2 * HIDDEN + lo + HEAD_DIM]
                s = jnp.dot(qh, khT, preferred_element_type=f32) * scale      # (S, S)
                s = s - jnp.max(s, axis=-1, keepdims=True)
                p = jnp.exp(s)
                p = p * pl.reciprocal(jnp.sum(p, axis=-1, keepdims=True),
                                      approx=True)                            # softmax
                ctx = jnp.dot(p, vh, preferred_element_type=f32)              # (S, D)
                # Accumulate through the matching wo slice -> no lane concat.
                contrib = jnp.dot(ctx, wo[lo:lo + HEAD_DIM, :],
                                  preferred_element_type=f32)                 # (S, H)
                acc = contrib if acc is None else acc + contrib
            attn_rows.append(acc)
        attn = jnp.concatenate(attn_rows, axis=0) + bo[...]                   # (BS, H)

        h1 = _layer_norm(x + attn, l1g[...], l1b[...])
        ff = _gelu(jnp.dot(h1, w1[...], preferred_element_type=f32) + b1[...])
        ff = jnp.dot(ff, w2[...], preferred_element_type=f32) + b2[...]
        x = _layer_norm(h1 + ff, l2g[...], l2b[...])

    # ---- CLS vector per batch element: hidden[:, 0] -> (B, H) ----
    cls = jnp.concatenate([x[b * SEQ:b * SEQ + 1, :] for b in range(BATCH)], axis=0)

    # ---- single-timestep bidirectional LSTM + Linear(2*HL -> 1) ----
    # h0 = c0 = 0, so the recurrent W_hh @ h0 term vanishes; only its bias survives
    # (already folded into b_f / b_b).
    HL = LSTM_HIDDEN

    def direction(wih_ref, b_ref):
        gates = jnp.dot(cls, wih_ref[...], preferred_element_type=f32) + b_ref[...]  # (B, 4HL)
        sg = jax.nn.sigmoid(gates)           # activate full 64-wide vector once,
        tg = jnp.tanh(gates)                 # then slice (PyTorch gate order i,f,g,o)
        i = sg[:, 0 * HL:1 * HL]
        g = tg[:, 2 * HL:3 * HL]
        o = sg[:, 3 * HL:4 * HL]
        c = i * g                            # + f * c0 (c0 == 0)
        return o * jnp.tanh(c)

    h_fwd = direction(wihf_ref, bf_ref)
    h_bwd = direction(wihb_ref, bb_ref)

    # fc on the VPU: a (B, 1) output is too small to be worth an MXU drain, and
    # splitting fc per direction removes the bi_concat lane concatenate.
    out = (jnp.sum(h_fwd * fcwf_ref[...], axis=1, keepdims=True)
           + jnp.sum(h_bwd * fcwb_ref[...], axis=1, keepdims=True)
           + fcb_ref[...])
    out_ref[...] = out.astype(out_ref.dtype)


# ------------------------------ Pallas wrapper -------------------------------
def forward(params, input_ids):
    B, S = input_ids.shape
    ids = input_ids.reshape(B * S, 1).astype(jnp.int32)
    # constant additive embedding: position + token-type-0, tiled over batch
    pos_type = jnp.tile(params["pos_emb"] + params["type_emb"][0][None, :], (B, 1))

    args = [ids, params["word_emb"], pos_type,
            params["emb_ln_g"], params["emb_ln_b"]]
    for lp in params["layers"]:
        args += [lp["wqkv"], lp["bqkv"], lp["wo"], lp["bo"],
                 lp["ln1_g"], lp["ln1_b"], lp["w1"], lp["b1"],
                 lp["w2"], lp["b2"], lp["ln2_g"], lp["ln2_b"]]
    lstm = params["lstm"]
    args += [lstm["wih_f"], lstm["b_f"], lstm["wih_b"], lstm["b_b"],
             params["fc_w_f"], params["fc_w_b"], params["fc_b"]]

    # One gridless pallas_call: every input maps to a whole-array VMEM block,
    # the full forward runs in a single kernel invocation (no per-layer
    # launches, no HBM round-trips of activations).
    return pl.pallas_call(
        fused_forward_kernel,
        out_shape=jax.ShapeDtypeStruct((B, 1), jnp.float32),
    )(*args)


# ------------------------------ params --------------------------------------
def init_params(key):
    keys = iter(jax.random.split(key, 64))

    def norm(shape, scale=0.02):
        return scale * jax.random.normal(next(keys), shape, dtype=jnp.float32)

    params = {
        "word_emb": norm((VOCAB, HIDDEN)),
        "pos_emb": norm((SEQ, HIDDEN)),
        "type_emb": norm((2, HIDDEN)),
        "emb_ln_g": jnp.ones((1, HIDDEN), jnp.float32),
        "emb_ln_b": jnp.zeros((1, HIDDEN), jnp.float32),
    }

    layers = []
    for _ in range(NUM_LAYERS):
        layers.append(dict(
            # wq | wk | wv pre-concatenated -> single fused QKV matmul in-kernel
            wqkv=norm((HIDDEN, 3 * HIDDEN)),
            bqkv=jnp.zeros((1, 3 * HIDDEN), jnp.float32),
            wo=norm((HIDDEN, HIDDEN)), bo=jnp.zeros((1, HIDDEN), jnp.float32),
            ln1_g=jnp.ones((1, HIDDEN), jnp.float32),
            ln1_b=jnp.zeros((1, HIDDEN), jnp.float32),
            w1=norm((HIDDEN, INTERMEDIATE)),
            b1=jnp.zeros((1, INTERMEDIATE), jnp.float32),
            w2=norm((INTERMEDIATE, HIDDEN)),
            b2=jnp.zeros((1, HIDDEN), jnp.float32),
            ln2_g=jnp.ones((1, HIDDEN), jnp.float32),
            ln2_b=jnp.zeros((1, HIDDEN), jnp.float32),
        ))
    params["layers"] = layers

    # bidirectional LSTM params (PyTorch uniform(-1/sqrt(H), 1/sqrt(H)) init).
    # Stored as (input, 4*hidden) -- transpose of PyTorch's (4*hidden, input) --
    # so the gate matmul contracts on the natural axis; bias = b_ih + b_hh.
    bound = 1.0 / math.sqrt(LSTM_HIDDEN)

    def uni(shape):
        return jax.random.uniform(next(keys), shape, jnp.float32, -bound, bound)

    params["lstm"] = dict(
        wih_f=uni((HIDDEN, 4 * LSTM_HIDDEN)),
        b_f=uni((1, 4 * LSTM_HIDDEN)) + uni((1, 4 * LSTM_HIDDEN)),
        wih_b=uni((HIDDEN, 4 * LSTM_HIDDEN)),
        b_b=uni((1, 4 * LSTM_HIDDEN)) + uni((1, 4 * LSTM_HIDDEN)),
    )

    # fc = nn.Linear(2*LSTM_HIDDEN, 1), xavier_uniform weight, zero bias;
    # weight pre-split per LSTM direction so no in-kernel bi_concat is needed.
    limit = math.sqrt(6.0 / (2 * LSTM_HIDDEN + 1))
    fc_w = jax.random.uniform(next(keys), (1, 2 * LSTM_HIDDEN), jnp.float32,
                              -limit, limit)
    params["fc_w_f"] = fc_w[:, :LSTM_HIDDEN]
    params["fc_w_b"] = fc_w[:, LSTM_HIDDEN:]
    params["fc_b"] = jnp.zeros((1, 1), jnp.float32)
    return params


if __name__ == "__main__":
    key = jax.random.PRNGKey(0)
    pkey, dkey = jax.random.split(key)
    params = init_params(pkey)
    input_ids = jax.random.randint(dkey, (BATCH, SEQ), 0, VOCAB, dtype=jnp.int32)

    out = jax.jit(forward)(params, input_ids)
    out = jax.block_until_ready(out)
    assert out.shape == (BATCH, 1) and out.dtype == jnp.float32
    print("KERNEL_OK")
</pallas_src>

<mosaic_0001>
module attributes {stable_mosaic.version = 11 : i64} {
  func.func @fused_forward_kernel(%arg0: memref<16x1xi32, #tpu.memory_space<vmem>>, %arg1: memref<128x32xf32, #tpu.memory_space<vmem>>, %arg2: memref<16x32xf32, #tpu.memory_space<vmem>>, %arg3: memref<1x32xf32, #tpu.memory_space<vmem>>, %arg4: memref<1x32xf32, #tpu.memory_space<vmem>>, %arg5: memref<32x96xf32, #tpu.memory_space<vmem>>, %arg6: memref<1x96xf32, #tpu.memory_space<vmem>>, %arg7: memref<32x32xf32, #tpu.memory_space<vmem>>, %arg8: memref<1x32xf32, #tpu.memory_space<vmem>>, %arg9: memref<1x32xf32, #tpu.memory_space<vmem>>, %arg10: memref<1x32xf32, #tpu.memory_space<vmem>>, %arg11: memref<32x64xf32, #tpu.memory_space<vmem>>, %arg12: memref<1x64xf32, #tpu.memory_space<vmem>>, %arg13: memref<64x32xf32, #tpu.memory_space<vmem>>, %arg14: memref<1x32xf32, #tpu.memory_space<vmem>>, %arg15: memref<1x32xf32, #tpu.memory_space<vmem>>, %arg16: memref<1x32xf32, #tpu.memory_space<vmem>>, %arg17: memref<32x96xf32, #tpu.memory_space<vmem>>, %arg18: memref<1x96xf32, #tpu.memory_space<vmem>>, %arg19: memref<32x32xf32, #tpu.memory_space<vmem>>, %arg20: memref<1x32xf32, #tpu.memory_space<vmem>>, %arg21: memref<1x32xf32, #tpu.memory_space<vmem>>, %arg22: memref<1x32xf32, #tpu.memory_space<vmem>>, %arg23: memref<32x64xf32, #tpu.memory_space<vmem>>, %arg24: memref<1x64xf32, #tpu.memory_space<vmem>>, %arg25: memref<64x32xf32, #tpu.memory_space<vmem>>, %arg26: memref<1x32xf32, #tpu.memory_space<vmem>>, %arg27: memref<1x32xf32, #tpu.memory_space<vmem>>, %arg28: memref<1x32xf32, #tpu.memory_space<vmem>>, %arg29: memref<32x64xf32, #tpu.memory_space<vmem>>, %arg30: memref<1x64xf32, #tpu.memory_space<vmem>>, %arg31: memref<32x64xf32, #tpu.memory_space<vmem>>, %arg32: memref<1x64xf32, #tpu.memory_space<vmem>>, %arg33: memref<1x16xf32, #tpu.memory_space<vmem>>, %arg34: memref<1x16xf32, #tpu.memory_space<vmem>>, %arg35: memref<1x1xf32, #tpu.memory_space<vmem>>, %arg36: memref<2x1xf32, #tpu.memory_space<vmem>>) attributes {dimension_semantics = [], scalar_prefetch = 0 : i64, scratch_operands = 0 : i64, tpu.core_type = #tpu.core_type<tc>} {
    %c0 = arith.constant 0 : index
    %c0_0 = arith.constant 0 : index
    %0 = vector.load %arg0[%c0, %c0_0] : memref<16x1xi32, #tpu.memory_space<vmem>>, vector<16x1xi32>
    %1 = tpu.iota {dimensions = array<i32: 1>} : vector<16x128xi32>
    %2 = vector.broadcast %0 : vector<16x1xi32> to vector<16x128xi32>
    %3 = arith.cmpi eq, %2, %1 : vector<16x128xi32>
    %4 = arith.extui %3 : vector<16x128xi1> to vector<16x128xi32>
    %5 = arith.sitofp %4 : vector<16x128xi32> to vector<16x128xf32>
    %c0_1 = arith.constant 0 : index
    %c0_2 = arith.constant 0 : index
    %6 = vector.load %arg1[%c0_1, %c0_2] : memref<128x32xf32, #tpu.memory_space<vmem>>, vector<128x32xf32>
    %cst = arith.constant dense<0.000000e+00> : vector<16x32xf32>
    %7 = tpu.matmul %5, %6, %cst {dimension_numbers = #tpu.dot_dimension_numbers<[1], [0], [0], [1], [0, 0, 1, 1], [], []>} : vector<16x128xf32>, vector<128x32xf32>, vector<16x32xf32> -> vector<16x32xf32>
    %c0_3 = arith.constant 0 : index
    %c0_4 = arith.constant 0 : index
    %8 = vector.load %arg2[%c0_3, %c0_4] : memref<16x32xf32, #tpu.memory_space<vmem>>, vector<16x32xf32>
    %9 = arith.addf %7, %8 : vector<16x32xf32>
    %c0_5 = arith.constant 0 : index
    %c0_6 = arith.constant 0 : index
    %10 = vector.load %arg3[%c0_5, %c0_6] : memref<1x32xf32, #tpu.memory_space<vmem>>, vector<1x32xf32>
    %c0_7 = arith.constant 0 : index
    %c0_8 = arith.constant 0 : index
    %11 = vector.load %arg4[%c0_7, %c0_8] : memref<1x32xf32, #tpu.memory_space<vmem>>, vector<1x32xf32>
    %cst_9 = arith.constant dense<0.000000e+00> : vector<16xf32>
    %12 = vector.multi_reduction <add>, %9, %cst_9 [1] : vector<16x32xf32> to vector<16xf32>
    %13 = vector.shape_cast %12 : vector<16xf32> to vector<16x1xf32>
    %cst_10 = arith.constant 3.200000e+01 : f32
    %14 = vector.broadcast %cst_10 : f32 to vector<16x1xf32>
    %15 = arith.divf %13, %14 : vector<16x1xf32>
    %16 = vector.broadcast %15 : vector<16x1xf32> to vector<16x32xf32>
    %17 = arith.subf %9, %16 : vector<16x32xf32>
    %18 = arith.mulf %17, %17 : vector<16x32xf32>
    %cst_11 = arith.constant dense<0.000000e+00> : vector<16xf32>
    %19 = vector.multi_reduction <add>, %18, %cst_11 [1] : vector<16x32xf32> to vector<16xf32>
    %20 = vector.shape_cast %19 : vector<16xf32> to vector<16x1xf32>
    %cst_12 = arith.constant 3.200000e+01 : f32
    %21 = vector.broadcast %cst_12 : f32 to vector<16x1xf32>
    %22 = arith.divf %20, %21 : vector<16x1xf32>
    %23 = vector.broadcast %15 : vector<16x1xf32> to vector<16x32xf32>
    %24 = arith.subf %9, %23 : vector<16x32xf32>
    %cst_13 = arith.constant 9.99999996E-13 : f32
    %25 = vector.broadcast %cst_13 : f32 to vector<16x1xf32>
    %26 = arith.addf %22, %25 : vector<16x1xf32>
    %27 = math.rsqrt %26 : vector<16x1xf32>
    %28 = vector.broadcast %27 : vector<16x1xf32> to vector<16x32xf32>
    %29 = arith.mulf %24, %28 : vector<16x32xf32>
    %30 = vector.broadcast %10 : vector<1x32xf32> to vector<16x32xf32>
    %31 = arith.mulf %29, %30 : vector<16x32xf32>
    %32 = vector.broadcast %11 : vector<1x32xf32> to vector<16x32xf32>
    %33 = arith.addf %31, %32 : vector<16x32xf32>
    %c0_14 = arith.constant 0 : index
    %c0_15 = arith.constant 0 : index
    %34 = vector.load %arg5[%c0_14, %c0_15] : memref<32x96xf32, #tpu.memory_space<vmem>>, vector<32x96xf32>
    %cst_16 = arith.constant dense<0.000000e+00> : vector<16x96xf32>
    %35 = tpu.matmul %33, %34, %cst_16 {dimension_numbers = #tpu.dot_dimension_numbers<[1], [0], [0], [1], [0, 0, 1, 1], [], []>} : vector<16x32xf32>, vector<32x96xf32>, vector<16x96xf32> -> vector<16x96xf32>
    %c0_17 = arith.constant 0 : index
    %c0_18 = arith.constant 0 : index
    %36 = vector.load %arg6[%c0_17, %c0_18] : memref<1x96xf32, #tpu.memory_space<vmem>>, vector<1x96xf32>
    %37 = vector.broadcast %36 : vector<1x96xf32> to vector<16x96xf32>
    %38 = arith.addf %35, %37 : vector<16x96xf32>
    %39 = vector.extract_strided_slice %38 {offsets = [0, 32], sizes = [16, 32], strides = [1, 1]} : vector<16x96xf32> to vector<16x32xf32>
    %40 = tpu.transpose %39, [1, 0] : vector<16x32xf32> -> vector<32x16xf32>
    %41 = vector.extract_strided_slice %38 {offsets = [0, 0], sizes = [8, 16], strides = [1, 1]} : vector<16x96xf32> to vector<8x16xf32>
    %42 = vector.extract_strided_slice %40 {offsets = [0, 0], sizes = [16, 8], strides = [1, 1]} : vector<32x16xf32> to vector<16x8xf32>
    %43 = vector.extract_strided_slice %38 {offsets = [0, 64], sizes = [8, 16], strides = [1, 1]} : vector<16x96xf32> to vector<8x16xf32>
    %cst_19 = arith.constant dense<0.000000e+00> : vector<8x8xf32>
    %44 = tpu.matmul %41, %42, %cst_19 {dimension_numbers = #tpu.dot_dimension_numbers<[1], [0], [0], [1], [0, 0, 1, 1], [], []>} : vector<8x16xf32>, vector<16x8xf32>, vector<8x8xf32> -> vector<8x8xf32>
    %cst_20 = arith.constant 2.500000e-01 : f32
    %45 = vector.broadcast %cst_20 : f32 to vector<8x8xf32>
    %46 = arith.mulf %44, %45 : vector<8x8xf32>
    %cst_21 = arith.constant dense<0xFF800000> : vector<8xf32>
    %47 = vector.multi_reduction <maximumf>, %46, %cst_21 [1] : vector<8x8xf32> to vector<8xf32>
    %48 = vector.shape_cast %47 : vector<8xf32> to vector<8x1xf32>
    %49 = vector.broadcast %48 : vector<8x1xf32> to vector<8x8xf32>
    %50 = arith.subf %46, %49 : vector<8x8xf32>
    %51 = math.exp %50 : vector<8x8xf32>
    %cst_22 = arith.constant dense<0.000000e+00> : vector<8xf32>
    %52 = vector.multi_reduction <add>, %51, %cst_22 [1] : vector<8x8xf32> to vector<8xf32>
    %53 = vector.shape_cast %52 : vector<8xf32> to vector<8x1xf32>
    %54 = tpu.reciprocal %53 {approx = true} : vector<8x1xf32> -> vector<8x1xf32>
    %55 = vector.broadcast %54 : vector<8x1xf32> to vector<8x8xf32>
    %56 = arith.mulf %51, %55 : vector<8x8xf32>
    %cst_23 = arith.constant dense<0.000000e+00> : vector<8x16xf32>
    %57 = tpu.matmul %56, %43, %cst_23 {dimension_numbers = #tpu.dot_dimension_numbers<[1], [0], [0], [1], [0, 0, 1, 1], [], []>} : vector<8x8xf32>, vector<8x16xf32>, vector<8x16xf32> -> vector<8x16xf32>
    %c0_24 = arith.constant 0 : index
    %c0_25 = arith.constant 0 : index
    %58 = vector.load %arg7[%c0_24, %c0_25] : memref<32x32xf32, #tpu.memory_space<vmem>>, vector<16x32xf32>
    %cst_26 = arith.constant dense<0.000000e+00> : vector<8x32xf32>
    %59 = tpu.matmul %57, %58, %cst_26 {dimension_numbers = #tpu.dot_dimension_numbers<[1], [0], [0], [1], [0, 0, 1, 1], [], []>} : vector<8x16xf32>, vector<16x32xf32>, vector<8x32xf32> -> vector<8x32xf32>
    %60 = vector.extract_strided_slice %38 {offsets = [0, 16], sizes = [8, 16], strides = [1, 1]} : vector<16x96xf32> to vector<8x16xf32>
    %61 = vector.extract_strided_slice %40 {offsets = [16, 0], sizes = [16, 8], strides = [1, 1]} : vector<32x16xf32> to vector<16x8xf32>
    %62 = vector.extract_strided_slice %38 {offsets = [0, 80], sizes = [8, 16], strides = [1, 1]} : vector<16x96xf32> to vector<8x16xf32>
    %cst_27 = arith.constant dense<0.000000e+00> : vector<8x8xf32>
    %63 = tpu.matmul %60, %61, %cst_27 {dimension_numbers = #tpu.dot_dimension_numbers<[1], [0], [0], [1], [0, 0, 1, 1], [], []>} : vector<8x16xf32>, vector<16x8xf32>, vector<8x8xf32> -> vector<8x8xf32>
    %cst_28 = arith.constant 2.500000e-01 : f32
    %64 = vector.broadcast %cst_28 : f32 to vector<8x8xf32>
    %65 = arith.mulf %63, %64 : vector<8x8xf32>
    %cst_29 = arith.constant dense<0xFF800000> : vector<8xf32>
    %66 = vector.multi_reduction <maximumf>, %65, %cst_29 [1] : vector<8x8xf32> to vector<8xf32>
    %67 = vector.shape_cast %66 : vector<8xf32> to vector<8x1xf32>
    %68 = vector.broadcast %67 : vector<8x1xf32> to vector<8x8xf32>
    %69 = arith.subf %65, %68 : vector<8x8xf32>
    %70 = math.exp %69 : vector<8x8xf32>
    %cst_30 = arith.constant dense<0.000000e+00> : vector<8xf32>
    %71 = vector.multi_reduction <add>, %70, %cst_30 [1] : vector<8x8xf32> to vector<8xf32>
    %72 = vector.shape_cast %71 : vector<8xf32> to vector<8x1xf32>
    %73 = tpu.reciprocal %72 {approx = true} : vector<8x1xf32> -> vector<8x1xf32>
    %74 = vector.broadcast %73 : vector<8x1xf32> to vector<8x8xf32>
    %75 = arith.mulf %70, %74 : vector<8x8xf32>
    %cst_31 = arith.constant dense<0.000000e+00> : vector<8x16xf32>
    %76 = tpu.matmul %75, %62, %cst_31 {dimension_numbers = #tpu.dot_dimension_numbers<[1], [0], [0], [1], [0, 0, 1, 1], [], []>} : vector<8x8xf32>, vector<8x16xf32>, vector<8x16xf32> -> vector<8x16xf32>
    %c16 = arith.constant 16 : index
    %c0_32 = arith.constant 0 : index
    %77 = vector.load %arg7[%c16, %c0_32] : memref<32x32xf32, #tpu.memory_space<vmem>>, vector<16x32xf32>
    %cst_33 = arith.constant dense<0.000000e+00> : vector<8x32xf32>
    %78 = tpu.matmul %76, %77, %cst_33 {dimension_numbers = #tpu.dot_dimension_numbers<[1], [0], [0], [1], [0, 0, 1, 1], [], []>} : vector<8x16xf32>, vector<16x32xf32>, vector<8x32xf32> -> vector<8x32xf32>
    %79 = arith.addf %59, %78 : vector<8x32xf32>
    %80 = vector.extract_strided_slice %38 {offsets = [8, 0], sizes = [8, 16], strides = [1, 1]} : vector<16x96xf32> to vector<8x16xf32>
    %81 = vector.extract_strided_slice %40 {offsets = [0, 8], sizes = [16, 8], strides = [1, 1]} : vector<32x16xf32> to vector<16x8xf32>
    %82 = vector.extract_strided_slice %38 {offsets = [8, 64], sizes = [8, 16], strides = [1, 1]} : vector<16x96xf32> to vector<8x16xf32>
    %cst_34 = arith.constant dense<0.000000e+00> : vector<8x8xf32>
    %83 = tpu.matmul %80, %81, %cst_34 {dimension_numbers = #tpu.dot_dimension_numbers<[1], [0], [0], [1], [0, 0, 1, 1], [], []>} : vector<8x16xf32>, vector<16x8xf32>, vector<8x8xf32> -> vector<8x8xf32>
    %cst_35 = arith.constant 2.500000e-01 : f32
    %84 = vector.broadcast %cst_35 : f32 to vector<8x8xf32>
    %85 = arith.mulf %83, %84 : vector<8x8xf32>
    %cst_36 = arith.constant dense<0xFF800000> : vector<8xf32>
    %86 = vector.multi_reduction <maximumf>, %85, %cst_36 [1] : vector<8x8xf32> to vector<8xf32>
    %87 = vector.shape_cast %86 : vector<8xf32> to vector<8x1xf32>
    %88 = vector.broadcast %87 : vector<8x1xf32> to vector<8x8xf32>
    %89 = arith.subf %85, %88 : vector<8x8xf32>
    %90 = math.exp %89 : vector<8x8xf32>
    %cst_37 = arith.constant dense<0.000000e+00> : vector<8xf32>
    %91 = vector.multi_reduction <add>, %90, %cst_37 [1] : vector<8x8xf32> to vector<8xf32>
    %92 = vector.shape_cast %91 : vector<8xf32> to vector<8x1xf32>
    %93 = tpu.reciprocal %92 {approx = true} : vector<8x1xf32> -> vector<8x1xf32>
    %94 = vector.broadcast %93 : vector<8x1xf32> to vector<8x8xf32>
    %95 = arith.mulf %90, %94 : vector<8x8xf32>
    %cst_38 = arith.constant dense<0.000000e+00> : vector<8x16xf32>
    %96 = tpu.matmul %95, %82, %cst_38 {dimension_numbers = #tpu.dot_dimension_numbers<[1], [0], [0], [1], [0, 0, 1, 1], [], []>} : vector<8x8xf32>, vector<8x16xf32>, vector<8x16xf32> -> vector<8x16xf32>
    %c0_39 = arith.constant 0 : index
    %c0_40 = arith.constant 0 : index
    %97 = vector.load %arg7[%c0_39, %c0_40] : memref<32x32xf32, #tpu.memory_space<vmem>>, vector<16x32xf32>
    %cst_41 = arith.constant dense<0.000000e+00> : vector<8x32xf32>
    %98 = tpu.matmul %96, %97, %cst_41 {dimension_numbers = #tpu.dot_dimension_numbers<[1], [0], [0], [1], [0, 0, 1, 1], [], []>} : vector<8x16xf32>, vector<16x32xf32>, vector<8x32xf32> -> vector<8x32xf32>
    %99 = vector.extract_strided_slice %38 {offsets = [8, 16], sizes = [8, 16], strides = [1, 1]} : vector<16x96xf32> to vector<8x16xf32>
    %100 = vector.extract_strided_slice %40 {offsets = [16, 8], sizes = [16, 8], strides = [1, 1]} : vector<32x16xf32> to vector<16x8xf32>
    %101 = vector.extract_strided_slice %38 {offsets = [8, 80], sizes = [8, 16], strides = [1, 1]} : vector<16x96xf32> to vector<8x16xf32>
    %cst_42 = arith.constant dense<0.000000e+00> : vector<8x8xf32>
    %102 = tpu.matmul %99, %100, %cst_42 {dimension_numbers = #tpu.dot_dimension_numbers<[1], [0], [0], [1], [0, 0, 1, 1], [], []>} : vector<8x16xf32>, vector<16x8xf32>, vector<8x8xf32> -> vector<8x8xf32>
    %cst_43 = arith.constant 2.500000e-01 : f32
    %103 = vector.broadcast %cst_43 : f32 to vector<8x8xf32>
    %104 = arith.mulf %102, %103 : vector<8x8xf32>
    %cst_44 = arith.constant dense<0xFF800000> : vector<8xf32>
    %105 = vector.multi_reduction <maximumf>, %104, %cst_44 [1] : vector<8x8xf32> to vector<8xf32>
    %106 = vector.shape_cast %105 : vector<8xf32> to vector<8x1xf32>
    %107 = vector.broadcast %106 : vector<8x1xf32> to vector<8x8xf32>
    %108 = arith.subf %104, %107 : vector<8x8xf32>
    %109 = math.exp %108 : vector<8x8xf32>
    %cst_45 = arith.constant dense<0.000000e+00> : vector<8xf32>
    %110 = vector.multi_reduction <add>, %109, %cst_45 [1] : vector<8x8xf32> to vector<8xf32>
    %111 = vector.shape_cast %110 : vector<8xf32> to vector<8x1xf32>
    %112 = tpu.reciprocal %111 {approx = true} : vector<8x1xf32> -> vector<8x1xf32>
    %113 = vector.broadcast %112 : vector<8x1xf32> to vector<8x8xf32>
    %114 = arith.mulf %109, %113 : vector<8x8xf32>
    %cst_46 = arith.constant dense<0.000000e+00> : vector<8x16xf32>
    %115 = tpu.matmul %114, %101, %cst_46 {dimension_numbers = #tpu.dot_dimension_numbers<[1], [0], [0], [1], [0, 0, 1, 1], [], []>} : vector<8x8xf32>, vector<8x16xf32>, vector<8x16xf32> -> vector<8x16xf32>
    %c16_47 = arith.constant 16 : index
    %c0_48 = arith.constant 0 : index
    %116 = vector.load %arg7[%c16_47, %c0_48] : memref<32x32xf32, #tpu.memory_space<vmem>>, vector<16x32xf32>
    %cst_49 = arith.constant dense<0.000000e+00> : vector<8x32xf32>
    %117 = tpu.matmul %115, %116, %cst_49 {dimension_numbers = #tpu.dot_dimension_numbers<[1], [0], [0], [1], [0, 0, 1, 1], [], []>} : vector<8x16xf32>, vector<16x32xf32>, vector<8x32xf32> -> vector<8x32xf32>
    %118 = arith.addf %98, %117 : vector<8x32xf32>
    %119 = tpu.concatenate %79, %118 in 0 : vector<8x32xf32>, vector<8x32xf32> -> vector<16x32xf32>
    %c0_50 = arith.constant 0 : index
    %c0_51 = arith.constant 0 : index
    %120 = vector.load %arg8[%c0_50, %c0_51] : memref<1x32xf32, #tpu.memory_space<vmem>>, vector<1x32xf32>
    %121 = vector.broadcast %120 : vector<1x32xf32> to vector<16x32xf32>
    %122 = arith.addf %119, %121 : vector<16x32xf32>
    %123 = arith.addf %33, %122 : vector<16x32xf32>
    %c0_52 = arith.constant 0 : index
    %c0_53 = arith.constant 0 : index
    %124 = vector.load %arg9[%c0_52, %c0_53] : memref<1x32xf32, #tpu.memory_space<vmem>>, vector<1x32xf32>
    %c0_54 = arith.constant 0 : index
    %c0_55 = arith.constant 0 : index
    %125 = vector.load %arg10[%c0_54, %c0_55] : memref<1x32xf32, #tpu.memory_space<vmem>>, vector<1x32xf32>
    %cst_56 = arith.constant dense<0.000000e+00> : vector<16xf32>
    %126 = vector.multi_reduction <add>, %123, %cst_56 [1] : vector<16x32xf32> to vector<16xf32>
    %127 = vector.shape_cast %126 : vector<16xf32> to vector<16x1xf32>
    %cst_57 = arith.constant 3.200000e+01 : f32
    %128 = vector.broadcast %cst_57 : f32 to vector<16x1xf32>
    %129 = arith.divf %127, %128 : vector<16x1xf32>
    %130 = vector.broadcast %129 : vector<16x1xf32> to vector<16x32xf32>
    %131 = arith.subf %123, %130 : vector<16x32xf32>
    %132 = arith.mulf %131, %131 : vector<16x32xf32>
    %cst_58 = arith.constant dense<0.000000e+00> : vector<16xf32>
    %133 = vector.multi_reduction <add>, %132, %cst_58 [1] : vector<16x32xf32> to vector<16xf32>
    %134 = vector.shape_cast %133 : vector<16xf32> to vector<16x1xf32>
    %cst_59 = arith.constant 3.200000e+01 : f32
    %135 = vector.broadcast %cst_59 : f32 to vector<16x1xf32>
    %136 = arith.divf %134, %135 : vector<16x1xf32>
    %137 = vector.broadcast %129 : vector<16x1xf32> to vector<16x32xf32>
    %138 = arith.subf %123, %137 : vector<16x32xf32>
    %cst_60 = arith.constant 9.99999996E-13 : f32
    %139 = vector.broadcast %cst_60 : f32 to vector<16x1xf32>
    %140 = arith.addf %136, %139 : vector<16x1xf32>
    %141 = math.rsqrt %140 : vector<16x1xf32>
    %142 = vector.broadcast %141 : vector<16x1xf32> to vector<16x32xf32>
    %143 = arith.mulf %138, %142 : vector<16x32xf32>
    %144 = vector.broadcast %124 : vector<1x32xf32> to vector<16x32xf32>
    %145 = arith.mulf %143, %144 : vector<16x32xf32>
    %146 = vector.broadcast %125 : vector<1x32xf32> to vector<16x32xf32>
    %147 = arith.addf %145, %146 : vector<16x32xf32>
    %c0_61 = arith.constant 0 : index
    %c0_62 = arith.constant 0 : index
    %148 = vector.load %arg11[%c0_61, %c0_62] : memref<32x64xf32, #tpu.memory_space<vmem>>, vector<32x64xf32>
    %cst_63 = arith.constant dense<0.000000e+00> : vector<16x64xf32>
    %149 = tpu.matmul %147, %148, %cst_63 {dimension_numbers = #tpu.dot_dimension_numbers<[1], [0], [0], [1], [0, 0, 1, 1], [], []>} : vector<16x32xf32>, vector<32x64xf32>, vector<16x64xf32> -> vector<16x64xf32>
    %c0_64 = arith.constant 0 : index
    %c0_65 = arith.constant 0 : index
    %150 = vector.load %arg12[%c0_64, %c0_65] : memref<1x64xf32, #tpu.memory_space<vmem>>, vector<1x64xf32>
    %151 = vector.broadcast %150 : vector<1x64xf32> to vector<16x64xf32>
    %152 = arith.addf %149, %151 : vector<16x64xf32>
    %cst_66 = arith.constant 5.000000e-01 : f32
    %153 = vector.broadcast %cst_66 : f32 to vector<16x64xf32>
    %154 = arith.mulf %153, %152 : vector<16x64xf32>
    %cst_67 = arith.constant 4.471500e-02 : f32
    %155 = vector.broadcast %cst_67 : f32 to vector<16x64xf32>
    %156 = arith.mulf %155, %152 : vector<16x64xf32>
    %157 = arith.mulf %156, %152 : vector<16x64xf32>
    %158 = arith.mulf %157, %152 : vector<16x64xf32>
    %159 = arith.addf %152, %158 : vector<16x64xf32>
    %cst_68 = arith.constant 0.797884583 : f32
    %160 = vector.broadcast %cst_68 : f32 to vector<16x64xf32>
    %161 = arith.mulf %160, %159 : vector<16x64xf32>
    %162 = math.tanh %161 : vector<16x64xf32>
    %cst_69 = arith.constant 1.000000e+00 : f32
    %163 = vector.broadcast %cst_69 : f32 to vector<16x64xf32>
    %164 = arith.addf %163, %162 : vector<16x64xf32>
    %165 = arith.mulf %154, %164 : vector<16x64xf32>
    %c0_70 = arith.constant 0 : index
    %c0_71 = arith.constant 0 : index
    %166 = vector.load %arg13[%c0_70, %c0_71] : memref<64x32xf32, #tpu.memory_space<vmem>>, vector<64x32xf32>
    %cst_72 = arith.constant dense<0.000000e+00> : vector<16x32xf32>
    %167 = tpu.matmul %165, %166, %cst_72 {dimension_numbers = #tpu.dot_dimension_numbers<[1], [0], [0], [1], [0, 0, 1, 1], [], []>} : vector<16x64xf32>, vector<64x32xf32>, vector<16x32xf32> -> vector<16x32xf32>
    %c0_73 = arith.constant 0 : index
    %c0_74 = arith.constant 0 : index
    %168 = vector.load %arg14[%c0_73, %c0_74] : memref<1x32xf32, #tpu.memory_space<vmem>>, vector<1x32xf32>
    %169 = vector.broadcast %168 : vector<1x32xf32> to vector<16x32xf32>
    %170 = arith.addf %167, %169 : vector<16x32xf32>
    %171 = arith.addf %147, %170 : vector<16x32xf32>
    %c0_75 = arith.constant 0 : index
    %c0_76 = arith.constant 0 : index
    %172 = vector.load %arg15[%c0_75, %c0_76] : memref<1x32xf32, #tpu.memory_space<vmem>>, vector<1x32xf32>
    %c0_77 = arith.constant 0 : index
    %c0_78 = arith.constant 0 : index
    %173 = vector.load %arg16[%c0_77, %c0_78] : memref<1x32xf32, #tpu.memory_space<vmem>>, vector<1x32xf32>
    %cst_79 = arith.constant dense<0.000000e+00> : vector<16xf32>
    %174 = vector.multi_reduction <add>, %171, %cst_79 [1] : vector<16x32xf32> to vector<16xf32>
    %175 = vector.shape_cast %174 : vector<16xf32> to vector<16x1xf32>
    %cst_80 = arith.constant 3.200000e+01 : f32
    %176 = vector.broadcast %cst_80 : f32 to vector<16x1xf32>
    %177 = arith.divf %175, %176 : vector<16x1xf32>
    %178 = vector.broadcast %177 : vector<16x1xf32> to vector<16x32xf32>
    %179 = arith.subf %171, %178 : vector<16x32xf32>
    %180 = arith.mulf %179, %179 : vector<16x32xf32>
    %cst_81 = arith.constant dense<0.000000e+00> : vector<16xf32>
    %181 = vector.multi_reduction <add>, %180, %cst_81 [1] : vector<16x32xf32> to vector<16xf32>
    %182 = vector.shape_cast %181 : vector<16xf32> to vector<16x1xf32>
    %cst_82 = arith.constant 3.200000e+01 : f32
    %183 = vector.broadcast %cst_82 : f32 to vector<16x1xf32>
    %184 = arith.divf %182, %183 : vector<16x1xf32>
    %185 = vector.broadcast %177 : vector<16x1xf32> to vector<16x32xf32>
    %186 = arith.subf %171, %185 : vector<16x32xf32>
    %cst_83 = arith.constant 9.99999996E-13 : f32
    %187 = vector.broadcast %cst_83 : f32 to vector<16x1xf32>
    %188 = arith.addf %184, %187 : vector<16x1xf32>
    %189 = math.rsqrt %188 : vector<16x1xf32>
    %190 = vector.broadcast %189 : vector<16x1xf32> to vector<16x32xf32>
    %191 = arith.mulf %186, %190 : vector<16x32xf32>
    %192 = vector.broadcast %172 : vector<1x32xf32> to vector<16x32xf32>
    %193 = arith.mulf %191, %192 : vector<16x32xf32>
    %194 = vector.broadcast %173 : vector<1x32xf32> to vector<16x32xf32>
    %195 = arith.addf %193, %194 : vector<16x32xf32>
    %c0_84 = arith.constant 0 : index
    %c0_85 = arith.constant 0 : index
    %196 = vector.load %arg17[%c0_84, %c0_85] : memref<32x96xf32, #tpu.memory_space<vmem>>, vector<32x96xf32>
    %cst_86 = arith.constant dense<0.000000e+00> : vector<16x96xf32>
    %197 = tpu.matmul %195, %196, %cst_86 {dimension_numbers = #tpu.dot_dimension_numbers<[1], [0], [0], [1], [0, 0, 1, 1], [], []>} : vector<16x32xf32>, vector<32x96xf32>, vector<16x96xf32> -> vector<16x96xf32>
    %c0_87 = arith.constant 0 : index
    %c0_88 = arith.constant 0 : index
    %198 = vector.load %arg18[%c0_87, %c0_88] : memref<1x96xf32, #tpu.memory_space<vmem>>, vector<1x96xf32>
    %199 = vector.broadcast %198 : vector<1x96xf32> to vector<16x96xf32>
    %200 = arith.addf %197, %199 : vector<16x96xf32>
    %201 = vector.extract_strided_slice %200 {offsets = [0, 32], sizes = [16, 32], strides = [1, 1]} : vector<16x96xf32> to vector<16x32xf32>
    %202 = tpu.transpose %201, [1, 0] : vector<16x32xf32> -> vector<32x16xf32>
    %203 = vector.extract_strided_slice %200 {offsets = [0, 0], sizes = [8, 16], strides = [1, 1]} : vector<16x96xf32> to vector<8x16xf32>
    %204 = vector.extract_strided_slice %202 {offsets = [0, 0], sizes = [16, 8], strides = [1, 1]} : vector<32x16xf32> to vector<16x8xf32>
    %205 = vector.extract_strided_slice %200 {offsets = [0, 64], sizes = [8, 16], strides = [1, 1]} : vector<16x96xf32> to vector<8x16xf32>
    %cst_89 = arith.constant dense<0.000000e+00> : vector<8x8xf32>
    %206 = tpu.matmul %203, %204, %cst_89 {dimension_numbers = #tpu.dot_dimension_numbers<[1], [0], [0], [1], [0, 0, 1, 1], [], []>} : vector<8x16xf32>, vector<16x8xf32>, vector<8x8xf32> -> vector<8x8xf32>
    %cst_90 = arith.constant 2.500000e-01 : f32
    %207 = vector.broadcast %cst_90 : f32 to vector<8x8xf32>
    %208 = arith.mulf %206, %207 : vector<8x8xf32>
    %cst_91 = arith.constant dense<0xFF800000> : vector<8xf32>
    %209 = vector.multi_reduction <maximumf>, %208, %cst_91 [1] : vector<8x8xf32> to vector<8xf32>
    %210 = vector.shape_cast %209 : vector<8xf32> to vector<8x1xf32>
    %211 = vector.broadcast %210 : vector<8x1xf32> to vector<8x8xf32>
    %212 = arith.subf %208, %211 : vector<8x8xf32>
    %213 = math.exp %212 : vector<8x8xf32>
    %cst_92 = arith.constant dense<0.000000e+00> : vector<8xf32>
    %214 = vector.multi_reduction <add>, %213, %cst_92 [1] : vector<8x8xf32> to vector<8xf32>
    %215 = vector.shape_cast %214 : vector<8xf32> to vector<8x1xf32>
    %216 = tpu.reciprocal %215 {approx = true} : vector<8x1xf32> -> vector<8x1xf32>
    %217 = vector.broadcast %216 : vector<8x1xf32> to vector<8x8xf32>
    %218 = arith.mulf %213, %217 : vector<8x8xf32>
    %cst_93 = arith.constant dense<0.000000e+00> : vector<8x16xf32>
    %219 = tpu.matmul %218, %205, %cst_93 {dimension_numbers = #tpu.dot_dimension_numbers<[1], [0], [0], [1], [0, 0, 1, 1], [], []>} : vector<8x8xf32>, vector<8x16xf32>, vector<8x16xf32> -> vector<8x16xf32>
    %c0_94 = arith.constant 0 : index
    %c0_95 = arith.constant 0 : index
    %220 = vector.load %arg19[%c0_94, %c0_95] : memref<32x32xf32, #tpu.memory_space<vmem>>, vector<16x32xf32>
    %cst_96 = arith.constant dense<0.000000e+00> : vector<8x32xf32>
    %221 = tpu.matmul %219, %220, %cst_96 {dimension_numbers = #tpu.dot_dimension_numbers<[1], [0], [0], [1], [0, 0, 1, 1], [], []>} : vector<8x16xf32>, vector<16x32xf32>, vector<8x32xf32> -> vector<8x32xf32>
    %222 = vector.extract_strided_slice %200 {offsets = [0, 16], sizes = [8, 16], strides = [1, 1]} : vector<16x96xf32> to vector<8x16xf32>
    %223 = vector.extract_strided_slice %202 {offsets = [16, 0], sizes = [16, 8], strides = [1, 1]} : vector<32x16xf32> to vector<16x8xf32>
    %224 = vector.extract_strided_slice %200 {offsets = [0, 80], sizes = [8, 16], strides = [1, 1]} : vector<16x96xf32> to vector<8x16xf32>
    %cst_97 = arith.constant dense<0.000000e+00> : vector<8x8xf32>
    %225 = tpu.matmul %222, %223, %cst_97 {dimension_numbers = #tpu.dot_dimension_numbers<[1], [0], [0], [1], [0, 0, 1, 1], [], []>} : vector<8x16xf32>, vector<16x8xf32>, vector<8x8xf32> -> vector<8x8xf32>
    %cst_98 = arith.constant 2.500000e-01 : f32
    %226 = vector.broadcast %cst_98 : f32 to vector<8x8xf32>
    %227 = arith.mulf %225, %226 : vector<8x8xf32>
    %cst_99 = arith.constant dense<0xFF800000> : vector<8xf32>
    %228 = vector.multi_reduction <maximumf>, %227, %cst_99 [1] : vector<8x8xf32> to vector<8xf32>
    %229 = vector.shape_cast %228 : vector<8xf32> to vector<8x1xf32>
    %230 = vector.broadcast %229 : vector<8x1xf32> to vector<8x8xf32>
    %231 = arith.subf %227, %230 : vector<8x8xf32>
    %232 = math.exp %231 : vector<8x8xf32>
    %cst_100 = arith.constant dense<0.000000e+00> : vector<8xf32>
    %233 = vector.multi_reduction <add>, %232, %cst_100 [1] : vector<8x8xf32> to vector<8xf32>
    %234 = vector.shape_cast %233 : vector<8xf32> to vector<8x1xf32>
    %235 = tpu.reciprocal %234 {approx = true} : vector<8x1xf32> -> vector<8x1xf32>
    %236 = vector.broadcast %235 : vector<8x1xf32> to vector<8x8xf32>
    %237 = arith.mulf %232, %236 : vector<8x8xf32>
    %cst_101 = arith.constant dense<0.000000e+00> : vector<8x16xf32>
    %238 = tpu.matmul %237, %224, %cst_101 {dimension_numbers = #tpu.dot_dimension_numbers<[1], [0], [0], [1], [0, 0, 1, 1], [], []>} : vector<8x8xf32>, vector<8x16xf32>, vector<8x16xf32> -> vector<8x16xf32>
    %c16_102 = arith.constant 16 : index
    %c0_103 = arith.constant 0 : index
    %239 = vector.load %arg19[%c16_102, %c0_103] : memref<32x32xf32, #tpu.memory_space<vmem>>, vector<16x32xf32>
    %cst_104 = arith.constant dense<0.000000e+00> : vector<8x32xf32>
    %240 = tpu.matmul %238, %239, %cst_104 {dimension_numbers = #tpu.dot_dimension_numbers<[1], [0], [0], [1], [0, 0, 1, 1], [], []>} : vector<8x16xf32>, vector<16x32xf32>, vector<8x32xf32> -> vector<8x32xf32>
    %241 = arith.addf %221, %240 : vector<8x32xf32>
    %242 = vector.extract_strided_slice %200 {offsets = [8, 0], sizes = [8, 16], strides = [1, 1]} : vector<16x96xf32> to vector<8x16xf32>
    %243 = vector.extract_strided_slice %202 {offsets = [0, 8], sizes = [16, 8], strides = [1, 1]} : vector<32x16xf32> to vector<16x8xf32>
    %244 = vector.extract_strided_slice %200 {offsets = [8, 64], sizes = [8, 16], strides = [1, 1]} : vector<16x96xf32> to vector<8x16xf32>
    %cst_105 = arith.constant dense<0.000000e+00> : vector<8x8xf32>
    %245 = tpu.matmul %242, %243, %cst_105 {dimension_numbers = #tpu.dot_dimension_numbers<[1], [0], [0], [1], [0, 0, 1, 1], [], []>} : vector<8x16xf32>, vector<16x8xf32>, vector<8x8xf32> -> vector<8x8xf32>
    %cst_106 = arith.constant 2.500000e-01 : f32
    %246 = vector.broadcast %cst_106 : f32 to vector<8x8xf32>
    %247 = arith.mulf %245, %246 : vector<8x8xf32>
    %cst_107 = arith.constant dense<0xFF800000> : vector<8xf32>
    %248 = vector.multi_reduction <maximumf>, %247, %cst_107 [1] : vector<8x8xf32> to vector<8xf32>
    %249 = vector.shape_cast %248 : vector<8xf32> to vector<8x1xf32>
    %250 = vector.broadcast %249 : vector<8x1xf32> to vector<8x8xf32>
    %251 = arith.subf %247, %250 : vector<8x8xf32>
    %252 = math.exp %251 : vector<8x8xf32>
    %cst_108 = arith.constant dense<0.000000e+00> : vector<8xf32>
    %253 = vector.multi_reduction <add>, %252, %cst_108 [1] : vector<8x8xf32> to vector<8xf32>
    %254 = vector.shape_cast %253 : vector<8xf32> to vector<8x1xf32>
    %255 = tpu.reciprocal %254 {approx = true} : vector<8x1xf32> -> vector<8x1xf32>
    %256 = vector.broadcast %255 : vector<8x1xf32> to vector<8x8xf32>
    %257 = arith.mulf %252, %256 : vector<8x8xf32>
    %cst_109 = arith.constant dense<0.000000e+00> : vector<8x16xf32>
    %258 = tpu.matmul %257, %244, %cst_109 {dimension_numbers = #tpu.dot_dimension_numbers<[1], [0], [0], [1], [0, 0, 1, 1], [], []>} : vector<8x8xf32>, vector<8x16xf32>, vector<8x16xf32> -> vector<8x16xf32>
    %c0_110 = arith.constant 0 : index
    %c0_111 = arith.constant 0 : index
    %259 = vector.load %arg19[%c0_110, %c0_111] : memref<32x32xf32, #tpu.memory_space<vmem>>, vector<16x32xf32>
    %cst_112 = arith.constant dense<0.000000e+00> : vector<8x32xf32>
    %260 = tpu.matmul %258, %259, %cst_112 {dimension_numbers = #tpu.dot_dimension_numbers<[1], [0], [0], [1], [0, 0, 1, 1], [], []>} : vector<8x16xf32>, vector<16x32xf32>, vector<8x32xf32> -> vector<8x32xf32>
    %261 = vector.extract_strided_slice %200 {offsets = [8, 16], sizes = [8, 16], strides = [1, 1]} : vector<16x96xf32> to vector<8x16xf32>
    %262 = vector.extract_strided_slice %202 {offsets = [16, 8], sizes = [16, 8], strides = [1, 1]} : vector<32x16xf32> to vector<16x8xf32>
    %263 = vector.extract_strided_slice %200 {offsets = [8, 80], sizes = [8, 16], strides = [1, 1]} : vector<16x96xf32> to vector<8x16xf32>
    %cst_113 = arith.constant dense<0.000000e+00> : vector<8x8xf32>
    %264 = tpu.matmul %261, %262, %cst_113 {dimension_numbers = #tpu.dot_dimension_numbers<[1], [0], [0], [1], [0, 0, 1, 1], [], []>} : vector<8x16xf32>, vector<16x8xf32>, vector<8x8xf32> -> vector<8x8xf32>
    %cst_114 = arith.constant 2.500000e-01 : f32
    %265 = vector.broadcast %cst_114 : f32 to vector<8x8xf32>
    %266 = arith.mulf %264, %265 : vector<8x8xf32>
    %cst_115 = arith.constant dense<0xFF800000> : vector<8xf32>
    %267 = vector.multi_reduction <maximumf>, %266, %cst_115 [1] : vector<8x8xf32> to vector<8xf32>
    %268 = vector.shape_cast %267 : vector<8xf32> to vector<8x1xf32>
    %269 = vector.broadcast %268 : vector<8x1xf32> to vector<8x8xf32>
    %270 = arith.subf %266, %269 : vector<8x8xf32>
    %271 = math.exp %270 : vector<8x8xf32>
    %cst_116 = arith.constant dense<0.000000e+00> : vector<8xf32>
    %272 = vector.multi_reduction <add>, %271, %cst_116 [1] : vector<8x8xf32> to vector<8xf32>
    %273 = vector.shape_cast %272 : vector<8xf32> to vector<8x1xf32>
    %274 = tpu.reciprocal %273 {approx = true} : vector<8x1xf32> -> vector<8x1xf32>
    %275 = vector.broadcast %274 : vector<8x1xf32> to vector<8x8xf32>
    %276 = arith.mulf %271, %275 : vector<8x8xf32>
    %cst_117 = arith.constant dense<0.000000e+00> : vector<8x16xf32>
    %277 = tpu.matmul %276, %263, %cst_117 {dimension_numbers = #tpu.dot_dimension_numbers<[1], [0], [0], [1], [0, 0, 1, 1], [], []>} : vector<8x8xf32>, vector<8x16xf32>, vector<8x16xf32> -> vector<8x16xf32>
    %c16_118 = arith.constant 16 : index
    %c0_119 = arith.constant 0 : index
    %278 = vector.load %arg19[%c16_118, %c0_119] : memref<32x32xf32, #tpu.memory_space<vmem>>, vector<16x32xf32>
    %cst_120 = arith.constant dense<0.000000e+00> : vector<8x32xf32>
    %279 = tpu.matmul %277, %278, %cst_120 {dimension_numbers = #tpu.dot_dimension_numbers<[1], [0], [0], [1], [0, 0, 1, 1], [], []>} : vector<8x16xf32>, vector<16x32xf32>, vector<8x32xf32> -> vector<8x32xf32>
    %280 = arith.addf %260, %279 : vector<8x32xf32>
    %281 = tpu.concatenate %241, %280 in 0 : vector<8x32xf32>, vector<8x32xf32> -> vector<16x32xf32>
    %c0_121 = arith.constant 0 : index
    %c0_122 = arith.constant 0 : index
    %282 = vector.load %arg20[%c0_121, %c0_122] : memref<1x32xf32, #tpu.memory_space<vmem>>, vector<1x32xf32>
    %283 = vector.broadcast %282 : vector<1x32xf32> to vector<16x32xf32>
    %284 = arith.addf %281, %283 : vector<16x32xf32>
    %285 = arith.addf %195, %284 : vector<16x32xf32>
    %c0_123 = arith.constant 0 : index
    %c0_124 = arith.constant 0 : index
    %286 = vector.load %arg21[%c0_123, %c0_124] : memref<1x32xf32, #tpu.memory_space<vmem>>, vector<1x32xf32>
    %c0_125 = arith.constant 0 : index
    %c0_126 = arith.constant 0 : index
    %287 = vector.load %arg22[%c0_125, %c0_126] : memref<1x32xf32, #tpu.memory_space<vmem>>, vector<1x32xf32>
    %cst_127 = arith.constant dense<0.000000e+00> : vector<16xf32>
    %288 = vector.multi_reduction <add>, %285, %cst_127 [1] : vector<16x32xf32> to vector<16xf32>
    %289 = vector.shape_cast %288 : vector<16xf32> to vector<16x1xf32>
    %cst_128 = arith.constant 3.200000e+01 : f32
    %290 = vector.broadcast %cst_128 : f32 to vector<16x1xf32>
    %291 = arith.divf %289, %290 : vector<16x1xf32>
    %292 = vector.broadcast %291 : vector<16x1xf32> to vector<16x32xf32>
    %293 = arith.subf %285, %292 : vector<16x32xf32>
    %294 = arith.mulf %293, %293 : vector<16x32xf32>
    %cst_129 = arith.constant dense<0.000000e+00> : vector<16xf32>
    %295 = vector.multi_reduction <add>, %294, %cst_129 [1] : vector<16x32xf32> to vector<16xf32>
    %296 = vector.shape_cast %295 : vector<16xf32> to vector<16x1xf32>
    %cst_130 = arith.constant 3.200000e+01 : f32
    %297 = vector.broadcast %cst_130 : f32 to vector<16x1xf32>
    %298 = arith.divf %296, %297 : vector<16x1xf32>
    %299 = vector.broadcast %291 : vector<16x1xf32> to vector<16x32xf32>
    %300 = arith.subf %285, %299 : vector<16x32xf32>
    %cst_131 = arith.constant 9.99999996E-13 : f32
    %301 = vector.broadcast %cst_131 : f32 to vector<16x1xf32>
    %302 = arith.addf %298, %301 : vector<16x1xf32>
    %303 = math.rsqrt %302 : vector<16x1xf32>
    %304 = vector.broadcast %303 : vector<16x1xf32> to vector<16x32xf32>
    %305 = arith.mulf %300, %304 : vector<16x32xf32>
    %306 = vector.broadcast %286 : vector<1x32xf32> to vector<16x32xf32>
    %307 = arith.mulf %305, %306 : vector<16x32xf32>
    %308 = vector.broadcast %287 : vector<1x32xf32> to vector<16x32xf32>
    %309 = arith.addf %307, %308 : vector<16x32xf32>
    %c0_132 = arith.constant 0 : index
    %c0_133 = arith.constant 0 : index
    %310 = vector.load %arg23[%c0_132, %c0_133] : memref<32x64xf32, #tpu.memory_space<vmem>>, vector<32x64xf32>
    %cst_134 = arith.constant dense<0.000000e+00> : vector<16x64xf32>
    %311 = tpu.matmul %309, %310, %cst_134 {dimension_numbers = #tpu.dot_dimension_numbers<[1], [0], [0], [1], [0, 0, 1, 1], [], []>} : vector<16x32xf32>, vector<32x64xf32>, vector<16x64xf32> -> vector<16x64xf32>
    %c0_135 = arith.constant 0 : index
    %c0_136 = arith.constant 0 : index
    %312 = vector.load %arg24[%c0_135, %c0_136] : memref<1x64xf32, #tpu.memory_space<vmem>>, vector<1x64xf32>
    %313 = vector.broadcast %312 : vector<1x64xf32> to vector<16x64xf32>
    %314 = arith.addf %311, %313 : vector<16x64xf32>
    %cst_137 = arith.constant 5.000000e-01 : f32
    %315 = vector.broadcast %cst_137 : f32 to vector<16x64xf32>
    %316 = arith.mulf %315, %314 : vector<16x64xf32>
    %cst_138 = arith.constant 4.471500e-02 : f32
    %317 = vector.broadcast %cst_138 : f32 to vector<16x64xf32>
    %318 = arith.mulf %317, %314 : vector<16x64xf32>
    %319 = arith.mulf %318, %314 : vector<16x64xf32>
    %320 = arith.mulf %319, %314 : vector<16x64xf32>
    %321 = arith.addf %314, %320 : vector<16x64xf32>
    %cst_139 = arith.constant 0.797884583 : f32
    %322 = vector.broadcast %cst_139 : f32 to vector<16x64xf32>
    %323 = arith.mulf %322, %321 : vector<16x64xf32>
    %324 = math.tanh %323 : vector<16x64xf32>
    %cst_140 = arith.constant 1.000000e+00 : f32
    %325 = vector.broadcast %cst_140 : f32 to vector<16x64xf32>
    %326 = arith.addf %325, %324 : vector<16x64xf32>
    %327 = arith.mulf %316, %326 : vector<16x64xf32>
    %c0_141 = arith.constant 0 : index
    %c0_142 = arith.constant 0 : index
    %328 = vector.load %arg25[%c0_141, %c0_142] : memref<64x32xf32, #tpu.memory_space<vmem>>, vector<64x32xf32>
    %cst_143 = arith.constant dense<0.000000e+00> : vector<16x32xf32>
    %329 = tpu.matmul %327, %328, %cst_143 {dimension_numbers = #tpu.dot_dimension_numbers<[1], [0], [0], [1], [0, 0, 1, 1], [], []>} : vector<16x64xf32>, vector<64x32xf32>, vector<16x32xf32> -> vector<16x32xf32>
    %c0_144 = arith.constant 0 : index
    %c0_145 = arith.constant 0 : index
    %330 = vector.load %arg26[%c0_144, %c0_145] : memref<1x32xf32, #tpu.memory_space<vmem>>, vector<1x32xf32>
    %331 = vector.broadcast %330 : vector<1x32xf32> to vector<16x32xf32>
    %332 = arith.addf %329, %331 : vector<16x32xf32>
    %333 = arith.addf %309, %332 : vector<16x32xf32>
    %c0_146 = arith.constant 0 : index
    %c0_147 = arith.constant 0 : index
    %334 = vector.load %arg27[%c0_146, %c0_147] : memref<1x32xf32, #tpu.memory_space<vmem>>, vector<1x32xf32>
    %c0_148 = arith.constant 0 : index
    %c0_149 = arith.constant 0 : index
    %335 = vector.load %arg28[%c0_148, %c0_149] : memref<1x32xf32, #tpu.memory_space<vmem>>, vector<1x32xf32>
    %cst_150 = arith.constant dense<0.000000e+00> : vector<16xf32>
    %336 = vector.multi_reduction <add>, %333, %cst_150 [1] : vector<16x32xf32> to vector<16xf32>
    %337 = vector.shape_cast %336 : vector<16xf32> to vector<16x1xf32>
    %cst_151 = arith.constant 3.200000e+01 : f32
    %338 = vector.broadcast %cst_151 : f32 to vector<16x1xf32>
    %339 = arith.divf %337, %338 : vector<16x1xf32>
    %340 = vector.broadcast %339 : vector<16x1xf32> to vector<16x32xf32>
    %341 = arith.subf %333, %340 : vector<16x32xf32>
    %342 = arith.mulf %341, %341 : vector<16x32xf32>
    %cst_152 = arith.constant dense<0.000000e+00> : vector<16xf32>
    %343 = vector.multi_reduction <add>, %342, %cst_152 [1] : vector<16x32xf32> to vector<16xf32>
    %344 = vector.shape_cast %343 : vector<16xf32> to vector<16x1xf32>
    %cst_153 = arith.constant 3.200000e+01 : f32
    %345 = vector.broadcast %cst_153 : f32 to vector<16x1xf32>
    %346 = arith.divf %344, %345 : vector<16x1xf32>
    %347 = vector.broadcast %339 : vector<16x1xf32> to vector<16x32xf32>
    %348 = arith.subf %333, %347 : vector<16x32xf32>
    %cst_154 = arith.constant 9.99999996E-13 : f32
    %349 = vector.broadcast %cst_154 : f32 to vector<16x1xf32>
    %350 = arith.addf %346, %349 : vector<16x1xf32>
    %351 = math.rsqrt %350 : vector<16x1xf32>
    %352 = vector.broadcast %351 : vector<16x1xf32> to vector<16x32xf32>
    %353 = arith.mulf %348, %352 : vector<16x32xf32>
    %354 = vector.broadcast %334 : vector<1x32xf32> to vector<16x32xf32>
    %355 = arith.mulf %353, %354 : vector<16x32xf32>
    %356 = vector.broadcast %335 : vector<1x32xf32> to vector<16x32xf32>
    %357 = arith.addf %355, %356 : vector<16x32xf32>
    %358 = vector.extract_strided_slice %357 {offsets = [0, 0], sizes = [1, 32], strides = [1, 1]} : vector<16x32xf32> to vector<1x32xf32>
    %359 = vector.extract_strided_slice %357 {offsets = [8, 0], sizes = [1, 32], strides = [1, 1]} : vector<16x32xf32> to vector<1x32xf32>
    %360 = tpu.concatenate %358, %359 in 0 : vector<1x32xf32>, vector<1x32xf32> -> vector<2x32xf32>
    %c0_155 = arith.constant 0 : index
    %c0_156 = arith.constant 0 : index
    %361 = vector.load %arg29[%c0_155, %c0_156] : memref<32x64xf32, #tpu.memory_space<vmem>>, vector<32x64xf32>
    %cst_157 = arith.constant dense<0.000000e+00> : vector<2x64xf32>
    %362 = tpu.matmul %360, %361, %cst_157 {dimension_numbers = #tpu.dot_dimension_numbers<[1], [0], [0], [1], [0, 0, 1, 1], [], []>} : vector<2x32xf32>, vector<32x64xf32>, vector<2x64xf32> -> vector<2x64xf32>
    %c0_158 = arith.constant 0 : index
    %c0_159 = arith.constant 0 : index
    %363 = vector.load %arg30[%c0_158, %c0_159] : memref<1x64xf32, #tpu.memory_space<vmem>>, vector<1x64xf32>
    %364 = vector.broadcast %363 : vector<1x64xf32> to vector<2x64xf32>
    %365 = arith.addf %362, %364 : vector<2x64xf32>
    %366 = arith.negf %365 : vector<2x64xf32>
    %367 = math.exp %366 : vector<2x64xf32>
    %cst_160 = arith.constant 1.000000e+00 : f32
    %368 = vector.broadcast %cst_160 : f32 to vector<2x64xf32>
    %369 = arith.addf %368, %367 : vector<2x64xf32>
    %370 = arith.divf %368, %369 : vector<2x64xf32>
    %371 = math.tanh %365 : vector<2x64xf32>
    %372 = vector.extract_strided_slice %370 {offsets = [0, 0], sizes = [2, 16], strides = [1, 1]} : vector<2x64xf32> to vector<2x16xf32>
    %373 = vector.extract_strided_slice %371 {offsets = [0, 32], sizes = [2, 16], strides = [1, 1]} : vector<2x64xf32> to vector<2x16xf32>
    %374 = vector.extract_strided_slice %370 {offsets = [0, 48], sizes = [2, 16], strides = [1, 1]} : vector<2x64xf32> to vector<2x16xf32>
    %375 = arith.mulf %372, %373 : vector<2x16xf32>
    %376 = math.tanh %375 : vector<2x16xf32>
    %377 = arith.mulf %374, %376 : vector<2x16xf32>
    %c0_161 = arith.constant 0 : index
    %c0_162 = arith.constant 0 : index
    %378 = vector.load %arg31[%c0_161, %c0_162] : memref<32x64xf32, #tpu.memory_space<vmem>>, vector<32x64xf32>
    %cst_163 = arith.constant dense<0.000000e+00> : vector<2x64xf32>
    %379 = tpu.matmul %360, %378, %cst_163 {dimension_numbers = #tpu.dot_dimension_numbers<[1], [0], [0], [1], [0, 0, 1, 1], [], []>} : vector<2x32xf32>, vector<32x64xf32>, vector<2x64xf32> -> vector<2x64xf32>
    %c0_164 = arith.constant 0 : index
    %c0_165 = arith.constant 0 : index
    %380 = vector.load %arg32[%c0_164, %c0_165] : memref<1x64xf32, #tpu.memory_space<vmem>>, vector<1x64xf32>
    %381 = vector.broadcast %380 : vector<1x64xf32> to vector<2x64xf32>
    %382 = arith.addf %379, %381 : vector<2x64xf32>
    %383 = arith.negf %382 : vector<2x64xf32>
    %384 = math.exp %383 : vector<2x64xf32>
    %cst_166 = arith.constant 1.000000e+00 : f32
    %385 = vector.broadcast %cst_166 : f32 to vector<2x64xf32>
    %386 = arith.addf %385, %384 : vector<2x64xf32>
    %387 = arith.divf %385, %386 : vector<2x64xf32>
    %388 = math.tanh %382 : vector<2x64xf32>
    %389 = vector.extract_strided_slice %387 {offsets = [0, 0], sizes = [2, 16], strides = [1, 1]} : vector<2x64xf32> to vector<2x16xf32>
    %390 = vector.extract_strided_slice %388 {offsets = [0, 32], sizes = [2, 16], strides = [1, 1]} : vector<2x64xf32> to vector<2x16xf32>
    %391 = vector.extract_strided_slice %387 {offsets = [0, 48], sizes = [2, 16], strides = [1, 1]} : vector<2x64xf32> to vector<2x16xf32>
    %392 = arith.mulf %389, %390 : vector<2x16xf32>
    %393 = math.tanh %392 : vector<2x16xf32>
    %394 = arith.mulf %391, %393 : vector<2x16xf32>
    %c0_167 = arith.constant 0 : index
    %c0_168 = arith.constant 0 : index
    %395 = vector.load %arg33[%c0_167, %c0_168] : memref<1x16xf32, #tpu.memory_space<vmem>>, vector<1x16xf32>
    %396 = vector.broadcast %395 : vector<1x16xf32> to vector<2x16xf32>
    %397 = arith.mulf %377, %396 : vector<2x16xf32>
    %cst_169 = arith.constant dense<0.000000e+00> : vector<2xf32>
    %398 = vector.multi_reduction <add>, %397, %cst_169 [1] : vector<2x16xf32> to vector<2xf32>
    %399 = vector.shape_cast %398 : vector<2xf32> to vector<2x1xf32>
    %c0_170 = arith.constant 0 : index
    %c0_171 = arith.constant 0 : index
    %400 = vector.load %arg34[%c0_170, %c0_171] : memref<1x16xf32, #tpu.memory_space<vmem>>, vector<1x16xf32>
    %401 = vector.broadcast %400 : vector<1x16xf32> to vector<2x16xf32>
    %402 = arith.mulf %394, %401 : vector<2x16xf32>
    %cst_172 = arith.constant dense<0.000000e+00> : vector<2xf32>
    %403 = vector.multi_reduction <add>, %402, %cst_172 [1] : vector<2x16xf32> to vector<2xf32>
    %404 = vector.shape_cast %403 : vector<2xf32> to vector<2x1xf32>
    %405 = arith.addf %399, %404 : vector<2x1xf32>
    %c0_173 = arith.constant 0 : index
    %c0_174 = arith.constant 0 : index
    %406 = vector.load %arg35[%c0_173, %c0_174] : memref<1x1xf32, #tpu.memory_space<vmem>>, vector<1x1xf32>
    %407 = vector.broadcast %406 : vector<1x1xf32> to vector<2x1xf32>
    %408 = arith.addf %405, %407 : vector<2x1xf32>
    %c0_175 = arith.constant 0 : index
    %c0_176 = arith.constant 0 : index
    %409 = vector.load %arg36[%c0_175, %c0_176] : memref<2x1xf32, #tpu.memory_space<vmem>>, vector<2x1xf32>
    tpu.vector_store %arg36[%c0_175, %c0_176], %408 {strides = array<i32>} : memref<2x1xf32, #tpu.memory_space<vmem>>, vector<2x1xf32>,
    return
  }
}

</mosaic_0001>

<llo_original>
// kernel: forward.1
$region0: #{forward.1}
  #allocation0 [shape = 'u32[]', space=smem, size = 0x4, offset = 0x4, fixed_abs, tag = 'smem constant byte address 0x4 - core index']
  #allocation1 [shape = 'u32[144,128]{1,0:T(1,128)}', space=vmem, size = 0x12000, scoped, tag = 'internal scratch']
  #allocation2 [shape = 'f32[1,1]{1,0:T(1,128)S(1)}', space=vmem, size = 0x200, scoped, tag = 'scoped memory for forward.1']
  %s0 = inlined_call_operand.smem [shape: u32[37], index: -1, kind: input, shape index: {}]
  %s1 = sld [smem:[%s0]]
  %s2 = scalar_lea.smem %s0, 1
  %s3 = sld [smem:[%s2]]
  %s4 = scalar_lea.smem %s0, 2
  %s5 = sld [smem:[%s4]]
  %s6 = scalar_lea.smem %s0, 3
  %s7 = sld [smem:[%s6]]
  %s8 = scalar_lea.smem %s0, 4
  %s9 = sld [smem:[%s8]]
  %s10 = scalar_lea.smem %s0, 5
  %s11 = sld [smem:[%s10]]
  %s12 = scalar_lea.smem %s0, 6
  %s13 = sld [smem:[%s12]]
  %s14 = scalar_lea.smem %s0, 7
  %s15 = sld [smem:[%s14]]
  %s16 = scalar_lea.smem %s0, 8
  %s17 = sld [smem:[%s16]]
  %s18 = scalar_lea.smem %s0, 9
  %s19 = sld [smem:[%s18]]
  %s20 = scalar_lea.smem %s0, 10
  %s21 = sld [smem:[%s20]]
  %s22 = scalar_lea.smem %s0, 11
  %s23 = sld [smem:[%s22]]
  %s24 = scalar_lea.smem %s0, 12
  %s25 = sld [smem:[%s24]]
  %s26 = scalar_lea.smem %s0, 13
  %s27 = sld [smem:[%s26]]
  %s28 = scalar_lea.smem %s0, 14
  %s29 = sld [smem:[%s28]]
  %s30 = scalar_lea.smem %s0, 15
  %s31 = sld [smem:[%s30]]
  %s32 = scalar_lea.smem %s0, 16
  %s33 = sld [smem:[%s32]]
  %s34 = scalar_lea.smem %s0, 17
  %s35 = sld [smem:[%s34]]
  %s36 = scalar_lea.smem %s0, 18
  %s37 = sld [smem:[%s36]]
  %s38 = scalar_lea.smem %s0, 19
  %s39 = sld [smem:[%s38]]
  %s40 = scalar_lea.smem %s0, 20
  %s41 = sld [smem:[%s40]]
  %s42 = scalar_lea.smem %s0, 21
  %s43 = sld [smem:[%s42]]
  %s44 = scalar_lea.smem %s0, 22
  %s45 = sld [smem:[%s44]]
  %s46 = scalar_lea.smem %s0, 23
  %s47 = sld [smem:[%s46]]
  %s48 = scalar_lea.smem %s0, 24
  %s49 = sld [smem:[%s48]]
  %s50 = scalar_lea.smem %s0, 25
  %s51 = sld [smem:[%s50]]
  %s52 = scalar_lea.smem %s0, 26
  %s53 = sld [smem:[%s52]]
  %s54 = scalar_lea.smem %s0, 27
  %s55 = sld [smem:[%s54]]
  %s56 = scalar_lea.smem %s0, 28
  %s57 = sld [smem:[%s56]]
  %s58 = scalar_lea.smem %s0, 29
  %s59 = sld [smem:[%s58]]
  %s60 = scalar_lea.smem %s0, 30
  %s61 = sld [smem:[%s60]]
  %s62 = scalar_lea.smem %s0, 31
  %s63 = sld [smem:[%s62]]
  %s64 = scalar_lea.smem %s0, 32
  %s65 = sld [smem:[%s64]]
  %s66 = scalar_lea.smem %s0, 33
  %s67 = sld [smem:[%s66]]
  %s68 = scalar_lea.smem %s0, 34
  %s69 = sld [smem:[%s68]]
  %s70 = scalar_lea.smem %s0, 35
  %s71 = sld [smem:[%s70]]
  %s72 = scalar_lea.smem %s0, 36
  %s73 = sld [smem:[%s72]]
  %s74 = sld [smem:[#allocation0]]
  $region154: #{forward.1} parent=0
    _
  %s76 = ssub.s32 1, %s74
  %s77 = scalar_select 0, %s76, %s74
  %v78 = vstv %s71
  %79 = vst [vmem:[#allocation2] sm:$0x1] %v78
  // Predicated region
  $region2: #{forward.1} parent=0 // pred_check
    _
  $region3: #{forward.1} parent=0 // pred_check_branch
    %81 = sbr.rel (0) target = $region5
  $region4: #{forward.1} parent=0 // pred_region
    _
  $region5: #{forward.1} parent=0 // pred_fallthru
    _
  // Predicated region
  $region6: #{forward.1} parent=0 // pred_check
    _
  $region7: #{forward.1} parent=0 // pred_check_branch
    %83 = sbr.rel (0) target = $region9
  $region8: #{forward.1} parent=0 // pred_region
    _
  $region9: #{forward.1} parent=0 // pred_fallthru
    _
  // Predicated region
  $region10: #{forward.1} parent=0 // pred_check
    _
  $region11: #{forward.1} parent=0 // pred_check_branch
    %85 = sbr.rel (0) target = $region13
  $region12: #{forward.1} parent=0 // pred_region
    _
  $region13: #{forward.1} parent=0 // pred_fallthru
    _
  // Predicated region
  $region14: #{forward.1} parent=0 // pred_check
    _
  $region15: #{forward.1} parent=0 // pred_check_branch
    %87 = sbr.rel (0) target = $region17
  $region16: #{forward.1} parent=0 // pred_region
    _
  $region17: #{forward.1} parent=0 // pred_fallthru
    _
  // Predicated region
  $region18: #{forward.1} parent=0 // pred_check
    _
  $region19: #{forward.1} parent=0 // pred_check_branch
    %89 = sbr.rel (0) target = $region21
  $region20: #{forward.1} parent=0 // pred_region
    _
  $region21: #{forward.1} parent=0 // pred_fallthru
    _
  // Predicated region
  $region22: #{forward.1} parent=0 // pred_check
    _
  $region23: #{forward.1} parent=0 // pred_check_branch
    %91 = sbr.rel (0) target = $region25
  $region24: #{forward.1} parent=0 // pred_region
    _
  $region25: #{forward.1} parent=0 // pred_fallthru
    _
  // Predicated region
  $region26: #{forward.1} parent=0 // pred_check
    _
  $region27: #{forward.1} parent=0 // pred_check_branch
    %93 = sbr.rel (0) target = $region29
  $region28: #{forward.1} parent=0 // pred_region
    _
  $region29: #{forward.1} parent=0 // pred_fallthru
    _
  // Predicated region
  $region30: #{forward.1} parent=0 // pred_check
    _
  $region31: #{forward.1} parent=0 // pred_check_branch
    %95 = sbr.rel (0) target = $region33
  $region32: #{forward.1} parent=0 // pred_region
    _
  $region33: #{forward.1} parent=0 // pred_fallthru
    _
  // Predicated region
  $region34: #{forward.1} parent=0 // pred_check
    _
  $region35: #{forward.1} parent=0 // pred_check_branch
    %97 = sbr.rel (0) target = $region37
  $region36: #{forward.1} parent=0 // pred_region
    _
  $region37: #{forward.1} parent=0 // pred_fallthru
    _
  // Predicated region
  $region38: #{forward.1} parent=0 // pred_check
    _
  $region39: #{forward.1} parent=0 // pred_check_branch
    %99 = sbr.rel (0) target = $region41
  $region40: #{forward.1} parent=0 // pred_region
    _
  $region41: #{forward.1} parent=0 // pred_fallthru
    _
  // Predicated region
  $region42: #{forward.1} parent=0 // pred_check
    _
  $region43: #{forward.1} parent=0 // pred_check_branch
    %101 = sbr.rel (0) target = $region45
  $region44: #{forward.1} parent=0 // pred_region
    _
  $region45: #{forward.1} parent=0 // pred_fallthru
    _
  // Predicated region
  $region46: #{forward.1} parent=0 // pred_check
    _
  $region47: #{forward.1} parent=0 // pred_check_branch
    %103 = sbr.rel (0) target = $region49
  $region48: #{forward.1} parent=0 // pred_region
    _
  $region49: #{forward.1} parent=0 // pred_fallthru
    _
  // Predicated region
  $region50: #{forward.1} parent=0 // pred_check
    _
  $region51: #{forward.1} parent=0 // pred_check_branch
    %105 = sbr.rel (0) target = $region53
  $region52: #{forward.1} parent=0 // pred_region
    _
  $region53: #{forward.1} parent=0 // pred_fallthru
    _
  // Predicated region
  $region54: #{forward.1} parent=0 // pred_check
    _
  $region55: #{forward.1} parent=0 // pred_check_branch
    %107 = sbr.rel (0) target = $region57
  $region56: #{forward.1} parent=0 // pred_region
    _
  $region57: #{forward.1} parent=0 // pred_fallthru
    _
  // Predicated region
  $region58: #{forward.1} parent=0 // pred_check
    _
  $region59: #{forward.1} parent=0 // pred_check_branch
    %109 = sbr.rel (0) target = $region61
  $region60: #{forward.1} parent=0 // pred_region
    _
  $region61: #{forward.1} parent=0 // pred_fallthru
    _
  // Predicated region
  $region62: #{forward.1} parent=0 // pred_check
    _
  $region63: #{forward.1} parent=0 // pred_check_branch
    %111 = sbr.rel (0) target = $region65
  $region64: #{forward.1} parent=0 // pred_region
    _
  $region65: #{forward.1} parent=0 // pred_fallthru
    _
  // Predicated region
  $region66: #{forward.1} parent=0 // pred_check
    _
  $region67: #{forward.1} parent=0 // pred_check_branch
    %113 = sbr.rel (0) target = $region69
  $region68: #{forward.1} parent=0 // pred_region
    _
  $region69: #{forward.1} parent=0 // pred_fallthru
    _
  // Predicated region
  $region70: #{forward.1} parent=0 // pred_check
    _
  $region71: #{forward.1} parent=0 // pred_check_branch
    %115 = sbr.rel (0) target = $region73
  $region72: #{forward.1} parent=0 // pred_region
    _
  $region73: #{forward.1} parent=0 // pred_fallthru
    _
  // Predicated region
  $region74: #{forward.1} parent=0 // pred_check
    _
  $region75: #{forward.1} parent=0 // pred_check_branch
    %117 = sbr.rel (0) target = $region77
  $region76: #{forward.1} parent=0 // pred_region
    _
  $region77: #{forward.1} parent=0 // pred_fallthru
    _
  // Predicated region
  $region78: #{forward.1} parent=0 // pred_check
    _
  $region79: #{forward.1} parent=0 // pred_check_branch
    %119 = sbr.rel (0) target = $region81
  $region80: #{forward.1} parent=0 // pred_region
    _
  $region81: #{forward.1} parent=0 // pred_fallthru
    _
  // Predicated region
  $region82: #{forward.1} parent=0 // pred_check
    _
  $region83: #{forward.1} parent=0 // pred_check_branch
    %121 = sbr.rel (0) target = $region85
  $region84: #{forward.1} parent=0 // pred_region
    _
  $region85: #{forward.1} parent=0 // pred_fallthru
    _
  // Predicated region
  $region86: #{forward.1} parent=0 // pred_check
    _
  $region87: #{forward.1} parent=0 // pred_check_branch
    %123 = sbr.rel (0) target = $region89
  $region88: #{forward.1} parent=0 // pred_region
    _
  $region89: #{forward.1} parent=0 // pred_fallthru
    _
  // Predicated region
  $region90: #{forward.1} parent=0 // pred_check
    _
  $region91: #{forward.1} parent=0 // pred_check_branch
    %125 = sbr.rel (0) target = $region93
  $region92: #{forward.1} parent=0 // pred_region
    _
  $region93: #{forward.1} parent=0 // pred_fallthru
    _
  // Predicated region
  $region94: #{forward.1} parent=0 // pred_check
    _
  $region95: #{forward.1} parent=0 // pred_check_branch
    %127 = sbr.rel (0) target = $region97
  $region96: #{forward.1} parent=0 // pred_region
    _
  $region97: #{forward.1} parent=0 // pred_fallthru
    _
  // Predicated region
  $region98: #{forward.1} parent=0 // pred_check
    _
  $region99: #{forward.1} parent=0 // pred_check_branch
    %129 = sbr.rel (0) target = $region101
  $region100: #{forward.1} parent=0 // pred_region
    _
  $region101: #{forward.1} parent=0 // pred_fallthru
    _
  // Predicated region
  $region102: #{forward.1} parent=0 // pred_check
    _
  $region103: #{forward.1} parent=0 // pred_check_branch
    %131 = sbr.rel (0) target = $region105
  $region104: #{forward.1} parent=0 // pred_region
    _
  $region105: #{forward.1} parent=0 // pred_fallthru
    _
  // Predicated region
  $region106: #{forward.1} parent=0 // pred_check
    _
  $region107: #{forward.1} parent=0 // pred_check_branch
    %133 = sbr.rel (0) target = $region109
  $region108: #{forward.1} parent=0 // pred_region
    _
  $region109: #{forward.1} parent=0 // pred_fallthru
    _
  // Predicated region
  $region110: #{forward.1} parent=0 // pred_check
    _
  $region111: #{forward.1} parent=0 // pred_check_branch
    %135 = sbr.rel (0) target = $region113
  $region112: #{forward.1} parent=0 // pred_region
    _
  $region113: #{forward.1} parent=0 // pred_fallthru
    _
  // Predicated region
  $region114: #{forward.1} parent=0 // pred_check
    _
  $region115: #{forward.1} parent=0 // pred_check_branch
    %137 = sbr.rel (0) target = $region117
  $region116: #{forward.1} parent=0 // pred_region
    _
  $region117: #{forward.1} parent=0 // pred_fallthru
    _
  // Predicated region
  $region118: #{forward.1} parent=0 // pred_check
    _
  $region119: #{forward.1} parent=0 // pred_check_branch
    %139 = sbr.rel (0) target = $region121
  $region120: #{forward.1} parent=0 // pred_region
    _
  $region121: #{forward.1} parent=0 // pred_fallthru
    _
  // Predicated region
  $region122: #{forward.1} parent=0 // pred_check
    _
  $region123: #{forward.1} parent=0 // pred_check_branch
    %141 = sbr.rel (0) target = $region125
  $region124: #{forward.1} parent=0 // pred_region
    _
  $region125: #{forward.1} parent=0 // pred_fallthru
    _
  // Predicated region
  $region126: #{forward.1} parent=0 // pred_check
    _
  $region127: #{forward.1} parent=0 // pred_check_branch
    %143 = sbr.rel (0) target = $region129
  $region128: #{forward.1} parent=0 // pred_region
    _
  $region129: #{forward.1} parent=0 // pred_fallthru
    _
  // Predicated region
  $region130: #{forward.1} parent=0 // pred_check
    _
  $region131: #{forward.1} parent=0 // pred_check_branch
    %145 = sbr.rel (0) target = $region133
  $region132: #{forward.1} parent=0 // pred_region
    _
  $region133: #{forward.1} parent=0 // pred_fallthru
    _
  // Predicated region
  $region134: #{forward.1} parent=0 // pred_check
    _
  $region135: #{forward.1} parent=0 // pred_check_branch
    %147 = sbr.rel (0) target = $region137
  $region136: #{forward.1} parent=0 // pred_region
    _
  $region137: #{forward.1} parent=0 // pred_fallthru
    _
  // Predicated region
  $region138: #{forward.1} parent=0 // pred_check
    _
  $region139: #{forward.1} parent=0 // pred_check_branch
    %149 = sbr.rel (0) target = $region141
  $region140: #{forward.1} parent=0 // pred_region
    _
  $region141: #{forward.1} parent=0 // pred_fallthru
    _
  // Predicated region
  $region142: #{forward.1} parent=0 // pred_check
    _
  $region143: #{forward.1} parent=0 // pred_check_branch
    %151 = sbr.rel (0) target = $region145
  $region144: #{forward.1} parent=0 // pred_region
    _
  $region145: #{forward.1} parent=0 // pred_fallthru
    _
  %v152 = vld [vmem:[%s1] sm:$0xff]
  %v153 = vld [vmem:[%s1 + $0x8] sm:$0xff]
  %v154 = vlaneseq
  %v155 = vand.u32 %v154, 127
  %156 = vset.pattern.permute.xlu0 0
  %157 = vperm.xlu0 %156, %v152
  %v158 = vpop.permute.xlu0 %157
  %159 = vset.pattern.permute.xlu0 0
  %160 = vperm.xlu0 %159, %v153
  %v161 = vpop.permute.xlu0 %160
  %vm162 = vcmp.eq.s32.totalorder %v158, %v155
  %vm163 = vcmp.eq.s32.totalorder %v161, %v155
  %v164 = vsel %vm162, 1, 0
  %v165 = vsel %vm163, 1, 0
  %v166 = vcvt.s32.f32 %v164
  %v167 = vcvt.s32.f32 %v165
  %v168 = vld [vmem:[%s3] sm:$0xff]
  %v169 = vld [vmem:[%s3 + $0x8] sm:$0xff]
  %v170 = vld [vmem:[%s3 + $0x10] sm:$0xff]
  %v171 = vld [vmem:[%s3 + $0x18] sm:$0xff]
  %v172 = vld [vmem:[%s3 + $0x20] sm:$0xff]
  %v173 = vld [vmem:[%s3 + $0x28] sm:$0xff]
  %v174 = vld [vmem:[%s3 + $0x30] sm:$0xff]
  %v175 = vld [vmem:[%s3 + $0x38] sm:$0xff]
  %v176 = vld [vmem:[%s3 + $0x40] sm:$0xff]
  %v177 = vld [vmem:[%s3 + $0x48] sm:$0xff]
  %v178 = vld [vmem:[%s3 + $0x50] sm:$0xff]
  %v179 = vld [vmem:[%s3 + $0x58] sm:$0xff]
  %v180 = vld [vmem:[%s3 + $0x60] sm:$0xff]
  %v181 = vld [vmem:[%s3 + $0x68] sm:$0xff]
  %v182 = vld [vmem:[%s3 + $0x70] sm:$0xff]
  %v183 = vld [vmem:[%s3 + $0x78] sm:$0xff]
  %v184 = vld [vmem:[%s5] sm:$0xff]
  %v185 = vld [vmem:[%s5 + $0x8] sm:$0xff]
  %186 = vmatprep.subr.mxu0 0.0
  %187 = vmatpush1.msra.mxu0 %v168
  %188 = vmatprep.subr.mxu0 0.0
  %189 = vmatpush1.msra.mxu0 %v169
  %190 = vmatprep.subr.mxu0 0.0
  %191 = vmatpush1.msra.mxu0 %v170
  %192 = vmatprep.subr.mxu0 0.0
  %193 = vmatpush1.msra.mxu0 %v171
  %194 = vmatprep.subr.mxu0 0.0
  %195 = vmatpush1.msra.mxu0 %v172
  %196 = vmatprep.subr.mxu0 0.0
  %197 = vmatpush1.msra.mxu0 %v173
  %198 = vmatprep.subr.mxu0 0.0
  %199 = vmatpush1.msra.mxu0 %v174
  %200 = vmatprep.subr.mxu0 0.0
  %201 = vmatpush1.msra.mxu0 %v175
  %202 = vmatprep.subr.mxu0 0.0
  %203 = vmatpush1.msra.mxu0 %v176
  %204 = vmatprep.subr.mxu0 0.0
  %205 = vmatpush1.msra.mxu0 %v177
  %206 = vmatprep.subr.mxu0 0.0
  %207 = vmatpush1.msra.mxu0 %v178
  %208 = vmatprep.subr.mxu0 0.0
  %209 = vmatpush1.msra.mxu0 %v179
  %210 = vmatprep.subr.mxu0 0.0
  %211 = vmatpush1.msra.mxu0 %v180
  %212 = vmatprep.subr.mxu0 0.0
  %213 = vmatpush1.msra.mxu0 %v181
  %214 = vmatprep.subr.mxu0 0.0
  %215 = vmatpush1.msra.mxu0 %v182
  %216 = vmatprep.subr.mxu0 0.0
  %217 = vmatpush1.msra.mxu0 %v183
  %218 = vmatprep.subr.mxu0 0.0
  %219 = vmatpush1.msra.mxu0 0.0
  %220 = vmatprep.subr.mxu0 0.0
  %221 = vmatpush1.msra.mxu0 0.0
  %222 = vmatprep.subr.mxu0 0.0
  %223 = vmatpush1.msra.mxu0 0.0
  %224 = vmatprep.subr.mxu0 0.0
  %225 = vmatpush1.msra.mxu0 0.0
  %226 = vmatprep.subr.mxu0 0.0
  %227 = vmatpush1.msra.mxu0 0.0
  %228 = vmatprep.subr.mxu0 0.0
  %229 = vmatpush1.msra.mxu0 0.0
  %230 = vmatprep.subr.mxu0 0.0
  %231 = vmatpush1.msra.mxu0 0.0
  %232 = vmatprep.subr.mxu0 0.0
  %233 = vmatpush1.msra.mxu0 0.0
  %234 = vmatprep.subr.mxu0 0.0
  %235 = vmatpush1.msra.mxu0 0.0
  %236 = vmatprep.subr.mxu0 0.0
  %237 = vmatpush1.msra.mxu0 0.0
  %238 = vmatprep.subr.mxu0 0.0
  %239 = vmatpush1.msra.mxu0 0.0
  %240 = vmatprep.subr.mxu0 0.0
  %241 = vmatpush1.msra.mxu0 0.0
  %242 = vmatprep.subr.mxu0 0.0
  %243 = vmatpush1.msra.mxu0 0.0
  %244 = vmatprep.subr.mxu0 0.0
  %245 = vmatpush1.msra.mxu0 0.0
  %246 = vmatprep.subr.mxu0 0.0
  %247 = vmatpush1.msra.mxu0 0.0
  %248 = vmatprep.subr.mxu0 0.0
  %249 = vmatpush1.msra.mxu0 0.0
  %250 = vmatprep.mubr.f32.mxu0 0.0
  %251 = vmatmul.mubr.f32.gmra.mrb[0].mxu0 %v166
  %v252 = vpop.f32.mrb[0].mxu0
  %v253 = vadd.f32 %v184, %v252
  %v254 = vpop.f32.mrb[0].mxu0
  %255 = vmatprep.mubr.f32.mxu0 0.0
  %256 = vmatmul.mubr.f32.gmra.mrb[0].mxu0 %v167
  %v257 = vpop.f32.mrb[0].mxu0
  %v258 = vadd.f32 %v185, %v257
  %v259 = vpop.f32.mrb[0].mxu0
  %260 = vdwg.mxu0
  %v261 = vld [vmem:[%s7] sm:$0x1]
  %v262 = vld [vmem:[%s9] sm:$0x1]
  %vm263 = vcmask 261120
  %v264 = vsel %vm263, %v253, 0.0
  %265 = vadd.xlane.f32.xlu0 %v264
  %v266 = vpop.xlane.xlu0 %265
  %v267 = vsel %vm263, %v258, 0.0
  %268 = vadd.xlane.f32.xlu0 %v267
  %v269 = vpop.xlane.xlu0 %268
  %v270 = vrcp.pop 32.0
  %v271 = vmul.f32 %v266, %v270
  %v272 = vmul.f32 %v269, %v270
  %v273 = vsub.f32 %v253, %v271
  %v274 = vsub.f32 %v258, %v272
  %v275 = vmul.f32 %v273, %v273
  %v276 = vmul.f32 %v274, %v274
  %v277 = vsel %vm263, %v275, 0.0
  %278 = vadd.xlane.f32.xlu0 %v277
  %v279 = vpop.xlane.xlu0 %278
  %v280 = vsel %vm263, %v276, 0.0
  %281 = vadd.xlane.f32.xlu0 %v280
  %v282 = vpop.xlane.xlu0 %281
  %v283 = vmul.f32 %v279, %v270
  %v284 = vmul.f32 %v282, %v270
  %v285 = vadd.f32 %v283, 1e-12
  %v286 = vadd.f32 %v284, 1e-12
  %v287 = vrsqrt.pop %v285
  %v288 = vrsqrt.pop %v286
  %v289 = vmul.f32 %v273, %v287
  %v290 = vmul.f32 %v274, %v288
  %v292 = vlaneseq
  %v293 = vshrl.u32 %v292, 7
  %v294 = vsub.s32 0, %v293
  %v295 = vrot.slane %v261, %v294
  %v297 = vmul.f32 %v289, %v295
  %v298 = vmul.f32 %v290, %v295
  %v300 = vlaneseq
  %v301 = vshrl.u32 %v300, 7
  %v302 = vsub.s32 0, %v301
  %v303 = vrot.slane %v262, %v302
  %v305 = vadd.f32 %v297, %v303
  %v306 = vadd.f32 %v298, %v303
  %v307 = vld [vmem:[%s11] sm:$0xff]
  %v308 = vld [vmem:[%s11 + $0x8] sm:$0xff]
  %v309 = vld [vmem:[%s11 + $0x10] sm:$0xff]
  %v310 = vld [vmem:[%s11 + $0x18] sm:$0xff]
  %v311 = vld [vmem:[%s13] sm:$0x1]
  %v313 = vlaneseq
  %v314 = vshrl.u32 %v313, 7
  %v315 = vsub.s32 0, %v314
  %v316 = vrot.slane %v311, %v315
  %v319 = vsel %vm263, %v305, 0
  %v322 = vsel %vm263, %v306, 0
  %324 = vmatprep.subr.mxu0 0.0
  %325 = vmatpush1.msra.mxu0 %v307
  %326 = vmatprep.subr.mxu0 0.0
  %327 = vmatpush1.msra.mxu0 %v308
  %328 = vmatprep.subr.mxu0 0.0
  %329 = vmatpush1.msra.mxu0 %v309
  %330 = vmatprep.subr.mxu0 0.0
  %331 = vmatpush1.msra.mxu0 %v310
  %332 = vmatprep.subr.mxu0 0.0
  %333 = vmatpush1.msra.mxu0 0.0
  %334 = vmatprep.subr.mxu0 0.0
  %335 = vmatpush1.msra.mxu0 0.0
  %336 = vmatprep.subr.mxu0 0.0
  %337 = vmatpush1.msra.mxu0 0.0
  %338 = vmatprep.subr.mxu0 0.0
  %339 = vmatpush1.msra.mxu0 0.0
  %340 = vmatprep.subr.mxu0 0.0
  %341 = vmatpush1.msra.mxu0 0.0
  %342 = vmatprep.subr.mxu0 0.0
  %343 = vmatpush1.msra.mxu0 0.0
  %344 = vmatprep.subr.mxu0 0.0
  %345 = vmatpush1.msra.mxu0 0.0
  %346 = vmatprep.subr.mxu0 0.0
  %347 = vmatpush1.msra.mxu0 0.0
  %348 = vmatprep.subr.mxu0 0.0
  %349 = vmatpush1.msra.mxu0 0.0
  %350 = vmatprep.subr.mxu0 0.0
  %351 = vmatpush1.msra.mxu0 0.0
  %352 = vmatprep.subr.mxu0 0.0
  %353 = vmatpush1.msra.mxu0 0.0
  %354 = vmatprep.subr.mxu0 0.0
  %355 = vmatpush1.msra.mxu0 0.0
  %356 = vmatprep.subr.mxu0 0.0
  %357 = vmatpush1.msra.mxu0 0.0
  %358 = vmatprep.subr.mxu0 0.0
  %359 = vmatpush1.msra.mxu0 0.0
  %360 = vmatprep.subr.mxu0 0.0
  %361 = vmatpush1.msra.mxu0 0.0
  %362 = vmatprep.subr.mxu0 0.0
  %363 = vmatpush1.msra.mxu0 0.0
  %364 = vmatprep.subr.mxu0 0.0
  %365 = vmatpush1.msra.mxu0 0.0
  %366 = vmatprep.subr.mxu0 0.0
  %367 = vmatpush1.msra.mxu0 0.0
  %368 = vmatprep.subr.mxu0 0.0
  %369 = vmatpush1.msra.mxu0 0.0
  %370 = vmatprep.subr.mxu0 0.0
  %371 = vmatpush1.msra.mxu0 0.0
  %372 = vmatprep.subr.mxu0 0.0
  %373 = vmatpush1.msra.mxu0 0.0
  %374 = vmatprep.subr.mxu0 0.0
  %375 = vmatpush1.msra.mxu0 0.0
  %376 = vmatprep.subr.mxu0 0.0
  %377 = vmatpush1.msra.mxu0 0.0
  %378 = vmatprep.subr.mxu0 0.0
  %379 = vmatpush1.msra.mxu0 0.0
  %380 = vmatprep.subr.mxu0 0.0
  %381 = vmatpush1.msra.mxu0 0.0
  %382 = vmatprep.subr.mxu0 0.0
  %383 = vmatpush1.msra.mxu0 0.0
  %384 = vmatprep.subr.mxu0 0.0
  %385 = vmatpush1.msra.mxu0 0.0
  %386 = vmatprep.subr.mxu0 0.0
  %387 = vmatpush1.msra.mxu0 0.0
  %388 = vmatprep.mubr.f32.mxu0 0.0
  %389 = vmatmul.mubr.f32.gmra.mrb[0].mxu0 %v319
  %v390 = vpop.f32.mrb[0].mxu0
  %v391 = vadd.f32 %v316, %v390
  %v392 = vpop.f32.mrb[0].mxu0
  %393 = vmatprep.mubr.f32.mxu0 0.0
  %394 = vmatmul.mubr.f32.gmra.mrb[0].mxu0 %v322
  %v395 = vpop.f32.mrb[0].mxu0
  %v396 = vadd.f32 %v316, %v395
  %v397 = vpop.f32.mrb[0].mxu0
  %398 = vdwg.mxu0
  %400 = vrot.lane.b32.xlu0 %v391, 96
  %v401 = vpop.permute.xlu0 %400
  %vm402 = vcmask 130048
  %v403 = vsel %vm402, %v391, 0
  %v405 = vsel %vm402, %v401, 0
  %407 = vmatprep.subr.mxu0 0.0
  %408 = vmatpush1.xpose.msra.mxu0 %v405
  %409 = vmatprep.subr.mxu0 0.0
  %410 = vmatpush1.xpose.msra.mxu0 0.0
  %411 = vmatprep.subr.mxu0 0.0
  %412 = vmatpush1.xpose.msra.mxu0 0.0
  %413 = vmatprep.subr.mxu0 0.0
  %414 = vmatpush1.xpose.msra.mxu0 0.0
  %415 = vmatprep.subr.mxu0 0.0
  %416 = vmatpush1.xpose.msra.mxu0 0.0
  %417 = vmatprep.subr.mxu0 0.0
  %418 = vmatpush1.xpose.msra.mxu0 0.0
  %419 = vmatprep.subr.mxu0 0.0
  %420 = vmatpush1.xpose.msra.mxu0 0.0
  %421 = vmatprep.subr.mxu0 0.0
  %422 = vmatpush1.xpose.msra.mxu0 0.0
  %423 = vmatprep.subr.mxu0 0.0
  %424 = vmatpush1.xpose.msra.mxu0 0.0
  %425 = vmatprep.subr.mxu0 0.0
  %426 = vmatpush1.xpose.msra.mxu0 0.0
  %427 = vmatprep.subr.mxu0 0.0
  %428 = vmatpush1.xpose.msra.mxu0 0.0
  %429 = vmatprep.subr.mxu0 0.0
  %430 = vmatpush1.xpose.msra.mxu0 0.0
  %431 = vmatprep.subr.mxu0 0.0
  %432 = vmatpush1.xpose.msra.mxu0 0.0
  %433 = vmatprep.subr.mxu0 0.0
  %434 = vmatpush1.xpose.msra.mxu0 0.0
  %435 = vmatprep.subr.mxu0 0.0
  %436 = vmatpush1.xpose.msra.mxu0 0.0
  %437 = vmatprep.subr.mxu0 0.0
  %438 = vmatpush1.xpose.msra.mxu0 0.0
  %439 = vmatprep.subr.mxu0 0.0
  %440 = vmatpush1.xpose.msra.mxu0 0.0
  %441 = vmatprep.subr.mxu0 0.0
  %442 = vmatpush1.xpose.msra.mxu0 0.0
  %443 = vmatprep.subr.mxu0 0.0
  %444 = vmatpush1.xpose.msra.mxu0 0.0
  %445 = vmatprep.subr.mxu0 0.0
  %446 = vmatpush1.xpose.msra.mxu0 0.0
  %447 = vmatprep.subr.mxu0 0.0
  %448 = vmatpush1.xpose.msra.mxu0 0.0
  %449 = vmatprep.subr.mxu0 0.0
  %450 = vmatpush1.xpose.msra.mxu0 0.0
  %451 = vmatprep.subr.mxu0 0.0
  %452 = vmatpush1.xpose.msra.mxu0 0.0
  %453 = vmatprep.subr.mxu0 0.0
  %454 = vmatpush1.xpose.msra.mxu0 0.0
  %455 = vmatprep.subr.mxu0 0.0
  %456 = vmatpush1.xpose.msra.mxu0 0.0
  %457 = vmatprep.subr.mxu0 0.0
  %458 = vmatpush1.xpose.msra.mxu0 0.0
  %459 = vmatprep.subr.mxu0 0.0
  %460 = vmatpush1.xpose.msra.mxu0 0.0
  %461 = vmatprep.subr.mxu0 0.0
  %462 = vmatpush1.xpose.msra.mxu0 0.0
  %463 = vmatprep.subr.mxu0 0.0
  %464 = vmatpush1.xpose.msra.mxu0 0.0
  %465 = vmatprep.subr.mxu0 0.0
  %466 = vmatpush1.xpose.msra.mxu0 0.0
  %467 = vmatprep.subr.mxu0 0.0
  %468 = vmatpush1.xpose.msra.mxu0 0.0
  %469 = vmatprep.subr.mxu0 0.0
  %470 = vmatpush1.xpose.msra.mxu0 0.0
  %471 = vmatprep.mubr.f32.mxu0 0.0
  %472 = vmatmul.mubr.f32.gmra.mrb[0].mxu0 %v403
  %v473 = vpop.f32.mrb[0].mxu0
  %v474 = vadd.f32 0.0, %v473
  %v475 = vpop.f32.mrb[0].mxu0
  %476 = vdwg.mxu0
  %v477 = vmul.f32 %v474, 0.25
  %vm478 = vcmask 64512
  %v479 = vsel %vm478, %v477, -inf
  %480 = vmax.xlane.f32.xlu0 %v479
  %v481 = vpop.xlane.xlu0 %480
  %v482 = vsub.f32 %v477, %v481
  %v483 = vmul.f32 %v482, 1.442695
  %v484 = vpow.pop %v483
  %v485 = vsel %vm478, %v484, 0.0
  %486 = vadd.xlane.f32.xlu0 %v485
  %v487 = vpop.xlane.xlu0 %486
  %v488 = vrcp.pop %v487
  %v489 = vmul.f32 %v484, %v488
  %490 = vrot.lane.b32.xlu0 %v391, 64
  %v491 = vpop.permute.xlu0 %490
  %v494 = vsel %vm478, %v489, 0
  %496 = vmatprep.subr.mxu0 0.0
  %497 = vmatpush1.msra.mxu0 %v491
  %498 = vmatprep.subr.mxu0 0.0
  %499 = vmatpush1.msra.mxu0 0.0
  %500 = vmatprep.subr.mxu0 0.0
  %501 = vmatpush1.msra.mxu0 0.0
  %502 = vmatprep.subr.mxu0 0.0
  %503 = vmatpush1.msra.mxu0 0.0
  %504 = vmatprep.subr.mxu0 0.0
  %505 = vmatpush1.msra.mxu0 0.0
  %506 = vmatprep.subr.mxu0 0.0
  %507 = vmatpush1.msra.mxu0 0.0
  %508 = vmatprep.subr.mxu0 0.0
  %509 = vmatpush1.msra.mxu0 0.0
  %510 = vmatprep.subr.mxu0 0.0
  %511 = vmatpush1.msra.mxu0 0.0
  %512 = vmatprep.subr.mxu0 0.0
  %513 = vmatpush1.msra.mxu0 0.0
  %514 = vmatprep.subr.mxu0 0.0
  %515 = vmatpush1.msra.mxu0 0.0
  %516 = vmatprep.subr.mxu0 0.0
  %517 = vmatpush1.msra.mxu0 0.0
  %518 = vmatprep.subr.mxu0 0.0
  %519 = vmatpush1.msra.mxu0 0.0
  %520 = vmatprep.subr.mxu0 0.0
  %521 = vmatpush1.msra.mxu0 0.0
  %522 = vmatprep.subr.mxu0 0.0
  %523 = vmatpush1.msra.mxu0 0.0
  %524 = vmatprep.subr.mxu0 0.0
  %525 = vmatpush1.msra.mxu0 0.0
  %526 = vmatprep.subr.mxu0 0.0
  %527 = vmatpush1.msra.mxu0 0.0
  %528 = vmatprep.subr.mxu0 0.0
  %529 = vmatpush1.msra.mxu0 0.0
  %530 = vmatprep.subr.mxu0 0.0
  %531 = vmatpush1.msra.mxu0 0.0
  %532 = vmatprep.subr.mxu0 0.0
  %533 = vmatpush1.msra.mxu0 0.0
  %534 = vmatprep.subr.mxu0 0.0
  %535 = vmatpush1.msra.mxu0 0.0
  %536 = vmatprep.subr.mxu0 0.0
  %537 = vmatpush1.msra.mxu0 0.0
  %538 = vmatprep.subr.mxu0 0.0
  %539 = vmatpush1.msra.mxu0 0.0
  %540 = vmatprep.subr.mxu0 0.0
  %541 = vmatpush1.msra.mxu0 0.0
  %542 = vmatprep.subr.mxu0 0.0
  %543 = vmatpush1.msra.mxu0 0.0
  %544 = vmatprep.subr.mxu0 0.0
  %545 = vmatpush1.msra.mxu0 0.0
  %546 = vmatprep.subr.mxu0 0.0
  %547 = vmatpush1.msra.mxu0 0.0
  %548 = vmatprep.subr.mxu0 0.0
  %549 = vmatpush1.msra.mxu0 0.0
  %550 = vmatprep.subr.mxu0 0.0
  %551 = vmatpush1.msra.mxu0 0.0
  %552 = vmatprep.subr.mxu0 0.0
  %553 = vmatpush1.msra.mxu0 0.0
  %554 = vmatprep.subr.mxu0 0.0
  %555 = vmatpush1.msra.mxu0 0.0
  %556 = vmatprep.subr.mxu0 0.0
  %557 = vmatpush1.msra.mxu0 0.0
  %558 = vmatprep.subr.mxu0 0.0
  %559 = vmatpush1.msra.mxu0 0.0
  %560 = vmatprep.mubr.f32.mxu0 0.0
  %561 = vmatmul.mubr.f32.gmra.mrb[0].mxu0 %v494
  %v562 = vpop.f32.mrb[0].mxu0
  %v563 = vadd.f32 0.0, %v562
  %v564 = vpop.f32.mrb[0].mxu0
  %565 = vdwg.mxu0
  %v566 = vld [vmem:[%s15] sm:$0xff]
  %v567 = vld [vmem:[%s15 + $0x8] sm:$0xff]
  %568 = vrot.lane.b32.xlu0 %v391, 112
  %v569 = vpop.permute.xlu0 %568
  %570 = vrot.lane.b32.xlu0 %v391, 80
  %v571 = vpop.permute.xlu0 %570
  %v572 = vsel %vm402, %v569, 0
  %v574 = vsel %vm402, %v571, 0
  %576 = vmatprep.subr.mxu0 0.0
  %577 = vmatpush1.xpose.msra.mxu0 %v574
  %578 = vmatprep.subr.mxu0 0.0
  %579 = vmatpush1.xpose.msra.mxu0 0.0
  %580 = vmatprep.subr.mxu0 0.0
  %581 = vmatpush1.xpose.msra.mxu0 0.0
  %582 = vmatprep.subr.mxu0 0.0
  %583 = vmatpush1.xpose.msra.mxu0 0.0
  %584 = vmatprep.subr.mxu0 0.0
  %585 = vmatpush1.xpose.msra.mxu0 0.0
  %586 = vmatprep.subr.mxu0 0.0
  %587 = vmatpush1.xpose.msra.mxu0 0.0
  %588 = vmatprep.subr.mxu0 0.0
  %589 = vmatpush1.xpose.msra.mxu0 0.0
  %590 = vmatprep.subr.mxu0 0.0
  %591 = vmatpush1.xpose.msra.mxu0 0.0
  %592 = vmatprep.subr.mxu0 0.0
  %593 = vmatpush1.xpose.msra.mxu0 0.0
  %594 = vmatprep.subr.mxu0 0.0
  %595 = vmatpush1.xpose.msra.mxu0 0.0
  %596 = vmatprep.subr.mxu0 0.0
  %597 = vmatpush1.xpose.msra.mxu0 0.0
  %598 = vmatprep.subr.mxu0 0.0
  %599 = vmatpush1.xpose.msra.mxu0 0.0
  %600 = vmatprep.subr.mxu0 0.0
  %601 = vmatpush1.xpose.msra.mxu0 0.0
  %602 = vmatprep.subr.mxu0 0.0
  %603 = vmatpush1.xpose.msra.mxu0 0.0
  %604 = vmatprep.subr.mxu0 0.0
  %605 = vmatpush1.xpose.msra.mxu0 0.0
  %606 = vmatprep.subr.mxu0 0.0
  %607 = vmatpush1.xpose.msra.mxu0 0.0
  %608 = vmatprep.subr.mxu0 0.0
  %609 = vmatpush1.xpose.msra.mxu0 0.0
  %610 = vmatprep.subr.mxu0 0.0
  %611 = vmatpush1.xpose.msra.mxu0 0.0
  %612 = vmatprep.subr.mxu0 0.0
  %613 = vmatpush1.xpose.msra.mxu0 0.0
  %614 = vmatprep.subr.mxu0 0.0
  %615 = vmatpush1.xpose.msra.mxu0 0.0
  %616 = vmatprep.subr.mxu0 0.0
  %617 = vmatpush1.xpose.msra.mxu0 0.0
  %618 = vmatprep.subr.mxu0 0.0
  %619 = vmatpush1.xpose.msra.mxu0 0.0
  %620 = vmatprep.subr.mxu0 0.0
  %621 = vmatpush1.xpose.msra.mxu0 0.0
  %622 = vmatprep.subr.mxu0 0.0
  %623 = vmatpush1.xpose.msra.mxu0 0.0
  %624 = vmatprep.subr.mxu0 0.0
  %625 = vmatpush1.xpose.msra.mxu0 0.0
  %626 = vmatprep.subr.mxu0 0.0
  %627 = vmatpush1.xpose.msra.mxu0 0.0
  %628 = vmatprep.subr.mxu0 0.0
  %629 = vmatpush1.xpose.msra.mxu0 0.0
  %630 = vmatprep.subr.mxu0 0.0
  %631 = vmatpush1.xpose.msra.mxu0 0.0
  %632 = vmatprep.subr.mxu0 0.0
  %633 = vmatpush1.xpose.msra.mxu0 0.0
  %634 = vmatprep.subr.mxu0 0.0
  %635 = vmatpush1.xpose.msra.mxu0 0.0
  %636 = vmatprep.subr.mxu0 0.0
  %637 = vmatpush1.xpose.msra.mxu0 0.0
  %638 = vmatprep.subr.mxu0 0.0
  %639 = vmatpush1.xpose.msra.mxu0 0.0
  %640 = vmatprep.mubr.f32.mxu0 0.0
  %641 = vmatmul.mubr.f32.gmra.mrb[0].mxu0 %v572
  %v642 = vpop.f32.mrb[0].mxu0
  %v643 = vadd.f32 0.0, %v642
  %v644 = vpop.f32.mrb[0].mxu0
  %645 = vdwg.mxu0
  %v646 = vmul.f32 %v643, 0.25
  %v647 = vsel %vm478, %v646, -inf
  %648 = vmax.xlane.f32.xlu0 %v647
  %v649 = vpop.xlane.xlu0 %648
  %v650 = vsub.f32 %v646, %v649
  %v651 = vmul.f32 %v650, 1.442695
  %v652 = vpow.pop %v651
  %v653 = vsel %vm478, %v652, 0.0
  %654 = vadd.xlane.f32.xlu0 %v653
  %v655 = vpop.xlane.xlu0 %654
  %v656 = vrcp.pop %v655
  %v657 = vmul.f32 %v652, %v656
  %658 = vrot.lane.b32.xlu0 %v391, 48
  %v659 = vpop.permute.xlu0 %658
  %v662 = vsel %vm478, %v657, 0
  %664 = vmatprep.subr.mxu0 0.0
  %665 = vmatpush1.msra.mxu0 %v659
  %666 = vmatprep.subr.mxu0 0.0
  %667 = vmatpush1.msra.mxu0 0.0
  %668 = vmatprep.subr.mxu0 0.0
  %669 = vmatpush1.msra.mxu0 0.0
  %670 = vmatprep.subr.mxu0 0.0
  %671 = vmatpush1.msra.mxu0 0.0
  %672 = vmatprep.subr.mxu0 0.0
  %673 = vmatpush1.msra.mxu0 0.0
  %674 = vmatprep.subr.mxu0 0.0
  %675 = vmatpush1.msra.mxu0 0.0
  %676 = vmatprep.subr.mxu0 0.0
  %677 = vmatpush1.msra.mxu0 0.0
  %678 = vmatprep.subr.mxu0 0.0
  %679 = vmatpush1.msra.mxu0 0.0
  %680 = vmatprep.subr.mxu0 0.0
  %681 = vmatpush1.msra.mxu0 0.0
  %682 = vmatprep.subr.mxu0 0.0
  %683 = vmatpush1.msra.mxu0 0.0
  %684 = vmatprep.subr.mxu0 0.0
  %685 = vmatpush1.msra.mxu0 0.0
  %686 = vmatprep.subr.mxu0 0.0
  %687 = vmatpush1.msra.mxu0 0.0
  %688 = vmatprep.subr.mxu0 0.0
  %689 = vmatpush1.msra.mxu0 0.0
  %690 = vmatprep.subr.mxu0 0.0
  %691 = vmatpush1.msra.mxu0 0.0
  %692 = vmatprep.subr.mxu0 0.0
  %693 = vmatpush1.msra.mxu0 0.0
  %694 = vmatprep.subr.mxu0 0.0
  %695 = vmatpush1.msra.mxu0 0.0
  %696 = vmatprep.subr.mxu0 0.0
  %697 = vmatpush1.msra.mxu0 0.0
  %698 = vmatprep.subr.mxu0 0.0
  %699 = vmatpush1.msra.mxu0 0.0
  %700 = vmatprep.subr.mxu0 0.0
  %701 = vmatpush1.msra.mxu0 0.0
  %702 = vmatprep.subr.mxu0 0.0
  %703 = vmatpush1.msra.mxu0 0.0
  %704 = vmatprep.subr.mxu0 0.0
  %705 = vmatpush1.msra.mxu0 0.0
  %706 = vmatprep.subr.mxu0 0.0
  %707 = vmatpush1.msra.mxu0 0.0
  %708 = vmatprep.subr.mxu0 0.0
  %709 = vmatpush1.msra.mxu0 0.0
  %710 = vmatprep.subr.mxu0 0.0
  %711 = vmatpush1.msra.mxu0 0.0
  %712 = vmatprep.subr.mxu0 0.0
  %713 = vmatpush1.msra.mxu0 0.0
  %714 = vmatprep.subr.mxu0 0.0
  %715 = vmatpush1.msra.mxu0 0.0
  %716 = vmatprep.subr.mxu0 0.0
  %717 = vmatpush1.msra.mxu0 0.0
  %718 = vmatprep.subr.mxu0 0.0
  %719 = vmatpush1.msra.mxu0 0.0
  %720 = vmatprep.subr.mxu0 0.0
  %721 = vmatpush1.msra.mxu0 0.0
  %722 = vmatprep.subr.mxu0 0.0
  %723 = vmatpush1.msra.mxu0 0.0
  %724 = vmatprep.subr.mxu0 0.0
  %725 = vmatpush1.msra.mxu0 0.0
  %726 = vmatprep.subr.mxu0 0.0
  %727 = vmatpush1.msra.mxu0 0.0
  %728 = vmatprep.mubr.f32.mxu0 0.0
  %729 = vmatmul.mubr.f32.gmra.mrb[0].mxu0 %v662
  %v730 = vpop.f32.mrb[0].mxu0
  %v731 = vadd.f32 0.0, %v730
  %v732 = vpop.f32.mrb[0].mxu0
  %733 = vdwg.mxu0
  %v734 = vld [vmem:[%s15 + $0x10] sm:$0xff]
  %v735 = vld [vmem:[%s15 + $0x18] sm:$0xff]
  %v737 = vsel %vm402, %v731, 0
  %739 = vmatprep.subr.mxu0 0.0
  %740 = vmatpush1.msra.mxu0 %v734
  %741 = vmatprep.subr.mxu0 0.0
  %742 = vmatpush1.msra.mxu0 %v735
  %743 = vmatprep.subr.mxu0 0.0
  %744 = vmatpush1.msra.mxu0 0.0
  %745 = vmatprep.subr.mxu0 0.0
  %746 = vmatpush1.msra.mxu0 0.0
  %747 = vmatprep.subr.mxu0 0.0
  %748 = vmatpush1.msra.mxu0 0.0
  %749 = vmatprep.subr.mxu0 0.0
  %750 = vmatpush1.msra.mxu0 0.0
  %751 = vmatprep.subr.mxu0 0.0
  %752 = vmatpush1.msra.mxu0 0.0
  %753 = vmatprep.subr.mxu0 0.0
  %754 = vmatpush1.msra.mxu0 0.0
  %755 = vmatprep.subr.mxu0 0.0
  %756 = vmatpush1.msra.mxu0 0.0
  %757 = vmatprep.subr.mxu0 0.0
  %758 = vmatpush1.msra.mxu0 0.0
  %759 = vmatprep.subr.mxu0 0.0
  %760 = vmatpush1.msra.mxu0 0.0
  %761 = vmatprep.subr.mxu0 0.0
  %762 = vmatpush1.msra.mxu0 0.0
  %763 = vmatprep.subr.mxu0 0.0
  %764 = vmatpush1.msra.mxu0 0.0
  %765 = vmatprep.subr.mxu0 0.0
  %766 = vmatpush1.msra.mxu0 0.0
  %767 = vmatprep.subr.mxu0 0.0
  %768 = vmatpush1.msra.mxu0 0.0
  %769 = vmatprep.subr.mxu0 0.0
  %770 = vmatpush1.msra.mxu0 0.0
  %771 = vmatprep.subr.mxu0 0.0
  %772 = vmatpush1.msra.mxu0 0.0
  %773 = vmatprep.subr.mxu0 0.0
  %774 = vmatpush1.msra.mxu0 0.0
  %775 = vmatprep.subr.mxu0 0.0
  %776 = vmatpush1.msra.mxu0 0.0
  %777 = vmatprep.subr.mxu0 0.0
  %778 = vmatpush1.msra.mxu0 0.0
  %779 = vmatprep.subr.mxu0 0.0
  %780 = vmatpush1.msra.mxu0 0.0
  %781 = vmatprep.subr.mxu0 0.0
  %782 = vmatpush1.msra.mxu0 0.0
  %783 = vmatprep.subr.mxu0 0.0
  %784 = vmatpush1.msra.mxu0 0.0
  %785 = vmatprep.subr.mxu0 0.0
  %786 = vmatpush1.msra.mxu0 0.0
  %787 = vmatprep.subr.mxu0 0.0
  %788 = vmatpush1.msra.mxu0 0.0
  %789 = vmatprep.subr.mxu0 0.0
  %790 = vmatpush1.msra.mxu0 0.0
  %791 = vmatprep.subr.mxu0 0.0
  %792 = vmatpush1.msra.mxu0 0.0
  %793 = vmatprep.subr.mxu0 0.0
  %794 = vmatpush1.msra.mxu0 0.0
  %795 = vmatprep.subr.mxu0 0.0
  %796 = vmatpush1.msra.mxu0 0.0
  %797 = vmatprep.subr.mxu0 0.0
  %798 = vmatpush1.msra.mxu0 0.0
  %799 = vmatprep.subr.mxu0 0.0
  %800 = vmatpush1.msra.mxu0 0.0
  %801 = vmatprep.subr.mxu0 0.0
  %802 = vmatpush1.msra.mxu0 0.0
  %803 = vmatprep.mubr.f32.mxu0 0.0
  %804 = vmatmul.mubr.f32.gmra.mrb[0].mxu0 %v737
  %v805 = vpop.f32.mrb[0].mxu0
  %v806 = vadd.f32 0.0, %v805
  %v807 = vpop.f32.mrb[0].mxu0
  %808 = vdwg.mxu0
  %v810 = vsel %vm402, %v563, 0
  %812 = vmatprep.subr.mxu0 0.0
  %813 = vmatpush1.msra.mxu0 %v566
  %814 = vmatprep.subr.mxu0 0.0
  %815 = vmatpush1.msra.mxu0 %v567
  %816 = vmatprep.subr.mxu0 0.0
  %817 = vmatpush1.msra.mxu0 0.0
  %818 = vmatprep.subr.mxu0 0.0
  %819 = vmatpush1.msra.mxu0 0.0
  %820 = vmatprep.subr.mxu0 0.0
  %821 = vmatpush1.msra.mxu0 0.0
  %822 = vmatprep.subr.mxu0 0.0
  %823 = vmatpush1.msra.mxu0 0.0
  %824 = vmatprep.subr.mxu0 0.0
  %825 = vmatpush1.msra.mxu0 0.0
  %826 = vmatprep.subr.mxu0 0.0
  %827 = vmatpush1.msra.mxu0 0.0
  %828 = vmatprep.subr.mxu0 0.0
  %829 = vmatpush1.msra.mxu0 0.0
  %830 = vmatprep.subr.mxu0 0.0
  %831 = vmatpush1.msra.mxu0 0.0
  %832 = vmatprep.subr.mxu0 0.0
  %833 = vmatpush1.msra.mxu0 0.0
  %834 = vmatprep.subr.mxu0 0.0
  %835 = vmatpush1.msra.mxu0 0.0
  %836 = vmatprep.subr.mxu0 0.0
  %837 = vmatpush1.msra.mxu0 0.0
  %838 = vmatprep.subr.mxu0 0.0
  %839 = vmatpush1.msra.mxu0 0.0
  %840 = vmatprep.subr.mxu0 0.0
  %841 = vmatpush1.msra.mxu0 0.0
  %842 = vmatprep.subr.mxu0 0.0
  %843 = vmatpush1.msra.mxu0 0.0
  %844 = vmatprep.subr.mxu0 0.0
  %845 = vmatpush1.msra.mxu0 0.0
  %846 = vmatprep.subr.mxu0 0.0
  %847 = vmatpush1.msra.mxu0 0.0
  %848 = vmatprep.subr.mxu0 0.0
  %849 = vmatpush1.msra.mxu0 0.0
  %850 = vmatprep.subr.mxu0 0.0
  %851 = vmatpush1.msra.mxu0 0.0
  %852 = vmatprep.subr.mxu0 0.0
  %853 = vmatpush1.msra.mxu0 0.0
  %854 = vmatprep.subr.mxu0 0.0
  %855 = vmatpush1.msra.mxu0 0.0
  %856 = vmatprep.subr.mxu0 0.0
  %857 = vmatpush1.msra.mxu0 0.0
  %858 = vmatprep.subr.mxu0 0.0
  %859 = vmatpush1.msra.mxu0 0.0
  %860 = vmatprep.subr.mxu0 0.0
  %861 = vmatpush1.msra.mxu0 0.0
  %862 = vmatprep.subr.mxu0 0.0
  %863 = vmatpush1.msra.mxu0 0.0
  %864 = vmatprep.subr.mxu0 0.0
  %865 = vmatpush1.msra.mxu0 0.0
  %866 = vmatprep.subr.mxu0 0.0
  %867 = vmatpush1.msra.mxu0 0.0
  %868 = vmatprep.subr.mxu0 0.0
  %869 = vmatpush1.msra.mxu0 0.0
  %870 = vmatprep.subr.mxu0 0.0
  %871 = vmatpush1.msra.mxu0 0.0
  %872 = vmatprep.subr.mxu0 0.0
  %873 = vmatpush1.msra.mxu0 0.0
  %874 = vmatprep.subr.mxu0 0.0
  %875 = vmatpush1.msra.mxu0 0.0
  %876 = vmatprep.mubr.f32.mxu0 0.0
  %877 = vmatmul.mubr.f32.gmra.mrb[0].mxu0 %v810
  %v878 = vpop.f32.mrb[0].mxu0
  %v879 = vadd.f32 %v806, %v878
  %v880 = vpop.f32.mrb[0].mxu0
  %881 = vdwg.mxu0
  %883 = vrot.lane.b32.xlu0 %v396, 96
  %v884 = vpop.permute.xlu0 %883
  %v885 = vsel %vm402, %v396, 0
  %v887 = vsel %vm402, %v884, 0
  %889 = vmatprep.subr.mxu0 0.0
  %890 = vmatpush1.xpose.msra.mxu0 %v887
  %891 = vmatprep.subr.mxu0 0.0
  %892 = vmatpush1.xpose.msra.mxu0 0.0
  %893 = vmatprep.subr.mxu0 0.0
  %894 = vmatpush1.xpose.msra.mxu0 0.0
  %895 = vmatprep.subr.mxu0 0.0
  %896 = vmatpush1.xpose.msra.mxu0 0.0
  %897 = vmatprep.subr.mxu0 0.0
  %898 = vmatpush1.xpose.msra.mxu0 0.0
  %899 = vmatprep.subr.mxu0 0.0
  %900 = vmatpush1.xpose.msra.mxu0 0.0
  %901 = vmatprep.subr.mxu0 0.0
  %902 = vmatpush1.xpose.msra.mxu0 0.0
  %903 = vmatprep.subr.mxu0 0.0
  %904 = vmatpush1.xpose.msra.mxu0 0.0
  %905 = vmatprep.subr.mxu0 0.0
  %906 = vmatpush1.xpose.msra.mxu0 0.0
  %907 = vmatprep.subr.mxu0 0.0
  %908 = vmatpush1.xpose.msra.mxu0 0.0
  %909 = vmatprep.subr.mxu0 0.0
  %910 = vmatpush1.xpose.msra.mxu0 0.0
  %911 = vmatprep.subr.mxu0 0.0
  %912 = vmatpush1.xpose.msra.mxu0 0.0
  %913 = vmatprep.subr.mxu0 0.0
  %914 = vmatpush1.xpose.msra.mxu0 0.0
  %915 = vmatprep.subr.mxu0 0.0
  %916 = vmatpush1.xpose.msra.mxu0 0.0
  %917 = vmatprep.subr.mxu0 0.0
  %918 = vmatpush1.xpose.msra.mxu0 0.0
  %919 = vmatprep.subr.mxu0 0.0
  %920 = vmatpush1.xpose.msra.mxu0 0.0
  %921 = vmatprep.subr.mxu0 0.0
  %922 = vmatpush1.xpose.msra.mxu0 0.0
  %923 = vmatprep.subr.mxu0 0.0
  %924 = vmatpush1.xpose.msra.mxu0 0.0
  %925 = vmatprep.subr.mxu0 0.0
  %926 = vmatpush1.xpose.msra.mxu0 0.0
  %927 = vmatprep.subr.mxu0 0.0
  %928 = vmatpush1.xpose.msra.mxu0 0.0
  %929 = vmatprep.subr.mxu0 0.0
  %930 = vmatpush1.xpose.msra.mxu0 0.0
  %931 = vmatprep.subr.mxu0 0.0
  %932 = vmatpush1.xpose.msra.mxu0 0.0
  %933 = vmatprep.subr.mxu0 0.0
  %934 = vmatpush1.xpose.msra.mxu0 0.0
  %935 = vmatprep.subr.mxu0 0.0
  %936 = vmatpush1.xpose.msra.mxu0 0.0
  %937 = vmatprep.subr.mxu0 0.0
  %938 = vmatpush1.xpose.msra.mxu0 0.0
  %939 = vmatprep.subr.mxu0 0.0
  %940 = vmatpush1.xpose.msra.mxu0 0.0
  %941 = vmatprep.subr.mxu0 0.0
  %942 = vmatpush1.xpose.msra.mxu0 0.0
  %943 = vmatprep.subr.mxu0 0.0
  %944 = vmatpush1.xpose.msra.mxu0 0.0
  %945 = vmatprep.subr.mxu0 0.0
  %946 = vmatpush1.xpose.msra.mxu0 0.0
  %947 = vmatprep.subr.mxu0 0.0
  %948 = vmatpush1.xpose.msra.mxu0 0.0
  %949 = vmatprep.subr.mxu0 0.0
  %950 = vmatpush1.xpose.msra.mxu0 0.0
  %951 = vmatprep.subr.mxu0 0.0
  %952 = vmatpush1.xpose.msra.mxu0 0.0
  %953 = vmatprep.mubr.f32.mxu0 0.0
  %954 = vmatmul.mubr.f32.gmra.mrb[0].mxu0 %v885
  %v955 = vpop.f32.mrb[0].mxu0
  %v956 = vadd.f32 0.0, %v955
  %v957 = vpop.f32.mrb[0].mxu0
  %958 = vdwg.mxu0
  %v959 = vmul.f32 %v956, 0.25
  %v960 = vsel %vm478, %v959, -inf
  %961 = vmax.xlane.f32.xlu0 %v960
  %v962 = vpop.xlane.xlu0 %961
  %v963 = vsub.f32 %v959, %v962
  %v964 = vmul.f32 %v963, 1.442695
  %v965 = vpow.pop %v964
  %v966 = vsel %vm478, %v965, 0.0
  %967 = vadd.xlane.f32.xlu0 %v966
  %v968 = vpop.xlane.xlu0 %967
  %v969 = vrcp.pop %v968
  %v970 = vmul.f32 %v965, %v969
  %971 = vrot.lane.b32.xlu0 %v396, 64
  %v972 = vpop.permute.xlu0 %971
  %v975 = vsel %vm478, %v970, 0
  %977 = vmatprep.subr.mxu0 0.0
  %978 = vmatpush1.msra.mxu0 %v972
  %979 = vmatprep.subr.mxu0 0.0
  %980 = vmatpush1.msra.mxu0 0.0
  %981 = vmatprep.subr.mxu0 0.0
  %982 = vmatpush1.msra.mxu0 0.0
  %983 = vmatprep.subr.mxu0 0.0
  %984 = vmatpush1.msra.mxu0 0.0
  %985 = vmatprep.subr.mxu0 0.0
  %986 = vmatpush1.msra.mxu0 0.0
  %987 = vmatprep.subr.mxu0 0.0
  %988 = vmatpush1.msra.mxu0 0.0
  %989 = vmatprep.subr.mxu0 0.0
  %990 = vmatpush1.msra.mxu0 0.0
  %991 = vmatprep.subr.mxu0 0.0
  %992 = vmatpush1.msra.mxu0 0.0
  %993 = vmatprep.subr.mxu0 0.0
  %994 = vmatpush1.msra.mxu0 0.0
  %995 = vmatprep.subr.mxu0 0.0
  %996 = vmatpush1.msra.mxu0 0.0
  %997 = vmatprep.subr.mxu0 0.0
  %998 = vmatpush1.msra.mxu0 0.0
  %999 = vmatprep.subr.mxu0 0.0
  %1000 = vmatpush1.msra.mxu0 0.0
  %1001 = vmatprep.subr.mxu0 0.0
  %1002 = vmatpush1.msra.mxu0 0.0
  %1003 = vmatprep.subr.mxu0 0.0
  %1004 = vmatpush1.msra.mxu0 0.0
  %1005 = vmatprep.subr.mxu0 0.0
  %1006 = vmatpush1.msra.mxu0 0.0
  %1007 = vmatprep.subr.mxu0 0.0
  %1008 = vmatpush1.msra.mxu0 0.0
  %1009 = vmatprep.subr.mxu0 0.0
  %1010 = vmatpush1.msra.mxu0 0.0
  %1011 = vmatprep.subr.mxu0 0.0
  %1012 = vmatpush1.msra.mxu0 0.0
  %1013 = vmatprep.subr.mxu0 0.0
  %1014 = vmatpush1.msra.mxu0 0.0
  %1015 = vmatprep.subr.mxu0 0.0
  %1016 = vmatpush1.msra.mxu0 0.0
  %1017 = vmatprep.subr.mxu0 0.0
  %1018 = vmatpush1.msra.mxu0 0.0
  %1019 = vmatprep.subr.mxu0 0.0
  %1020 = vmatpush1.msra.mxu0 0.0
  %1021 = vmatprep.subr.mxu0 0.0
  %1022 = vmatpush1.msra.mxu0 0.0
  %1023 = vmatprep.subr.mxu0 0.0
  %1024 = vmatpush1.msra.mxu0 0.0
  %1025 = vmatprep.subr.mxu0 0.0
  %1026 = vmatpush1.msra.mxu0 0.0
  %1027 = vmatprep.subr.mxu0 0.0
  %1028 = vmatpush1.msra.mxu0 0.0
  %1029 = vmatprep.subr.mxu0 0.0
  %1030 = vmatpush1.msra.mxu0 0.0
  %1031 = vmatprep.subr.mxu0 0.0
  %1032 = vmatpush1.msra.mxu0 0.0
  %1033 = vmatprep.subr.mxu0 0.0
  %1034 = vmatpush1.msra.mxu0 0.0
  %1035 = vmatprep.subr.mxu0 0.0
  %1036 = vmatpush1.msra.mxu0 0.0
  %1037 = vmatprep.subr.mxu0 0.0
  %1038 = vmatpush1.msra.mxu0 0.0
  %1039 = vmatprep.subr.mxu0 0.0
  %1040 = vmatpush1.msra.mxu0 0.0
  %1041 = vmatprep.mubr.f32.mxu0 0.0
  %1042 = vmatmul.mubr.f32.gmra.mrb[0].mxu0 %v975
  %v1043 = vpop.f32.mrb[0].mxu0
  %v1044 = vadd.f32 0.0, %v1043
  %v1045 = vpop.f32.mrb[0].mxu0
  %1046 = vdwg.mxu0
  %1047 = vrot.lane.b32.xlu0 %v396, 112
  %v1048 = vpop.permute.xlu0 %1047
  %1049 = vrot.lane.b32.xlu0 %v396, 80
  %v1050 = vpop.permute.xlu0 %1049
  %v1051 = vsel %vm402, %v1048, 0
  %v1053 = vsel %vm402, %v1050, 0
  %1055 = vmatprep.subr.mxu0 0.0
  %1056 = vmatpush1.xpose.msra.mxu0 %v1053
  %1057 = vmatprep.subr.mxu0 0.0
  %1058 = vmatpush1.xpose.msra.mxu0 0.0
  %1059 = vmatprep.subr.mxu0 0.0
  %1060 = vmatpush1.xpose.msra.mxu0 0.0
  %1061 = vmatprep.subr.mxu0 0.0
  %1062 = vmatpush1.xpose.msra.mxu0 0.0
  %1063 = vmatprep.subr.mxu0 0.0
  %1064 = vmatpush1.xpose.msra.mxu0 0.0
  %1065 = vmatprep.subr.mxu0 0.0
  %1066 = vmatpush1.xpose.msra.mxu0 0.0
  %1067 = vmatprep.subr.mxu0 0.0
  %1068 = vmatpush1.xpose.msra.mxu0 0.0
  %1069 = vmatprep.subr.mxu0 0.0
  %1070 = vmatpush1.xpose.msra.mxu0 0.0
  %1071 = vmatprep.subr.mxu0 0.0
  %1072 = vmatpush1.xpose.msra.mxu0 0.0
  %1073 = vmatprep.subr.mxu0 0.0
  %1074 = vmatpush1.xpose.msra.mxu0 0.0
  %1075 = vmatprep.subr.mxu0 0.0
  %1076 = vmatpush1.xpose.msra.mxu0 0.0
  %1077 = vmatprep.subr.mxu0 0.0
  %1078 = vmatpush1.xpose.msra.mxu0 0.0
  %1079 = vmatprep.subr.mxu0 0.0
  %1080 = vmatpush1.xpose.msra.mxu0 0.0
  %1081 = vmatprep.subr.mxu0 0.0
  %1082 = vmatpush1.xpose.msra.mxu0 0.0
  %1083 = vmatprep.subr.mxu0 0.0
  %1084 = vmatpush1.xpose.msra.mxu0 0.0
  %1085 = vmatprep.subr.mxu0 0.0
  %1086 = vmatpush1.xpose.msra.mxu0 0.0
  %1087 = vmatprep.subr.mxu0 0.0
  %1088 = vmatpush1.xpose.msra.mxu0 0.0
  %1089 = vmatprep.subr.mxu0 0.0
  %1090 = vmatpush1.xpose.msra.mxu0 0.0
  %1091 = vmatprep.subr.mxu0 0.0
  %1092 = vmatpush1.xpose.msra.mxu0 0.0
  %1093 = vmatprep.subr.mxu0 0.0
  %1094 = vmatpush1.xpose.msra.mxu0 0.0
  %1095 = vmatprep.subr.mxu0 0.0
  %1096 = vmatpush1.xpose.msra.mxu0 0.0
  %1097 = vmatprep.subr.mxu0 0.0
  %1098 = vmatpush1.xpose.msra.mxu0 0.0
  %1099 = vmatprep.subr.mxu0 0.0
  %1100 = vmatpush1.xpose.msra.mxu0 0.0
  %1101 = vmatprep.subr.mxu0 0.0
  %1102 = vmatpush1.xpose.msra.mxu0 0.0
  %1103 = vmatprep.subr.mxu0 0.0
  %1104 = vmatpush1.xpose.msra.mxu0 0.0
  %1105 = vmatprep.subr.mxu0 0.0
  %1106 = vmatpush1.xpose.msra.mxu0 0.0
  %1107 = vmatprep.subr.mxu0 0.0
  %1108 = vmatpush1.xpose.msra.mxu0 0.0
  %1109 = vmatprep.subr.mxu0 0.0
  %1110 = vmatpush1.xpose.msra.mxu0 0.0
  %1111 = vmatprep.subr.mxu0 0.0
  %1112 = vmatpush1.xpose.msra.mxu0 0.0
  %1113 = vmatprep.subr.mxu0 0.0
  %1114 = vmatpush1.xpose.msra.mxu0 0.0
  %1115 = vmatprep.subr.mxu0 0.0
  %1116 = vmatpush1.xpose.msra.mxu0 0.0
  %1117 = vmatprep.subr.mxu0 0.0
  %1118 = vmatpush1.xpose.msra.mxu0 0.0
  %1119 = vmatprep.mubr.f32.mxu0 0.0
  %1120 = vmatmul.mubr.f32.gmra.mrb[0].mxu0 %v1051
  %v1121 = vpop.f32.mrb[0].mxu0
  %v1122 = vadd.f32 0.0, %v1121
  %v1123 = vpop.f32.mrb[0].mxu0
  %1124 = vdwg.mxu0
  %v1125 = vmul.f32 %v1122, 0.25
  %v1126 = vsel %vm478, %v1125, -inf
  %1127 = vmax.xlane.f32.xlu0 %v1126
  %v1128 = vpop.xlane.xlu0 %1127
  %v1129 = vsub.f32 %v1125, %v1128
  %v1130 = vmul.f32 %v1129, 1.442695
  %v1131 = vpow.pop %v1130
  %v1132 = vsel %vm478, %v1131, 0.0
  %1133 = vadd.xlane.f32.xlu0 %v1132
  %v1134 = vpop.xlane.xlu0 %1133
  %v1135 = vrcp.pop %v1134
  %v1136 = vmul.f32 %v1131, %v1135
  %1137 = vrot.lane.b32.xlu0 %v396, 48
  %v1138 = vpop.permute.xlu0 %1137
  %v1141 = vsel %vm478, %v1136, 0
  %1143 = vmatprep.subr.mxu0 0.0
  %1144 = vmatpush1.msra.mxu0 %v1138
  %1145 = vmatprep.subr.mxu0 0.0
  %1146 = vmatpush1.msra.mxu0 0.0
  %1147 = vmatprep.subr.mxu0 0.0
  %1148 = vmatpush1.msra.mxu0 0.0
  %1149 = vmatprep.subr.mxu0 0.0
  %1150 = vmatpush1.msra.mxu0 0.0
  %1151 = vmatprep.subr.mxu0 0.0
  %1152 = vmatpush1.msra.mxu0 0.0
  %1153 = vmatprep.subr.mxu0 0.0
  %1154 = vmatpush1.msra.mxu0 0.0
  %1155 = vmatprep.subr.mxu0 0.0
  %1156 = vmatpush1.msra.mxu0 0.0
  %1157 = vmatprep.subr.mxu0 0.0
  %1158 = vmatpush1.msra.mxu0 0.0
  %1159 = vmatprep.subr.mxu0 0.0
  %1160 = vmatpush1.msra.mxu0 0.0
  %1161 = vmatprep.subr.mxu0 0.0
  %1162 = vmatpush1.msra.mxu0 0.0
  %1163 = vmatprep.subr.mxu0 0.0
  %1164 = vmatpush1.msra.mxu0 0.0
  %1165 = vmatprep.subr.mxu0 0.0
  %1166 = vmatpush1.msra.mxu0 0.0
  %1167 = vmatprep.subr.mxu0 0.0
  %1168 = vmatpush1.msra.mxu0 0.0
  %1169 = vmatprep.subr.mxu0 0.0
  %1170 = vmatpush1.msra.mxu0 0.0
  %1171 = vmatprep.subr.mxu0 0.0
  %1172 = vmatpush1.msra.mxu0 0.0
  %1173 = vmatprep.subr.mxu0 0.0
  %1174 = vmatpush1.msra.mxu0 0.0
  %1175 = vmatprep.subr.mxu0 0.0
  %1176 = vmatpush1.msra.mxu0 0.0
  %1177 = vmatprep.subr.mxu0 0.0
  %1178 = vmatpush1.msra.mxu0 0.0
  %1179 = vmatprep.subr.mxu0 0.0
  %1180 = vmatpush1.msra.mxu0 0.0
  %1181 = vmatprep.subr.mxu0 0.0
  %1182 = vmatpush1.msra.mxu0 0.0
  %1183 = vmatprep.subr.mxu0 0.0
  %1184 = vmatpush1.msra.mxu0 0.0
  %1185 = vmatprep.subr.mxu0 0.0
  %1186 = vmatpush1.msra.mxu0 0.0
  %1187 = vmatprep.subr.mxu0 0.0
  %1188 = vmatpush1.msra.mxu0 0.0
  %1189 = vmatprep.subr.mxu0 0.0
  %1190 = vmatpush1.msra.mxu0 0.0
  %1191 = vmatprep.subr.mxu0 0.0
  %1192 = vmatpush1.msra.mxu0 0.0
  %1193 = vmatprep.subr.mxu0 0.0
  %1194 = vmatpush1.msra.mxu0 0.0
  %1195 = vmatprep.subr.mxu0 0.0
  %1196 = vmatpush1.msra.mxu0 0.0
  %1197 = vmatprep.subr.mxu0 0.0
  %1198 = vmatpush1.msra.mxu0 0.0
  %1199 = vmatprep.subr.mxu0 0.0
  %1200 = vmatpush1.msra.mxu0 0.0
  %1201 = vmatprep.subr.mxu0 0.0
  %1202 = vmatpush1.msra.mxu0 0.0
  %1203 = vmatprep.subr.mxu0 0.0
  %1204 = vmatpush1.msra.mxu0 0.0
  %1205 = vmatprep.subr.mxu0 0.0
  %1206 = vmatpush1.msra.mxu0 0.0
  %1207 = vmatprep.mubr.f32.mxu0 0.0
  %1208 = vmatmul.mubr.f32.gmra.mrb[0].mxu0 %v1141
  %v1209 = vpop.f32.mrb[0].mxu0
  %v1210 = vadd.f32 0.0, %v1209
  %v1211 = vpop.f32.mrb[0].mxu0
  %1212 = vdwg.mxu0
  %v1214 = vsel %vm402, %v1210, 0
  %1216 = vmatprep.subr.mxu0 0.0
  %1217 = vmatpush1.msra.mxu0 %v734
  %1218 = vmatprep.subr.mxu0 0.0
  %1219 = vmatpush1.msra.mxu0 %v735
  %1220 = vmatprep.subr.mxu0 0.0
  %1221 = vmatpush1.msra.mxu0 0.0
  %1222 = vmatprep.subr.mxu0 0.0
  %1223 = vmatpush1.msra.mxu0 0.0
  %1224 = vmatprep.subr.mxu0 0.0
  %1225 = vmatpush1.msra.mxu0 0.0
  %1226 = vmatprep.subr.mxu0 0.0
  %1227 = vmatpush1.msra.mxu0 0.0
  %1228 = vmatprep.subr.mxu0 0.0
  %1229 = vmatpush1.msra.mxu0 0.0
  %1230 = vmatprep.subr.mxu0 0.0
  %1231 = vmatpush1.msra.mxu0 0.0
  %1232 = vmatprep.subr.mxu0 0.0
  %1233 = vmatpush1.msra.mxu0 0.0
  %1234 = vmatprep.subr.mxu0 0.0
  %1235 = vmatpush1.msra.mxu0 0.0
  %1236 = vmatprep.subr.mxu0 0.0
  %1237 = vmatpush1.msra.mxu0 0.0
  %1238 = vmatprep.subr.mxu0 0.0
  %1239 = vmatpush1.msra.mxu0 0.0
  %1240 = vmatprep.subr.mxu0 0.0
  %1241 = vmatpush1.msra.mxu0 0.0
  %1242 = vmatprep.subr.mxu0 0.0
  %1243 = vmatpush1.msra.mxu0 0.0
  %1244 = vmatprep.subr.mxu0 0.0
  %1245 = vmatpush1.msra.mxu0 0.0
  %1246 = vmatprep.subr.mxu0 0.0
  %1247 = vmatpush1.msra.mxu0 0.0
  %1248 = vmatprep.subr.mxu0 0.0
  %1249 = vmatpush1.msra.mxu0 0.0
  %1250 = vmatprep.subr.mxu0 0.0
  %1251 = vmatpush1.msra.mxu0 0.0
  %1252 = vmatprep.subr.mxu0 0.0
  %1253 = vmatpush1.msra.mxu0 0.0
  %1254 = vmatprep.subr.mxu0 0.0
  %1255 = vmatpush1.msra.mxu0 0.0
  %1256 = vmatprep.subr.mxu0 0.0
  %1257 = vmatpush1.msra.mxu0 0.0
  %1258 = vmatprep.subr.mxu0 0.0
  %1259 = vmatpush1.msra.mxu0 0.0
  %1260 = vmatprep.subr.mxu0 0.0
  %1261 = vmatpush1.msra.mxu0 0.0
  %1262 = vmatprep.subr.mxu0 0.0
  %1263 = vmatpush1.msra.mxu0 0.0
  %1264 = vmatprep.subr.mxu0 0.0
  %1265 = vmatpush1.msra.mxu0 0.0
  %1266 = vmatprep.subr.mxu0 0.0
  %1267 = vmatpush1.msra.mxu0 0.0
  %1268 = vmatprep.subr.mxu0 0.0
  %1269 = vmatpush1.msra.mxu0 0.0
  %1270 = vmatprep.subr.mxu0 0.0
  %1271 = vmatpush1.msra.mxu0 0.0
  %1272 = vmatprep.subr.mxu0 0.0
  %1273 = vmatpush1.msra.mxu0 0.0
  %1274 = vmatprep.subr.mxu0 0.0
  %1275 = vmatpush1.msra.mxu0 0.0
  %1276 = vmatprep.subr.mxu0 0.0
  %1277 = vmatpush1.msra.mxu0 0.0
  %1278 = vmatprep.subr.mxu0 0.0
  %1279 = vmatpush1.msra.mxu0 0.0
  %1280 = vmatprep.mubr.f32.mxu0 0.0
  %1281 = vmatmul.mubr.f32.gmra.mrb[0].mxu0 %v1214
  %v1282 = vpop.f32.mrb[0].mxu0
  %v1283 = vadd.f32 0.0, %v1282
  %v1284 = vpop.f32.mrb[0].mxu0
  %1285 = vdwg.mxu0
  %v1287 = vsel %vm402, %v1044, 0
  %1289 = vmatprep.subr.mxu0 0.0
  %1290 = vmatpush1.msra.mxu0 %v566
  %1291 = vmatprep.subr.mxu0 0.0
  %1292 = vmatpush1.msra.mxu0 %v567
  %1293 = vmatprep.subr.mxu0 0.0
  %1294 = vmatpush1.msra.mxu0 0.0
  %1295 = vmatprep.subr.mxu0 0.0
  %1296 = vmatpush1.msra.mxu0 0.0
  %1297 = vmatprep.subr.mxu0 0.0
  %1298 = vmatpush1.msra.mxu0 0.0
  %1299 = vmatprep.subr.mxu0 0.0
  %1300 = vmatpush1.msra.mxu0 0.0
  %1301 = vmatprep.subr.mxu0 0.0
  %1302 = vmatpush1.msra.mxu0 0.0
  %1303 = vmatprep.subr.mxu0 0.0
  %1304 = vmatpush1.msra.mxu0 0.0
  %1305 = vmatprep.subr.mxu0 0.0
  %1306 = vmatpush1.msra.mxu0 0.0
  %1307 = vmatprep.subr.mxu0 0.0
  %1308 = vmatpush1.msra.mxu0 0.0
  %1309 = vmatprep.subr.mxu0 0.0
  %1310 = vmatpush1.msra.mxu0 0.0
  %1311 = vmatprep.subr.mxu0 0.0
  %1312 = vmatpush1.msra.mxu0 0.0
  %1313 = vmatprep.subr.mxu0 0.0
  %1314 = vmatpush1.msra.mxu0 0.0
  %1315 = vmatprep.subr.mxu0 0.0
  %1316 = vmatpush1.msra.mxu0 0.0
  %1317 = vmatprep.subr.mxu0 0.0
  %1318 = vmatpush1.msra.mxu0 0.0
  %1319 = vmatprep.subr.mxu0 0.0
  %1320 = vmatpush1.msra.mxu0 0.0
  %1321 = vmatprep.subr.mxu0 0.0
  %1322 = vmatpush1.msra.mxu0 0.0
  %1323 = vmatprep.subr.mxu0 0.0
  %1324 = vmatpush1.msra.mxu0 0.0
  %1325 = vmatprep.subr.mxu0 0.0
  %1326 = vmatpush1.msra.mxu0 0.0
  %1327 = vmatprep.subr.mxu0 0.0
  %1328 = vmatpush1.msra.mxu0 0.0
  %1329 = vmatprep.subr.mxu0 0.0
  %1330 = vmatpush1.msra.mxu0 0.0
  %1331 = vmatprep.subr.mxu0 0.0
  %1332 = vmatpush1.msra.mxu0 0.0
  %1333 = vmatprep.subr.mxu0 0.0
  %1334 = vmatpush1.msra.mxu0 0.0
  %1335 = vmatprep.subr.mxu0 0.0
  %1336 = vmatpush1.msra.mxu0 0.0
  %1337 = vmatprep.subr.mxu0 0.0
  %1338 = vmatpush1.msra.mxu0 0.0
  %1339 = vmatprep.subr.mxu0 0.0
  %1340 = vmatpush1.msra.mxu0 0.0
  %1341 = vmatprep.subr.mxu0 0.0
  %1342 = vmatpush1.msra.mxu0 0.0
  %1343 = vmatprep.subr.mxu0 0.0
  %1344 = vmatpush1.msra.mxu0 0.0
  %1345 = vmatprep.subr.mxu0 0.0
  %1346 = vmatpush1.msra.mxu0 0.0
  %1347 = vmatprep.subr.mxu0 0.0
  %1348 = vmatpush1.msra.mxu0 0.0
  %1349 = vmatprep.subr.mxu0 0.0
  %1350 = vmatpush1.msra.mxu0 0.0
  %1351 = vmatprep.subr.mxu0 0.0
  %1352 = vmatpush1.msra.mxu0 0.0
  %1353 = vmatprep.mubr.f32.mxu0 0.0
  %1354 = vmatmul.mubr.f32.gmra.mrb[0].mxu0 %v1287
  %v1355 = vpop.f32.mrb[0].mxu0
  %v1356 = vadd.f32 %v1283, %v1355
  %v1357 = vpop.f32.mrb[0].mxu0
  %1358 = vdwg.mxu0
  %v1359 = vld [vmem:[%s17] sm:$0x1]
  %v1361 = vlaneseq
  %v1362 = vshrl.u32 %v1361, 7
  %v1363 = vsub.s32 0, %v1362
  %v1364 = vrot.slane %v1359, %v1363
  %v1366 = vadd.f32 %v879, %v1364
  %v1367 = vadd.f32 %v1356, %v1364
  %v1368 = vadd.f32 %v305, %v1366
  %v1369 = vadd.f32 %v306, %v1367
  %v1370 = vld [vmem:[%s19] sm:$0x1]
  %v1371 = vld [vmem:[%s21] sm:$0x1]
  %v1372 = vsel %vm263, %v1368, 0.0
  %1373 = vadd.xlane.f32.xlu0 %v1372
  %v1374 = vpop.xlane.xlu0 %1373
  %v1375 = vsel %vm263, %v1369, 0.0
  %1376 = vadd.xlane.f32.xlu0 %v1375
  %v1377 = vpop.xlane.xlu0 %1376
  %v1378 = vmul.f32 %v1374, %v270
  %v1379 = vmul.f32 %v1377, %v270
  %v1380 = vsub.f32 %v1368, %v1378
  %v1381 = vsub.f32 %v1369, %v1379
  %v1382 = vmul.f32 %v1380, %v1380
  %v1383 = vmul.f32 %v1381, %v1381
  %v1384 = vsel %vm263, %v1382, 0.0
  %1385 = vadd.xlane.f32.xlu0 %v1384
  %v1386 = vpop.xlane.xlu0 %1385
  %v1387 = vsel %vm263, %v1383, 0.0
  %1388 = vadd.xlane.f32.xlu0 %v1387
  %v1389 = vpop.xlane.xlu0 %1388
  %v1390 = vmul.f32 %v1386, %v270
  %v1391 = vmul.f32 %v1389, %v270
  %v1392 = vadd.f32 %v1390, 1e-12
  %v1393 = vadd.f32 %v1391, 1e-12
  %v1394 = vrsqrt.pop %v1392
  %v1395 = vrsqrt.pop %v1393
  %v1396 = vmul.f32 %v1380, %v1394
  %v1397 = vmul.f32 %v1381, %v1395
  %v1399 = vlaneseq
  %v1400 = vshrl.u32 %v1399, 7
  %v1401 = vsub.s32 0, %v1400
  %v1402 = vrot.slane %v1370, %v1401
  %v1404 = vmul.f32 %v1396, %v1402
  %v1405 = vmul.f32 %v1397, %v1402
  %v1407 = vlaneseq
  %v1408 = vshrl.u32 %v1407, 7
  %v1409 = vsub.s32 0, %v1408
  %v1410 = vrot.slane %v1371, %v1409
  %v1412 = vadd.f32 %v1404, %v1410
  %v1413 = vadd.f32 %v1405, %v1410
  %v1414 = vld [vmem:[%s23] sm:$0xff]
  %v1415 = vld [vmem:[%s23 + $0x8] sm:$0xff]
  %v1416 = vld [vmem:[%s23 + $0x10] sm:$0xff]
  %v1417 = vld [vmem:[%s23 + $0x18] sm:$0xff]
  %v1418 = vld [vmem:[%s25] sm:$0x1]
  %v1420 = vlaneseq
  %v1421 = vshrl.u32 %v1420, 7
  %v1422 = vsub.s32 0, %v1421
  %v1423 = vrot.slane %v1418, %v1422
  %v1426 = vsel %vm263, %v1412, 0
  %v1429 = vsel %vm263, %v1413, 0
  %1431 = vmatprep.subr.mxu0 0.0
  %1432 = vmatpush1.msra.mxu0 %v1414
  %1433 = vmatprep.subr.mxu0 0.0
  %1434 = vmatpush1.msra.mxu0 %v1415
  %1435 = vmatprep.subr.mxu0 0.0
  %1436 = vmatpush1.msra.mxu0 %v1416
  %1437 = vmatprep.subr.mxu0 0.0
  %1438 = vmatpush1.msra.mxu0 %v1417
  %1439 = vmatprep.subr.mxu0 0.0
  %1440 = vmatpush1.msra.mxu0 0.0
  %1441 = vmatprep.subr.mxu0 0.0
  %1442 = vmatpush1.msra.mxu0 0.0
  %1443 = vmatprep.subr.mxu0 0.0
  %1444 = vmatpush1.msra.mxu0 0.0
  %1445 = vmatprep.subr.mxu0 0.0
  %1446 = vmatpush1.msra.mxu0 0.0
  %1447 = vmatprep.subr.mxu0 0.0
  %1448 = vmatpush1.msra.mxu0 0.0
  %1449 = vmatprep.subr.mxu0 0.0
  %1450 = vmatpush1.msra.mxu0 0.0
  %1451 = vmatprep.subr.mxu0 0.0
  %1452 = vmatpush1.msra.mxu0 0.0
  %1453 = vmatprep.subr.mxu0 0.0
  %1454 = vmatpush1.msra.mxu0 0.0
  %1455 = vmatprep.subr.mxu0 0.0
  %1456 = vmatpush1.msra.mxu0 0.0
  %1457 = vmatprep.subr.mxu0 0.0
  %1458 = vmatpush1.msra.mxu0 0.0
  %1459 = vmatprep.subr.mxu0 0.0
  %1460 = vmatpush1.msra.mxu0 0.0
  %1461 = vmatprep.subr.mxu0 0.0
  %1462 = vmatpush1.msra.mxu0 0.0
  %1463 = vmatprep.subr.mxu0 0.0
  %1464 = vmatpush1.msra.mxu0 0.0
  %1465 = vmatprep.subr.mxu0 0.0
  %1466 = vmatpush1.msra.mxu0 0.0
  %1467 = vmatprep.subr.mxu0 0.0
  %1468 = vmatpush1.msra.mxu0 0.0
  %1469 = vmatprep.subr.mxu0 0.0
  %1470 = vmatpush1.msra.mxu0 0.0
  %1471 = vmatprep.subr.mxu0 0.0
  %1472 = vmatpush1.msra.mxu0 0.0
  %1473 = vmatprep.subr.mxu0 0.0
  %1474 = vmatpush1.msra.mxu0 0.0
  %1475 = vmatprep.subr.mxu0 0.0
  %1476 = vmatpush1.msra.mxu0 0.0
  %1477 = vmatprep.subr.mxu0 0.0
  %1478 = vmatpush1.msra.mxu0 0.0
  %1479 = vmatprep.subr.mxu0 0.0
  %1480 = vmatpush1.msra.mxu0 0.0
  %1481 = vmatprep.subr.mxu0 0.0
  %1482 = vmatpush1.msra.mxu0 0.0
  %1483 = vmatprep.subr.mxu0 0.0
  %1484 = vmatpush1.msra.mxu0 0.0
  %1485 = vmatprep.subr.mxu0 0.0
  %1486 = vmatpush1.msra.mxu0 0.0
  %1487 = vmatprep.subr.mxu0 0.0
  %1488 = vmatpush1.msra.mxu0 0.0
  %1489 = vmatprep.subr.mxu0 0.0
  %1490 = vmatpush1.msra.mxu0 0.0
  %1491 = vmatprep.subr.mxu0 0.0
  %1492 = vmatpush1.msra.mxu0 0.0
  %1493 = vmatprep.subr.mxu0 0.0
  %1494 = vmatpush1.msra.mxu0 0.0
  %1495 = vmatprep.mubr.f32.mxu0 0.0
  %1496 = vmatmul.mubr.f32.gmra.mrb[0].mxu0 %v1426
  %v1497 = vpop.f32.mrb[0].mxu0
  %v1498 = vadd.f32 %v1423, %v1497
  %v1499 = vpop.f32.mrb[0].mxu0
  %1500 = vmatprep.mubr.f32.mxu0 0.0
  %1501 = vmatmul.mubr.f32.gmra.mrb[0].mxu0 %v1429
  %v1502 = vpop.f32.mrb[0].mxu0
  %v1503 = vadd.f32 %v1423, %v1502
  %v1504 = vpop.f32.mrb[0].mxu0
  %1505 = vdwg.mxu0
  %v1506 = vmul.f32 %v1498, 0.5
  %v1507 = vmul.f32 %v1503, 0.5
  %v1508 = vmul.f32 %v1498, 0.044715
  %v1509 = vmul.f32 %v1503, 0.044715
  %v1510 = vmul.f32 %v1508, %v1498
  %v1511 = vmul.f32 %v1509, %v1503
  %v1512 = vmul.f32 %v1510, %v1498
  %v1513 = vmul.f32 %v1511, %v1503
  %v1514 = vadd.f32 %v1498, %v1512
  %v1515 = vadd.f32 %v1503, %v1513
  %v1516 = vmul.f32 %v1514, 0.7978846
  %v1517 = vmul.f32 %v1515, 0.7978846
  %v1518 = vtanh.pop %v1516
  %v1519 = vtanh.pop %v1517
  %v1520 = vadd.f32 %v1518, 1.0
  %v1521 = vadd.f32 %v1519, 1.0
  %v1522 = vmul.f32 %v1506, %v1520
  %v1523 = vmul.f32 %v1507, %v1521
  %v1524 = vld [vmem:[%s27] sm:$0xff]
  %v1525 = vld [vmem:[%s27 + $0x8] sm:$0xff]
  %v1526 = vld [vmem:[%s27 + $0x10] sm:$0xff]
  %v1527 = vld [vmem:[%s27 + $0x18] sm:$0xff]
  %v1528 = vld [vmem:[%s27 + $0x20] sm:$0xff]
  %v1529 = vld [vmem:[%s27 + $0x28] sm:$0xff]
  %v1530 = vld [vmem:[%s27 + $0x30] sm:$0xff]
  %v1531 = vld [vmem:[%s27 + $0x38] sm:$0xff]
  %v1532 = vld [vmem:[%s29] sm:$0x1]
  %v1534 = vlaneseq
  %v1535 = vshrl.u32 %v1534, 7
  %v1536 = vsub.s32 0, %v1535
  %v1537 = vrot.slane %v1532, %v1536
  %vm1539 = vcmask 523264
  %v1541 = vsel %vm1539, %v1522, 0
  %v1544 = vsel %vm1539, %v1523, 0
  %1546 = vmatprep.subr.mxu0 0.0
  %1547 = vmatpush1.msra.mxu0 %v1524
  %1548 = vmatprep.subr.mxu0 0.0
  %1549 = vmatpush1.msra.mxu0 %v1525
  %1550 = vmatprep.subr.mxu0 0.0
  %1551 = vmatpush1.msra.mxu0 %v1526
  %1552 = vmatprep.subr.mxu0 0.0
  %1553 = vmatpush1.msra.mxu0 %v1527
  %1554 = vmatprep.subr.mxu0 0.0
  %1555 = vmatpush1.msra.mxu0 %v1528
  %1556 = vmatprep.subr.mxu0 0.0
  %1557 = vmatpush1.msra.mxu0 %v1529
  %1558 = vmatprep.subr.mxu0 0.0
  %1559 = vmatpush1.msra.mxu0 %v1530
  %1560 = vmatprep.subr.mxu0 0.0
  %1561 = vmatpush1.msra.mxu0 %v1531
  %1562 = vmatprep.subr.mxu0 0.0
  %1563 = vmatpush1.msra.mxu0 0.0
  %1564 = vmatprep.subr.mxu0 0.0
  %1565 = vmatpush1.msra.mxu0 0.0
  %1566 = vmatprep.subr.mxu0 0.0
  %1567 = vmatpush1.msra.mxu0 0.0
  %1568 = vmatprep.subr.mxu0 0.0
  %1569 = vmatpush1.msra.mxu0 0.0
  %1570 = vmatprep.subr.mxu0 0.0
  %1571 = vmatpush1.msra.mxu0 0.0
  %1572 = vmatprep.subr.mxu0 0.0
  %1573 = vmatpush1.msra.mxu0 0.0
  %1574 = vmatprep.subr.mxu0 0.0
  %1575 = vmatpush1.msra.mxu0 0.0
  %1576 = vmatprep.subr.mxu0 0.0
  %1577 = vmatpush1.msra.mxu0 0.0
  %1578 = vmatprep.subr.mxu0 0.0
  %1579 = vmatpush1.msra.mxu0 0.0
  %1580 = vmatprep.subr.mxu0 0.0
  %1581 = vmatpush1.msra.mxu0 0.0
  %1582 = vmatprep.subr.mxu0 0.0
  %1583 = vmatpush1.msra.mxu0 0.0
  %1584 = vmatprep.subr.mxu0 0.0
  %1585 = vmatpush1.msra.mxu0 0.0
  %1586 = vmatprep.subr.mxu0 0.0
  %1587 = vmatpush1.msra.mxu0 0.0
  %1588 = vmatprep.subr.mxu0 0.0
  %1589 = vmatpush1.msra.mxu0 0.0
  %1590 = vmatprep.subr.mxu0 0.0
  %1591 = vmatpush1.msra.mxu0 0.0
  %1592 = vmatprep.subr.mxu0 0.0
  %1593 = vmatpush1.msra.mxu0 0.0
  %1594 = vmatprep.subr.mxu0 0.0
  %1595 = vmatpush1.msra.mxu0 0.0
  %1596 = vmatprep.subr.mxu0 0.0
  %1597 = vmatpush1.msra.mxu0 0.0
  %1598 = vmatprep.subr.mxu0 0.0
  %1599 = vmatpush1.msra.mxu0 0.0
  %1600 = vmatprep.subr.mxu0 0.0
  %1601 = vmatpush1.msra.mxu0 0.0
  %1602 = vmatprep.subr.mxu0 0.0
  %1603 = vmatpush1.msra.mxu0 0.0
  %1604 = vmatprep.subr.mxu0 0.0
  %1605 = vmatpush1.msra.mxu0 0.0
  %1606 = vmatprep.subr.mxu0 0.0
  %1607 = vmatpush1.msra.mxu0 0.0
  %1608 = vmatprep.subr.mxu0 0.0
  %1609 = vmatpush1.msra.mxu0 0.0
  %1610 = vmatprep.mubr.f32.mxu0 0.0
  %1611 = vmatmul.mubr.f32.gmra.mrb[0].mxu0 %v1541
  %v1612 = vpop.f32.mrb[0].mxu0
  %v1613 = vadd.f32 %v1537, %v1612
  %v1614 = vpop.f32.mrb[0].mxu0
  %1615 = vmatprep.mubr.f32.mxu0 0.0
  %1616 = vmatmul.mubr.f32.gmra.mrb[0].mxu0 %v1544
  %v1617 = vpop.f32.mrb[0].mxu0
  %v1618 = vadd.f32 %v1537, %v1617
  %v1619 = vpop.f32.mrb[0].mxu0
  %1620 = vdwg.mxu0
  %v1621 = vadd.f32 %v1412, %v1613
  %v1622 = vadd.f32 %v1413, %v1618
  %v1623 = vld [vmem:[%s31] sm:$0x1]
  %v1624 = vld [vmem:[%s33] sm:$0x1]
  %v1625 = vsel %vm263, %v1621, 0.0
  %1626 = vadd.xlane.f32.xlu0 %v1625
  %v1627 = vpop.xlane.xlu0 %1626
  %v1628 = vsel %vm263, %v1622, 0.0
  %1629 = vadd.xlane.f32.xlu0 %v1628
  %v1630 = vpop.xlane.xlu0 %1629
  %v1631 = vmul.f32 %v1627, %v270
  %v1632 = vmul.f32 %v1630, %v270
  %v1633 = vsub.f32 %v1621, %v1631
  %v1634 = vsub.f32 %v1622, %v1632
  %v1635 = vmul.f32 %v1633, %v1633
  %v1636 = vmul.f32 %v1634, %v1634
  %v1637 = vsel %vm263, %v1635, 0.0
  %1638 = vadd.xlane.f32.xlu0 %v1637
  %v1639 = vpop.xlane.xlu0 %1638
  %v1640 = vsel %vm263, %v1636, 0.0
  %1641 = vadd.xlane.f32.xlu0 %v1640
  %v1642 = vpop.xlane.xlu0 %1641
  %v1643 = vmul.f32 %v1639, %v270
  %v1644 = vmul.f32 %v1642, %v270
  %v1645 = vadd.f32 %v1643, 1e-12
  %v1646 = vadd.f32 %v1644, 1e-12
  %v1647 = vrsqrt.pop %v1645
  %v1648 = vrsqrt.pop %v1646
  %v1649 = vmul.f32 %v1633, %v1647
  %v1650 = vmul.f32 %v1634, %v1648
  %v1652 = vlaneseq
  %v1653 = vshrl.u32 %v1652, 7
  %v1654 = vsub.s32 0, %v1653
  %v1655 = vrot.slane %v1623, %v1654
  %v1657 = vmul.f32 %v1649, %v1655
  %v1658 = vmul.f32 %v1650, %v1655
  %v1660 = vlaneseq
  %v1661 = vshrl.u32 %v1660, 7
  %v1662 = vsub.s32 0, %v1661
  %v1663 = vrot.slane %v1624, %v1662
  %v1665 = vadd.f32 %v1657, %v1663
  %v1666 = vadd.f32 %v1658, %v1663
  %v1667 = vld [vmem:[%s35] sm:$0xff]
  %v1668 = vld [vmem:[%s35 + $0x8] sm:$0xff]
  %v1669 = vld [vmem:[%s35 + $0x10] sm:$0xff]
  %v1670 = vld [vmem:[%s35 + $0x18] sm:$0xff]
  %v1671 = vld [vmem:[%s37] sm:$0x1]
  %v1673 = vlaneseq
  %v1674 = vshrl.u32 %v1673, 7
  %v1675 = vsub.s32 0, %v1674
  %v1676 = vrot.slane %v1671, %v1675
  %v1679 = vsel %vm263, %v1665, 0
  %v1682 = vsel %vm263, %v1666, 0
  %1684 = vmatprep.subr.mxu0 0.0
  %1685 = vmatpush1.msra.mxu0 %v1667
  %1686 = vmatprep.subr.mxu0 0.0
  %1687 = vmatpush1.msra.mxu0 %v1668
  %1688 = vmatprep.subr.mxu0 0.0
  %1689 = vmatpush1.msra.mxu0 %v1669
  %1690 = vmatprep.subr.mxu0 0.0
  %1691 = vmatpush1.msra.mxu0 %v1670
  %1692 = vmatprep.subr.mxu0 0.0
  %1693 = vmatpush1.msra.mxu0 0.0
  %1694 = vmatprep.subr.mxu0 0.0
  %1695 = vmatpush1.msra.mxu0 0.0
  %1696 = vmatprep.subr.mxu0 0.0
  %1697 = vmatpush1.msra.mxu0 0.0
  %1698 = vmatprep.subr.mxu0 0.0
  %1699 = vmatpush1.msra.mxu0 0.0
  %1700 = vmatprep.subr.mxu0 0.0
  %1701 = vmatpush1.msra.mxu0 0.0
  %1702 = vmatprep.subr.mxu0 0.0
  %1703 = vmatpush1.msra.mxu0 0.0
  %1704 = vmatprep.subr.mxu0 0.0
  %1705 = vmatpush1.msra.mxu0 0.0
  %1706 = vmatprep.subr.mxu0 0.0
  %1707 = vmatpush1.msra.mxu0 0.0
  %1708 = vmatprep.subr.mxu0 0.0
  %1709 = vmatpush1.msra.mxu0 0.0
  %1710 = vmatprep.subr.mxu0 0.0
  %1711 = vmatpush1.msra.mxu0 0.0
  %1712 = vmatprep.subr.mxu0 0.0
  %1713 = vmatpush1.msra.mxu0 0.0
  %1714 = vmatprep.subr.mxu0 0.0
  %1715 = vmatpush1.msra.mxu0 0.0
  %1716 = vmatprep.subr.mxu0 0.0
  %1717 = vmatpush1.msra.mxu0 0.0
  %1718 = vmatprep.subr.mxu0 0.0
  %1719 = vmatpush1.msra.mxu0 0.0
  %1720 = vmatprep.subr.mxu0 0.0
  %1721 = vmatpush1.msra.mxu0 0.0
  %1722 = vmatprep.subr.mxu0 0.0
  %1723 = vmatpush1.msra.mxu0 0.0
  %1724 = vmatprep.subr.mxu0 0.0
  %1725 = vmatpush1.msra.mxu0 0.0
  %1726 = vmatprep.subr.mxu0 0.0
  %1727 = vmatpush1.msra.mxu0 0.0
  %1728 = vmatprep.subr.mxu0 0.0
  %1729 = vmatpush1.msra.mxu0 0.0
  %1730 = vmatprep.subr.mxu0 0.0
  %1731 = vmatpush1.msra.mxu0 0.0
  %1732 = vmatprep.subr.mxu0 0.0
  %1733 = vmatpush1.msra.mxu0 0.0
  %1734 = vmatprep.subr.mxu0 0.0
  %1735 = vmatpush1.msra.mxu0 0.0
  %1736 = vmatprep.subr.mxu0 0.0
  %1737 = vmatpush1.msra.mxu0 0.0
  %1738 = vmatprep.subr.mxu0 0.0
  %1739 = vmatpush1.msra.mxu0 0.0
  %1740 = vmatprep.subr.mxu0 0.0
  %1741 = vmatpush1.msra.mxu0 0.0
  %1742 = vmatprep.subr.mxu0 0.0
  %1743 = vmatpush1.msra.mxu0 0.0
  %1744 = vmatprep.subr.mxu0 0.0
  %1745 = vmatpush1.msra.mxu0 0.0
  %1746 = vmatprep.subr.mxu0 0.0
  %1747 = vmatpush1.msra.mxu0 0.0
  %1748 = vmatprep.mubr.f32.mxu0 0.0
  %1749 = vmatmul.mubr.f32.gmra.mrb[0].mxu0 %v1679
  %v1750 = vpop.f32.mrb[0].mxu0
  %v1751 = vadd.f32 %v1676, %v1750
  %v1752 = vpop.f32.mrb[0].mxu0
  %1753 = vmatprep.mubr.f32.mxu0 0.0
  %1754 = vmatmul.mubr.f32.gmra.mrb[0].mxu0 %v1682
  %v1755 = vpop.f32.mrb[0].mxu0
  %v1756 = vadd.f32 %v1676, %v1755
  %v1757 = vpop.f32.mrb[0].mxu0
  %1758 = vdwg.mxu0
  %1760 = vrot.lane.b32.xlu0 %v1751, 96
  %v1761 = vpop.permute.xlu0 %1760
  %v1762 = vsel %vm402, %v1751, 0
  %v1764 = vsel %vm402, %v1761, 0
  %1766 = vmatprep.subr.mxu0 0.0
  %1767 = vmatpush1.xpose.msra.mxu0 %v1764
  %1768 = vmatprep.subr.mxu0 0.0
  %1769 = vmatpush1.xpose.msra.mxu0 0.0
  %1770 = vmatprep.subr.mxu0 0.0
  %1771 = vmatpush1.xpose.msra.mxu0 0.0
  %1772 = vmatprep.subr.mxu0 0.0
  %1773 = vmatpush1.xpose.msra.mxu0 0.0
  %1774 = vmatprep.subr.mxu0 0.0
  %1775 = vmatpush1.xpose.msra.mxu0 0.0
  %1776 = vmatprep.subr.mxu0 0.0
  %1777 = vmatpush1.xpose.msra.mxu0 0.0
  %1778 = vmatprep.subr.mxu0 0.0
  %1779 = vmatpush1.xpose.msra.mxu0 0.0
  %1780 = vmatprep.subr.mxu0 0.0
  %1781 = vmatpush1.xpose.msra.mxu0 0.0
  %1782 = vmatprep.subr.mxu0 0.0
  %1783 = vmatpush1.xpose.msra.mxu0 0.0
  %1784 = vmatprep.subr.mxu0 0.0
  %1785 = vmatpush1.xpose.msra.mxu0 0.0
  %1786 = vmatprep.subr.mxu0 0.0
  %1787 = vmatpush1.xpose.msra.mxu0 0.0
  %1788 = vmatprep.subr.mxu0 0.0
  %1789 = vmatpush1.xpose.msra.mxu0 0.0
  %1790 = vmatprep.subr.mxu0 0.0
  %1791 = vmatpush1.xpose.msra.mxu0 0.0
  %1792 = vmatprep.subr.mxu0 0.0
  %1793 = vmatpush1.xpose.msra.mxu0 0.0
  %1794 = vmatprep.subr.mxu0 0.0
  %1795 = vmatpush1.xpose.msra.mxu0 0.0
  %1796 = vmatprep.subr.mxu0 0.0
  %1797 = vmatpush1.xpose.msra.mxu0 0.0
  %1798 = vmatprep.subr.mxu0 0.0
  %1799 = vmatpush1.xpose.msra.mxu0 0.0
  %1800 = vmatprep.subr.mxu0 0.0
  %1801 = vmatpush1.xpose.msra.mxu0 0.0
  %1802 = vmatprep.subr.mxu0 0.0
  %1803 = vmatpush1.xpose.msra.mxu0 0.0
  %1804 = vmatprep.subr.mxu0 0.0
  %1805 = vmatpush1.xpose.msra.mxu0 0.0
  %1806 = vmatprep.subr.mxu0 0.0
  %1807 = vmatpush1.xpose.msra.mxu0 0.0
  %1808 = vmatprep.subr.mxu0 0.0
  %1809 = vmatpush1.xpose.msra.mxu0 0.0
  %1810 = vmatprep.subr.mxu0 0.0
  %1811 = vmatpush1.xpose.msra.mxu0 0.0
  %1812 = vmatprep.subr.mxu0 0.0
  %1813 = vmatpush1.xpose.msra.mxu0 0.0
  %1814 = vmatprep.subr.mxu0 0.0
  %1815 = vmatpush1.xpose.msra.mxu0 0.0
  %1816 = vmatprep.subr.mxu0 0.0
  %1817 = vmatpush1.xpose.msra.mxu0 0.0
  %1818 = vmatprep.subr.mxu0 0.0
  %1819 = vmatpush1.xpose.msra.mxu0 0.0
  %1820 = vmatprep.subr.mxu0 0.0
  %1821 = vmatpush1.xpose.msra.mxu0 0.0
  %1822 = vmatprep.subr.mxu0 0.0
  %1823 = vmatpush1.xpose.msra.mxu0 0.0
  %1824 = vmatprep.subr.mxu0 0.0
  %1825 = vmatpush1.xpose.msra.mxu0 0.0
  %1826 = vmatprep.subr.mxu0 0.0
  %1827 = vmatpush1.xpose.msra.mxu0 0.0
  %1828 = vmatprep.subr.mxu0 0.0
  %1829 = vmatpush1.xpose.msra.mxu0 0.0
  %1830 = vmatprep.mubr.f32.mxu0 0.0
  %1831 = vmatmul.mubr.f32.gmra.mrb[0].mxu0 %v1762
  %v1832 = vpop.f32.mrb[0].mxu0
  %v1833 = vadd.f32 0.0, %v1832
  %v1834 = vpop.f32.mrb[0].mxu0
  %1835 = vdwg.mxu0
  %v1836 = vmul.f32 %v1833, 0.25
  %v1837 = vsel %vm478, %v1836, -inf
  %1838 = vmax.xlane.f32.xlu0 %v1837
  %v1839 = vpop.xlane.xlu0 %1838
  %v1840 = vsub.f32 %v1836, %v1839
  %v1841 = vmul.f32 %v1840, 1.442695
  %v1842 = vpow.pop %v1841
  %v1843 = vsel %vm478, %v1842, 0.0
  %1844 = vadd.xlane.f32.xlu0 %v1843
  %v1845 = vpop.xlane.xlu0 %1844
  %v1846 = vrcp.pop %v1845
  %v1847 = vmul.f32 %v1842, %v1846
  %1848 = vrot.lane.b32.xlu0 %v1751, 64
  %v1849 = vpop.permute.xlu0 %1848
  %v1852 = vsel %vm478, %v1847, 0
  %1854 = vmatprep.subr.mxu0 0.0
  %1855 = vmatpush1.msra.mxu0 %v1849
  %1856 = vmatprep.subr.mxu0 0.0
  %1857 = vmatpush1.msra.mxu0 0.0
  %1858 = vmatprep.subr.mxu0 0.0
  %1859 = vmatpush1.msra.mxu0 0.0
  %1860 = vmatprep.subr.mxu0 0.0
  %1861 = vmatpush1.msra.mxu0 0.0
  %1862 = vmatprep.subr.mxu0 0.0
  %1863 = vmatpush1.msra.mxu0 0.0
  %1864 = vmatprep.subr.mxu0 0.0
  %1865 = vmatpush1.msra.mxu0 0.0
  %1866 = vmatprep.subr.mxu0 0.0
  %1867 = vmatpush1.msra.mxu0 0.0
  %1868 = vmatprep.subr.mxu0 0.0
  %1869 = vmatpush1.msra.mxu0 0.0
  %1870 = vmatprep.subr.mxu0 0.0
  %1871 = vmatpush1.msra.mxu0 0.0
  %1872 = vmatprep.subr.mxu0 0.0
  %1873 = vmatpush1.msra.mxu0 0.0
  %1874 = vmatprep.subr.mxu0 0.0
  %1875 = vmatpush1.msra.mxu0 0.0
  %1876 = vmatprep.subr.mxu0 0.0
  %1877 = vmatpush1.msra.mxu0 0.0
  %1878 = vmatprep.subr.mxu0 0.0
  %1879 = vmatpush1.msra.mxu0 0.0
  %1880 = vmatprep.subr.mxu0 0.0
  %1881 = vmatpush1.msra.mxu0 0.0
  %1882 = vmatprep.subr.mxu0 0.0
  %1883 = vmatpush1.msra.mxu0 0.0
  %1884 = vmatprep.subr.mxu0 0.0
  %1885 = vmatpush1.msra.mxu0 0.0
  %1886 = vmatprep.subr.mxu0 0.0
  %1887 = vmatpush1.msra.mxu0 0.0
  %1888 = vmatprep.subr.mxu0 0.0
  %1889 = vmatpush1.msra.mxu0 0.0
  %1890 = vmatprep.subr.mxu0 0.0
  %1891 = vmatpush1.msra.mxu0 0.0
  %1892 = vmatprep.subr.mxu0 0.0
  %1893 = vmatpush1.msra.mxu0 0.0
  %1894 = vmatprep.subr.mxu0 0.0
  %1895 = vmatpush1.msra.mxu0 0.0
  %1896 = vmatprep.subr.mxu0 0.0
  %1897 = vmatpush1.msra.mxu0 0.0
  %1898 = vmatprep.subr.mxu0 0.0
  %1899 = vmatpush1.msra.mxu0 0.0
  %1900 = vmatprep.subr.mxu0 0.0
  %1901 = vmatpush1.msra.mxu0 0.0
  %1902 = vmatprep.subr.mxu0 0.0
  %1903 = vmatpush1.msra.mxu0 0.0
  %1904 = vmatprep.subr.mxu0 0.0
  %1905 = vmatpush1.msra.mxu0 0.0
  %1906 = vmatprep.subr.mxu0 0.0
  %1907 = vmatpush1.msra.mxu0 0.0
  %1908 = vmatprep.subr.mxu0 0.0
  %1909 = vmatpush1.msra.mxu0 0.0
  %1910 = vmatprep.subr.mxu0 0.0
  %1911 = vmatpush1.msra.mxu0 0.0
  %1912 = vmatprep.subr.mxu0 0.0
  %1913 = vmatpush1.msra.mxu0 0.0
  %1914 = vmatprep.subr.mxu0 0.0
  %1915 = vmatpush1.msra.mxu0 0.0
  %1916 = vmatprep.subr.mxu0 0.0
  %1917 = vmatpush1.msra.mxu0 0.0
  %1918 = vmatprep.mubr.f32.mxu0 0.0
  %1919 = vmatmul.mubr.f32.gmra.mrb[0].mxu0 %v1852
  %v1920 = vpop.f32.mrb[0].mxu0
  %v1921 = vadd.f32 0.0, %v1920
  %v1922 = vpop.f32.mrb[0].mxu0
  %1923 = vdwg.mxu0
  %v1924 = vld [vmem:[%s39] sm:$0xff]
  %v1925 = vld [vmem:[%s39 + $0x8] sm:$0xff]
  %1926 = vrot.lane.b32.xlu0 %v1751, 112
  %v1927 = vpop.permute.xlu0 %1926
  %1928 = vrot.lane.b32.xlu0 %v1751, 80
  %v1929 = vpop.permute.xlu0 %1928
  %v1930 = vsel %vm402, %v1927, 0
  %v1932 = vsel %vm402, %v1929, 0
  %1934 = vmatprep.subr.mxu0 0.0
  %1935 = vmatpush1.xpose.msra.mxu0 %v1932
  %1936 = vmatprep.subr.mxu0 0.0
  %1937 = vmatpush1.xpose.msra.mxu0 0.0
  %1938 = vmatprep.subr.mxu0 0.0
  %1939 = vmatpush1.xpose.msra.mxu0 0.0
  %1940 = vmatprep.subr.mxu0 0.0
  %1941 = vmatpush1.xpose.msra.mxu0 0.0
  %1942 = vmatprep.subr.mxu0 0.0
  %1943 = vmatpush1.xpose.msra.mxu0 0.0
  %1944 = vmatprep.subr.mxu0 0.0
  %1945 = vmatpush1.xpose.msra.mxu0 0.0
  %1946 = vmatprep.subr.mxu0 0.0
  %1947 = vmatpush1.xpose.msra.mxu0 0.0
  %1948 = vmatprep.subr.mxu0 0.0
  %1949 = vmatpush1.xpose.msra.mxu0 0.0
  %1950 = vmatprep.subr.mxu0 0.0
  %1951 = vmatpush1.xpose.msra.mxu0 0.0
  %1952 = vmatprep.subr.mxu0 0.0
  %1953 = vmatpush1.xpose.msra.mxu0 0.0
  %1954 = vmatprep.subr.mxu0 0.0
  %1955 = vmatpush1.xpose.msra.mxu0 0.0
  %1956 = vmatprep.subr.mxu0 0.0
  %1957 = vmatpush1.xpose.msra.mxu0 0.0
  %1958 = vmatprep.subr.mxu0 0.0
  %1959 = vmatpush1.xpose.msra.mxu0 0.0
  %1960 = vmatprep.subr.mxu0 0.0
  %1961 = vmatpush1.xpose.msra.mxu0 0.0
  %1962 = vmatprep.subr.mxu0 0.0
  %1963 = vmatpush1.xpose.msra.mxu0 0.0
  %1964 = vmatprep.subr.mxu0 0.0
  %1965 = vmatpush1.xpose.msra.mxu0 0.0
  %1966 = vmatprep.subr.mxu0 0.0
  %1967 = vmatpush1.xpose.msra.mxu0 0.0
  %1968 = vmatprep.subr.mxu0 0.0
  %1969 = vmatpush1.xpose.msra.mxu0 0.0
  %1970 = vmatprep.subr.mxu0 0.0
  %1971 = vmatpush1.xpose.msra.mxu0 0.0
  %1972 = vmatprep.subr.mxu0 0.0
  %1973 = vmatpush1.xpose.msra.mxu0 0.0
  %1974 = vmatprep.subr.mxu0 0.0
  %1975 = vmatpush1.xpose.msra.mxu0 0.0
  %1976 = vmatprep.subr.mxu0 0.0
  %1977 = vmatpush1.xpose.msra.mxu0 0.0
  %1978 = vmatprep.subr.mxu0 0.0
  %1979 = vmatpush1.xpose.msra.mxu0 0.0
  %1980 = vmatprep.subr.mxu0 0.0
  %1981 = vmatpush1.xpose.msra.mxu0 0.0
  %1982 = vmatprep.subr.mxu0 0.0
  %1983 = vmatpush1.xpose.msra.mxu0 0.0
  %1984 = vmatprep.subr.mxu0 0.0
  %1985 = vmatpush1.xpose.msra.mxu0 0.0
  %1986 = vmatprep.subr.mxu0 0.0
  %1987 = vmatpush1.xpose.msra.mxu0 0.0
  %1988 = vmatprep.subr.mxu0 0.0
  %1989 = vmatpush1.xpose.msra.mxu0 0.0
  %1990 = vmatprep.subr.mxu0 0.0
  %1991 = vmatpush1.xpose.msra.mxu0 0.0
  %1992 = vmatprep.subr.mxu0 0.0
  %1993 = vmatpush1.xpose.msra.mxu0 0.0
  %1994 = vmatprep.subr.mxu0 0.0
  %1995 = vmatpush1.xpose.msra.mxu0 0.0
  %1996 = vmatprep.subr.mxu0 0.0
  %1997 = vmatpush1.xpose.msra.mxu0 0.0
  %1998 = vmatprep.mubr.f32.mxu0 0.0
  %1999 = vmatmul.mubr.f32.gmra.mrb[0].mxu0 %v1930
  %v2000 = vpop.f32.mrb[0].mxu0
  %v2001 = vadd.f32 0.0, %v2000
  %v2002 = vpop.f32.mrb[0].mxu0
  %2003 = vdwg.mxu0
  %v2004 = vmul.f32 %v2001, 0.25
  %v2005 = vsel %vm478, %v2004, -inf
  %2006 = vmax.xlane.f32.xlu0 %v2005
  %v2007 = vpop.xlane.xlu0 %2006
  %v2008 = vsub.f32 %v2004, %v2007
  %v2009 = vmul.f32 %v2008, 1.442695
  %v2010 = vpow.pop %v2009
  %v2011 = vsel %vm478, %v2010, 0.0
  %2012 = vadd.xlane.f32.xlu0 %v2011
  %v2013 = vpop.xlane.xlu0 %2012
  %v2014 = vrcp.pop %v2013
  %v2015 = vmul.f32 %v2010, %v2014
  %2016 = vrot.lane.b32.xlu0 %v1751, 48
  %v2017 = vpop.permute.xlu0 %2016
  %v2020 = vsel %vm478, %v2015, 0
  %2022 = vmatprep.subr.mxu0 0.0
  %2023 = vmatpush1.msra.mxu0 %v2017
  %2024 = vmatprep.subr.mxu0 0.0
  %2025 = vmatpush1.msra.mxu0 0.0
  %2026 = vmatprep.subr.mxu0 0.0
  %2027 = vmatpush1.msra.mxu0 0.0
  %2028 = vmatprep.subr.mxu0 0.0
  %2029 = vmatpush1.msra.mxu0 0.0
  %2030 = vmatprep.subr.mxu0 0.0
  %2031 = vmatpush1.msra.mxu0 0.0
  %2032 = vmatprep.subr.mxu0 0.0
  %2033 = vmatpush1.msra.mxu0 0.0
  %2034 = vmatprep.subr.mxu0 0.0
  %2035 = vmatpush1.msra.mxu0 0.0
  %2036 = vmatprep.subr.mxu0 0.0
  %2037 = vmatpush1.msra.mxu0 0.0
  %2038 = vmatprep.subr.mxu0 0.0
  %2039 = vmatpush1.msra.mxu0 0.0
  %2040 = vmatprep.subr.mxu0 0.0
  %2041 = vmatpush1.msra.mxu0 0.0
  %2042 = vmatprep.subr.mxu0 0.0
  %2043 = vmatpush1.msra.mxu0 0.0
  %2044 = vmatprep.subr.mxu0 0.0
  %2045 = vmatpush1.msra.mxu0 0.0
  %2046 = vmatprep.subr.mxu0 0.0
  %2047 = vmatpush1.msra.mxu0 0.0
  %2048 = vmatprep.subr.mxu0 0.0
  %2049 = vmatpush1.msra.mxu0 0.0
  %2050 = vmatprep.subr.mxu0 0.0
  %2051 = vmatpush1.msra.mxu0 0.0
  %2052 = vmatprep.subr.mxu0 0.0
  %2053 = vmatpush1.msra.mxu0 0.0
  %2054 = vmatprep.subr.mxu0 0.0
  %2055 = vmatpush1.msra.mxu0 0.0
  %2056 = vmatprep.subr.mxu0 0.0
  %2057 = vmatpush1.msra.mxu0 0.0
  %2058 = vmatprep.subr.mxu0 0.0
  %2059 = vmatpush1.msra.mxu0 0.0
  %2060 = vmatprep.subr.mxu0 0.0
  %2061 = vmatpush1.msra.mxu0 0.0
  %2062 = vmatprep.subr.mxu0 0.0
  %2063 = vmatpush1.msra.mxu0 0.0
  %2064 = vmatprep.subr.mxu0 0.0
  %2065 = vmatpush1.msra.mxu0 0.0
  %2066 = vmatprep.subr.mxu0 0.0
  %2067 = vmatpush1.msra.mxu0 0.0
  %2068 = vmatprep.subr.mxu0 0.0
  %2069 = vmatpush1.msra.mxu0 0.0
  %2070 = vmatprep.subr.mxu0 0.0
  %2071 = vmatpush1.msra.mxu0 0.0
  %2072 = vmatprep.subr.mxu0 0.0
  %2073 = vmatpush1.msra.mxu0 0.0
  %2074 = vmatprep.subr.mxu0 0.0
  %2075 = vmatpush1.msra.mxu0 0.0
  %2076 = vmatprep.subr.mxu0 0.0
  %2077 = vmatpush1.msra.mxu0 0.0
  %2078 = vmatprep.subr.mxu0 0.0
  %2079 = vmatpush1.msra.mxu0 0.0
  %2080 = vmatprep.subr.mxu0 0.0
  %2081 = vmatpush1.msra.mxu0 0.0
  %2082 = vmatprep.subr.mxu0 0.0
  %2083 = vmatpush1.msra.mxu0 0.0
  %2084 = vmatprep.subr.mxu0 0.0
  %2085 = vmatpush1.msra.mxu0 0.0
  %2086 = vmatprep.mubr.f32.mxu0 0.0
  %2087 = vmatmul.mubr.f32.gmra.mrb[0].mxu0 %v2020
  %v2088 = vpop.f32.mrb[0].mxu0
  %v2089 = vadd.f32 0.0, %v2088
  %v2090 = vpop.f32.mrb[0].mxu0
  %2091 = vdwg.mxu0
  %v2092 = vld [vmem:[%s39 + $0x10] sm:$0xff]
  %v2093 = vld [vmem:[%s39 + $0x18] sm:$0xff]
  %v2095 = vsel %vm402, %v2089, 0
  %2097 = vmatprep.subr.mxu0 0.0
  %2098 = vmatpush1.msra.mxu0 %v2092
  %2099 = vmatprep.subr.mxu0 0.0
  %2100 = vmatpush1.msra.mxu0 %v2093
  %2101 = vmatprep.subr.mxu0 0.0
  %2102 = vmatpush1.msra.mxu0 0.0
  %2103 = vmatprep.subr.mxu0 0.0
  %2104 = vmatpush1.msra.mxu0 0.0
  %2105 = vmatprep.subr.mxu0 0.0
  %2106 = vmatpush1.msra.mxu0 0.0
  %2107 = vmatprep.subr.mxu0 0.0
  %2108 = vmatpush1.msra.mxu0 0.0
  %2109 = vmatprep.subr.mxu0 0.0
  %2110 = vmatpush1.msra.mxu0 0.0
  %2111 = vmatprep.subr.mxu0 0.0
  %2112 = vmatpush1.msra.mxu0 0.0
  %2113 = vmatprep.subr.mxu0 0.0
  %2114 = vmatpush1.msra.mxu0 0.0
  %2115 = vmatprep.subr.mxu0 0.0
  %2116 = vmatpush1.msra.mxu0 0.0
  %2117 = vmatprep.subr.mxu0 0.0
  %2118 = vmatpush1.msra.mxu0 0.0
  %2119 = vmatprep.subr.mxu0 0.0
  %2120 = vmatpush1.msra.mxu0 0.0
  %2121 = vmatprep.subr.mxu0 0.0
  %2122 = vmatpush1.msra.mxu0 0.0
  %2123 = vmatprep.subr.mxu0 0.0
  %2124 = vmatpush1.msra.mxu0 0.0
  %2125 = vmatprep.subr.mxu0 0.0
  %2126 = vmatpush1.msra.mxu0 0.0
  %2127 = vmatprep.subr.mxu0 0.0
  %2128 = vmatpush1.msra.mxu0 0.0
  %2129 = vmatprep.subr.mxu0 0.0
  %2130 = vmatpush1.msra.mxu0 0.0
  %2131 = vmatprep.subr.mxu0 0.0
  %2132 = vmatpush1.msra.mxu0 0.0
  %2133 = vmatprep.subr.mxu0 0.0
  %2134 = vmatpush1.msra.mxu0 0.0
  %2135 = vmatprep.subr.mxu0 0.0
  %2136 = vmatpush1.msra.mxu0 0.0
  %2137 = vmatprep.subr.mxu0 0.0
  %2138 = vmatpush1.msra.mxu0 0.0
  %2139 = vmatprep.subr.mxu0 0.0
  %2140 = vmatpush1.msra.mxu0 0.0
  %2141 = vmatprep.subr.mxu0 0.0
  %2142 = vmatpush1.msra.mxu0 0.0
  %2143 = vmatprep.subr.mxu0 0.0
  %2144 = vmatpush1.msra.mxu0 0.0
  %2145 = vmatprep.subr.mxu0 0.0
  %2146 = vmatpush1.msra.mxu0 0.0
  %2147 = vmatprep.subr.mxu0 0.0
  %2148 = vmatpush1.msra.mxu0 0.0
  %2149 = vmatprep.subr.mxu0 0.0
  %2150 = vmatpush1.msra.mxu0 0.0
  %2151 = vmatprep.subr.mxu0 0.0
  %2152 = vmatpush1.msra.mxu0 0.0
  %2153 = vmatprep.subr.mxu0 0.0
  %2154 = vmatpush1.msra.mxu0 0.0
  %2155 = vmatprep.subr.mxu0 0.0
  %2156 = vmatpush1.msra.mxu0 0.0
  %2157 = vmatprep.subr.mxu0 0.0
  %2158 = vmatpush1.msra.mxu0 0.0
  %2159 = vmatprep.subr.mxu0 0.0
  %2160 = vmatpush1.msra.mxu0 0.0
  %2161 = vmatprep.mubr.f32.mxu0 0.0
  %2162 = vmatmul.mubr.f32.gmra.mrb[0].mxu0 %v2095
  %v2163 = vpop.f32.mrb[0].mxu0
  %v2164 = vadd.f32 0.0, %v2163
  %v2165 = vpop.f32.mrb[0].mxu0
  %2166 = vdwg.mxu0
  %v2168 = vsel %vm402, %v1921, 0
  %2170 = vmatprep.subr.mxu0 0.0
  %2171 = vmatpush1.msra.mxu0 %v1924
  %2172 = vmatprep.subr.mxu0 0.0
  %2173 = vmatpush1.msra.mxu0 %v1925
  %2174 = vmatprep.subr.mxu0 0.0
  %2175 = vmatpush1.msra.mxu0 0.0
  %2176 = vmatprep.subr.mxu0 0.0
  %2177 = vmatpush1.msra.mxu0 0.0
  %2178 = vmatprep.subr.mxu0 0.0
  %2179 = vmatpush1.msra.mxu0 0.0
  %2180 = vmatprep.subr.mxu0 0.0
  %2181 = vmatpush1.msra.mxu0 0.0
  %2182 = vmatprep.subr.mxu0 0.0
  %2183 = vmatpush1.msra.mxu0 0.0
  %2184 = vmatprep.subr.mxu0 0.0
  %2185 = vmatpush1.msra.mxu0 0.0
  %2186 = vmatprep.subr.mxu0 0.0
  %2187 = vmatpush1.msra.mxu0 0.0
  %2188 = vmatprep.subr.mxu0 0.0
  %2189 = vmatpush1.msra.mxu0 0.0
  %2190 = vmatprep.subr.mxu0 0.0
  %2191 = vmatpush1.msra.mxu0 0.0
  %2192 = vmatprep.subr.mxu0 0.0
  %2193 = vmatpush1.msra.mxu0 0.0
  %2194 = vmatprep.subr.mxu0 0.0
  %2195 = vmatpush1.msra.mxu0 0.0
  %2196 = vmatprep.subr.mxu0 0.0
  %2197 = vmatpush1.msra.mxu0 0.0
  %2198 = vmatprep.subr.mxu0 0.0
  %2199 = vmatpush1.msra.mxu0 0.0
  %2200 = vmatprep.subr.mxu0 0.0
  %2201 = vmatpush1.msra.mxu0 0.0
  %2202 = vmatprep.subr.mxu0 0.0
  %2203 = vmatpush1.msra.mxu0 0.0
  %2204 = vmatprep.subr.mxu0 0.0
  %2205 = vmatpush1.msra.mxu0 0.0
  %2206 = vmatprep.subr.mxu0 0.0
  %2207 = vmatpush1.msra.mxu0 0.0
  %2208 = vmatprep.subr.mxu0 0.0
  %2209 = vmatpush1.msra.mxu0 0.0
  %2210 = vmatprep.subr.mxu0 0.0
  %2211 = vmatpush1.msra.mxu0 0.0
  %2212 = vmatprep.subr.mxu0 0.0
  %2213 = vmatpush1.msra.mxu0 0.0
  %2214 = vmatprep.subr.mxu0 0.0
  %2215 = vmatpush1.msra.mxu0 0.0
  %2216 = vmatprep.subr.mxu0 0.0
  %2217 = vmatpush1.msra.mxu0 0.0
  %2218 = vmatprep.subr.mxu0 0.0
  %2219 = vmatpush1.msra.mxu0 0.0
  %2220 = vmatprep.subr.mxu0 0.0
  %2221 = vmatpush1.msra.mxu0 0.0
  %2222 = vmatprep.subr.mxu0 0.0
  %2223 = vmatpush1.msra.mxu0 0.0
  %2224 = vmatprep.subr.mxu0 0.0
  %2225 = vmatpush1.msra.mxu0 0.0
  %2226 = vmatprep.subr.mxu0 0.0
  %2227 = vmatpush1.msra.mxu0 0.0
  %2228 = vmatprep.subr.mxu0 0.0
  %2229 = vmatpush1.msra.mxu0 0.0
  %2230 = vmatprep.subr.mxu0 0.0
  %2231 = vmatpush1.msra.mxu0 0.0
  %2232 = vmatprep.subr.mxu0 0.0
  %2233 = vmatpush1.msra.mxu0 0.0
  %2234 = vmatprep.mubr.f32.mxu0 0.0
  %2235 = vmatmul.mubr.f32.gmra.mrb[0].mxu0 %v2168
  %v2236 = vpop.f32.mrb[0].mxu0
  %v2237 = vadd.f32 %v2164, %v2236
  %v2238 = vpop.f32.mrb[0].mxu0
  %2239 = vdwg.mxu0
  %2241 = vrot.lane.b32.xlu0 %v1756, 96
  %v2242 = vpop.permute.xlu0 %2241
  %v2243 = vsel %vm402, %v1756, 0
  %v2245 = vsel %vm402, %v2242, 0
  %2247 = vmatprep.subr.mxu0 0.0
  %2248 = vmatpush1.xpose.msra.mxu0 %v2245
  %2249 = vmatprep.subr.mxu0 0.0
  %2250 = vmatpush1.xpose.msra.mxu0 0.0
  %2251 = vmatprep.subr.mxu0 0.0
  %2252 = vmatpush1.xpose.msra.mxu0 0.0
  %2253 = vmatprep.subr.mxu0 0.0
  %2254 = vmatpush1.xpose.msra.mxu0 0.0
  %2255 = vmatprep.subr.mxu0 0.0
  %2256 = vmatpush1.xpose.msra.mxu0 0.0
  %2257 = vmatprep.subr.mxu0 0.0
  %2258 = vmatpush1.xpose.msra.mxu0 0.0
  %2259 = vmatprep.subr.mxu0 0.0
  %2260 = vmatpush1.xpose.msra.mxu0 0.0
  %2261 = vmatprep.subr.mxu0 0.0
  %2262 = vmatpush1.xpose.msra.mxu0 0.0
  %2263 = vmatprep.subr.mxu0 0.0
  %2264 = vmatpush1.xpose.msra.mxu0 0.0
  %2265 = vmatprep.subr.mxu0 0.0
  %2266 = vmatpush1.xpose.msra.mxu0 0.0
  %2267 = vmatprep.subr.mxu0 0.0
  %2268 = vmatpush1.xpose.msra.mxu0 0.0
  %2269 = vmatprep.subr.mxu0 0.0
  %2270 = vmatpush1.xpose.msra.mxu0 0.0
  %2271 = vmatprep.subr.mxu0 0.0
  %2272 = vmatpush1.xpose.msra.mxu0 0.0
  %2273 = vmatprep.subr.mxu0 0.0
  %2274 = vmatpush1.xpose.msra.mxu0 0.0
  %2275 = vmatprep.subr.mxu0 0.0
  %2276 = vmatpush1.xpose.msra.mxu0 0.0
  %2277 = vmatprep.subr.mxu0 0.0
  %2278 = vmatpush1.xpose.msra.mxu0 0.0
  %2279 = vmatprep.subr.mxu0 0.0
  %2280 = vmatpush1.xpose.msra.mxu0 0.0
  %2281 = vmatprep.subr.mxu0 0.0
  %2282 = vmatpush1.xpose.msra.mxu0 0.0
  %2283 = vmatprep.subr.mxu0 0.0
  %2284 = vmatpush1.xpose.msra.mxu0 0.0
  %2285 = vmatprep.subr.mxu0 0.0
  %2286 = vmatpush1.xpose.msra.mxu0 0.0
  %2287 = vmatprep.subr.mxu0 0.0
  %2288 = vmatpush1.xpose.msra.mxu0 0.0
  %2289 = vmatprep.subr.mxu0 0.0
  %2290 = vmatpush1.xpose.msra.mxu0 0.0
  %2291 = vmatprep.subr.mxu0 0.0
  %2292 = vmatpush1.xpose.msra.mxu0 0.0
  %2293 = vmatprep.subr.mxu0 0.0
  %2294 = vmatpush1.xpose.msra.mxu0 0.0
  %2295 = vmatprep.subr.mxu0 0.0
  %2296 = vmatpush1.xpose.msra.mxu0 0.0
  %2297 = vmatprep.subr.mxu0 0.0
  %2298 = vmatpush1.xpose.msra.mxu0 0.0
  %2299 = vmatprep.subr.mxu0 0.0
  %2300 = vmatpush1.xpose.msra.mxu0 0.0
  %2301 = vmatprep.subr.mxu0 0.0
  %2302 = vmatpush1.xpose.msra.mxu0 0.0
  %2303 = vmatprep.subr.mxu0 0.0
  %2304 = vmatpush1.xpose.msra.mxu0 0.0
  %2305 = vmatprep.subr.mxu0 0.0
  %2306 = vmatpush1.xpose.msra.mxu0 0.0
  %2307 = vmatprep.subr.mxu0 0.0
  %2308 = vmatpush1.xpose.msra.mxu0 0.0
  %2309 = vmatprep.subr.mxu0 0.0
  %2310 = vmatpush1.xpose.msra.mxu0 0.0
  %2311 = vmatprep.mubr.f32.mxu0 0.0
  %2312 = vmatmul.mubr.f32.gmra.mrb[0].mxu0 %v2243
  %v2313 = vpop.f32.mrb[0].mxu0
  %v2314 = vadd.f32 0.0, %v2313
  %v2315 = vpop.f32.mrb[0].mxu0
  %2316 = vdwg.mxu0
  %v2317 = vmul.f32 %v2314, 0.25
  %v2318 = vsel %vm478, %v2317, -inf
  %2319 = vmax.xlane.f32.xlu0 %v2318
  %v2320 = vpop.xlane.xlu0 %2319
  %v2321 = vsub.f32 %v2317, %v2320
  %v2322 = vmul.f32 %v2321, 1.442695
  %v2323 = vpow.pop %v2322
  %v2324 = vsel %vm478, %v2323, 0.0
  %2325 = vadd.xlane.f32.xlu0 %v2324
  %v2326 = vpop.xlane.xlu0 %2325
  %v2327 = vrcp.pop %v2326
  %v2328 = vmul.f32 %v2323, %v2327
  %2329 = vrot.lane.b32.xlu0 %v1756, 64
  %v2330 = vpop.permute.xlu0 %2329
  %v2333 = vsel %vm478, %v2328, 0
  %2335 = vmatprep.subr.mxu0 0.0
  %2336 = vmatpush1.msra.mxu0 %v2330
  %2337 = vmatprep.subr.mxu0 0.0
  %2338 = vmatpush1.msra.mxu0 0.0
  %2339 = vmatprep.subr.mxu0 0.0
  %2340 = vmatpush1.msra.mxu0 0.0
  %2341 = vmatprep.subr.mxu0 0.0
  %2342 = vmatpush1.msra.mxu0 0.0
  %2343 = vmatprep.subr.mxu0 0.0
  %2344 = vmatpush1.msra.mxu0 0.0
  %2345 = vmatprep.subr.mxu0 0.0
  %2346 = vmatpush1.msra.mxu0 0.0
  %2347 = vmatprep.subr.mxu0 0.0
  %2348 = vmatpush1.msra.mxu0 0.0
  %2349 = vmatprep.subr.mxu0 0.0
  %2350 = vmatpush1.msra.mxu0 0.0
  %2351 = vmatprep.subr.mxu0 0.0
  %2352 = vmatpush1.msra.mxu0 0.0
  %2353 = vmatprep.subr.mxu0 0.0
  %2354 = vmatpush1.msra.mxu0 0.0
  %2355 = vmatprep.subr.mxu0 0.0
  %2356 = vmatpush1.msra.mxu0 0.0
  %2357 = vmatprep.subr.mxu0 0.0
  %2358 = vmatpush1.msra.mxu0 0.0
  %2359 = vmatprep.subr.mxu0 0.0
  %2360 = vmatpush1.msra.mxu0 0.0
  %2361 = vmatprep.subr.mxu0 0.0
  %2362 = vmatpush1.msra.mxu0 0.0
  %2363 = vmatprep.subr.mxu0 0.0
  %2364 = vmatpush1.msra.mxu0 0.0
  %2365 = vmatprep.subr.mxu0 0.0
  %2366 = vmatpush1.msra.mxu0 0.0
  %2367 = vmatprep.subr.mxu0 0.0
  %2368 = vmatpush1.msra.mxu0 0.0
  %2369 = vmatprep.subr.mxu0 0.0
  %2370 = vmatpush1.msra.mxu0 0.0
  %2371 = vmatprep.subr.mxu0 0.0
  %2372 = vmatpush1.msra.mxu0 0.0
  %2373 = vmatprep.subr.mxu0 0.0
  %2374 = vmatpush1.msra.mxu0 0.0
  %2375 = vmatprep.subr.mxu0 0.0
  %2376 = vmatpush1.msra.mxu0 0.0
  %2377 = vmatprep.subr.mxu0 0.0
  %2378 = vmatpush1.msra.mxu0 0.0
  %2379 = vmatprep.subr.mxu0 0.0
  %2380 = vmatpush1.msra.mxu0 0.0
  %2381 = vmatprep.subr.mxu0 0.0
  %2382 = vmatpush1.msra.mxu0 0.0
  %2383 = vmatprep.subr.mxu0 0.0
  %2384 = vmatpush1.msra.mxu0 0.0
  %2385 = vmatprep.subr.mxu0 0.0
  %2386 = vmatpush1.msra.mxu0 0.0
  %2387 = vmatprep.subr.mxu0 0.0
  %2388 = vmatpush1.msra.mxu0 0.0
  %2389 = vmatprep.subr.mxu0 0.0
  %2390 = vmatpush1.msra.mxu0 0.0
  %2391 = vmatprep.subr.mxu0 0.0
  %2392 = vmatpush1.msra.mxu0 0.0
  %2393 = vmatprep.subr.mxu0 0.0
  %2394 = vmatpush1.msra.mxu0 0.0
  %2395 = vmatprep.subr.mxu0 0.0
  %2396 = vmatpush1.msra.mxu0 0.0
  %2397 = vmatprep.subr.mxu0 0.0
  %2398 = vmatpush1.msra.mxu0 0.0
  %2399 = vmatprep.mubr.f32.mxu0 0.0
  %2400 = vmatmul.mubr.f32.gmra.mrb[0].mxu0 %v2333
  %v2401 = vpop.f32.mrb[0].mxu0
  %v2402 = vadd.f32 0.0, %v2401
  %v2403 = vpop.f32.mrb[0].mxu0
  %2404 = vdwg.mxu0
  %2405 = vrot.lane.b32.xlu0 %v1756, 112
  %v2406 = vpop.permute.xlu0 %2405
  %2407 = vrot.lane.b32.xlu0 %v1756, 80
  %v2408 = vpop.permute.xlu0 %2407
  %v2409 = vsel %vm402, %v2406, 0
  %v2411 = vsel %vm402, %v2408, 0
  %2413 = vmatprep.subr.mxu0 0.0
  %2414 = vmatpush1.xpose.msra.mxu0 %v2411
  %2415 = vmatprep.subr.mxu0 0.0
  %2416 = vmatpush1.xpose.msra.mxu0 0.0
  %2417 = vmatprep.subr.mxu0 0.0
  %2418 = vmatpush1.xpose.msra.mxu0 0.0
  %2419 = vmatprep.subr.mxu0 0.0
  %2420 = vmatpush1.xpose.msra.mxu0 0.0
  %2421 = vmatprep.subr.mxu0 0.0
  %2422 = vmatpush1.xpose.msra.mxu0 0.0
  %2423 = vmatprep.subr.mxu0 0.0
  %2424 = vmatpush1.xpose.msra.mxu0 0.0
  %2425 = vmatprep.subr.mxu0 0.0
  %2426 = vmatpush1.xpose.msra.mxu0 0.0
  %2427 = vmatprep.subr.mxu0 0.0
  %2428 = vmatpush1.xpose.msra.mxu0 0.0
  %2429 = vmatprep.subr.mxu0 0.0
  %2430 = vmatpush1.xpose.msra.mxu0 0.0
  %2431 = vmatprep.subr.mxu0 0.0
  %2432 = vmatpush1.xpose.msra.mxu0 0.0
  %2433 = vmatprep.subr.mxu0 0.0
  %2434 = vmatpush1.xpose.msra.mxu0 0.0
  %2435 = vmatprep.subr.mxu0 0.0
  %2436 = vmatpush1.xpose.msra.mxu0 0.0
  %2437 = vmatprep.subr.mxu0 0.0
  %2438 = vmatpush1.xpose.msra.mxu0 0.0
  %2439 = vmatprep.subr.mxu0 0.0
  %2440 = vmatpush1.xpose.msra.mxu0 0.0
  %2441 = vmatprep.subr.mxu0 0.0
  %2442 = vmatpush1.xpose.msra.mxu0 0.0
  %2443 = vmatprep.subr.mxu0 0.0
  %2444 = vmatpush1.xpose.msra.mxu0 0.0
  %2445 = vmatprep.subr.mxu0 0.0
  %2446 = vmatpush1.xpose.msra.mxu0 0.0
  %2447 = vmatprep.subr.mxu0 0.0
  %2448 = vmatpush1.xpose.msra.mxu0 0.0
  %2449 = vmatprep.subr.mxu0 0.0
  %2450 = vmatpush1.xpose.msra.mxu0 0.0
  %2451 = vmatprep.subr.mxu0 0.0
  %2452 = vmatpush1.xpose.msra.mxu0 0.0
  %2453 = vmatprep.subr.mxu0 0.0
  %2454 = vmatpush1.xpose.msra.mxu0 0.0
  %2455 = vmatprep.subr.mxu0 0.0
  %2456 = vmatpush1.xpose.msra.mxu0 0.0
  %2457 = vmatprep.subr.mxu0 0.0
  %2458 = vmatpush1.xpose.msra.mxu0 0.0
  %2459 = vmatprep.subr.mxu0 0.0
  %2460 = vmatpush1.xpose.msra.mxu0 0.0
  %2461 = vmatprep.subr.mxu0 0.0
  %2462 = vmatpush1.xpose.msra.mxu0 0.0
  %2463 = vmatprep.subr.mxu0 0.0
  %2464 = vmatpush1.xpose.msra.mxu0 0.0
  %2465 = vmatprep.subr.mxu0 0.0
  %2466 = vmatpush1.xpose.msra.mxu0 0.0
  %2467 = vmatprep.subr.mxu0 0.0
  %2468 = vmatpush1.xpose.msra.mxu0 0.0
  %2469 = vmatprep.subr.mxu0 0.0
  %2470 = vmatpush1.xpose.msra.mxu0 0.0
  %2471 = vmatprep.subr.mxu0 0.0
  %2472 = vmatpush1.xpose.msra.mxu0 0.0
  %2473 = vmatprep.subr.mxu0 0.0
  %2474 = vmatpush1.xpose.msra.mxu0 0.0
  %2475 = vmatprep.subr.mxu0 0.0
  %2476 = vmatpush1.xpose.msra.mxu0 0.0
  %2477 = vmatprep.mubr.f32.mxu0 0.0
  %2478 = vmatmul.mubr.f32.gmra.mrb[0].mxu0 %v2409
  %v2479 = vpop.f32.mrb[0].mxu0
  %v2480 = vadd.f32 0.0, %v2479
  %v2481 = vpop.f32.mrb[0].mxu0
  %2482 = vdwg.mxu0
  %v2483 = vmul.f32 %v2480, 0.25
  %v2484 = vsel %vm478, %v2483, -inf
  %2485 = vmax.xlane.f32.xlu0 %v2484
  %v2486 = vpop.xlane.xlu0 %2485
  %v2487 = vsub.f32 %v2483, %v2486
  %v2488 = vmul.f32 %v2487, 1.442695
  %v2489 = vpow.pop %v2488
  %v2490 = vsel %vm478, %v2489, 0.0
  %2491 = vadd.xlane.f32.xlu0 %v2490
  %v2492 = vpop.xlane.xlu0 %2491
  %v2493 = vrcp.pop %v2492
  %v2494 = vmul.f32 %v2489, %v2493
  %2495 = vrot.lane.b32.xlu0 %v1756, 48
  %v2496 = vpop.permute.xlu0 %2495
  %v2499 = vsel %vm478, %v2494, 0
  %2501 = vmatprep.subr.mxu0 0.0
  %2502 = vmatpush1.msra.mxu0 %v2496
  %2503 = vmatprep.subr.mxu0 0.0
  %2504 = vmatpush1.msra.mxu0 0.0
  %2505 = vmatprep.subr.mxu0 0.0
  %2506 = vmatpush1.msra.mxu0 0.0
  %2507 = vmatprep.subr.mxu0 0.0
  %2508 = vmatpush1.msra.mxu0 0.0
  %2509 = vmatprep.subr.mxu0 0.0
  %2510 = vmatpush1.msra.mxu0 0.0
  %2511 = vmatprep.subr.mxu0 0.0
  %2512 = vmatpush1.msra.mxu0 0.0
  %2513 = vmatprep.subr.mxu0 0.0
  %2514 = vmatpush1.msra.mxu0 0.0
  %2515 = vmatprep.subr.mxu0 0.0
  %2516 = vmatpush1.msra.mxu0 0.0
  %2517 = vmatprep.subr.mxu0 0.0
  %2518 = vmatpush1.msra.mxu0 0.0
  %2519 = vmatprep.subr.mxu0 0.0
  %2520 = vmatpush1.msra.mxu0 0.0
  %2521 = vmatprep.subr.mxu0 0.0
  %2522 = vmatpush1.msra.mxu0 0.0
  %2523 = vmatprep.subr.mxu0 0.0
  %2524 = vmatpush1.msra.mxu0 0.0
  %2525 = vmatprep.subr.mxu0 0.0
  %2526 = vmatpush1.msra.mxu0 0.0
  %2527 = vmatprep.subr.mxu0 0.0
  %2528 = vmatpush1.msra.mxu0 0.0
  %2529 = vmatprep.subr.mxu0 0.0
  %2530 = vmatpush1.msra.mxu0 0.0
  %2531 = vmatprep.subr.mxu0 0.0
  %2532 = vmatpush1.msra.mxu0 0.0
  %2533 = vmatprep.subr.mxu0 0.0
  %2534 = vmatpush1.msra.mxu0 0.0
  %2535 = vmatprep.subr.mxu0 0.0
  %2536 = vmatpush1.msra.mxu0 0.0
  %2537 = vmatprep.subr.mxu0 0.0
  %2538 = vmatpush1.msra.mxu0 0.0
  %2539 = vmatprep.subr.mxu0 0.0
  %2540 = vmatpush1.msra.mxu0 0.0
  %2541 = vmatprep.subr.mxu0 0.0
  %2542 = vmatpush1.msra.mxu0 0.0
  %2543 = vmatprep.subr.mxu0 0.0
  %2544 = vmatpush1.msra.mxu0 0.0
  %2545 = vmatprep.subr.mxu0 0.0
  %2546 = vmatpush1.msra.mxu0 0.0
  %2547 = vmatprep.subr.mxu0 0.0
  %2548 = vmatpush1.msra.mxu0 0.0
  %2549 = vmatprep.subr.mxu0 0.0
  %2550 = vmatpush1.msra.mxu0 0.0
  %2551 = vmatprep.subr.mxu0 0.0
  %2552 = vmatpush1.msra.mxu0 0.0
  %2553 = vmatprep.subr.mxu0 0.0
  %2554 = vmatpush1.msra.mxu0 0.0
  %2555 = vmatprep.subr.mxu0 0.0
  %2556 = vmatpush1.msra.mxu0 0.0
  %2557 = vmatprep.subr.mxu0 0.0
  %2558 = vmatpush1.msra.mxu0 0.0
  %2559 = vmatprep.subr.mxu0 0.0
  %2560 = vmatpush1.msra.mxu0 0.0
  %2561 = vmatprep.subr.mxu0 0.0
  %2562 = vmatpush1.msra.mxu0 0.0
  %2563 = vmatprep.subr.mxu0 0.0
  %2564 = vmatpush1.msra.mxu0 0.0
  %2565 = vmatprep.mubr.f32.mxu0 0.0
  %2566 = vmatmul.mubr.f32.gmra.mrb[0].mxu0 %v2499
  %v2567 = vpop.f32.mrb[0].mxu0
  %v2568 = vadd.f32 0.0, %v2567
  %v2569 = vpop.f32.mrb[0].mxu0
  %2570 = vdwg.mxu0
  %v2572 = vsel %vm402, %v2568, 0
  %2574 = vmatprep.subr.mxu0 0.0
  %2575 = vmatpush1.msra.mxu0 %v2092
  %2576 = vmatprep.subr.mxu0 0.0
  %2577 = vmatpush1.msra.mxu0 %v2093
  %2578 = vmatprep.subr.mxu0 0.0
  %2579 = vmatpush1.msra.mxu0 0.0
  %2580 = vmatprep.subr.mxu0 0.0
  %2581 = vmatpush1.msra.mxu0 0.0
  %2582 = vmatprep.subr.mxu0 0.0
  %2583 = vmatpush1.msra.mxu0 0.0
  %2584 = vmatprep.subr.mxu0 0.0
  %2585 = vmatpush1.msra.mxu0 0.0
  %2586 = vmatprep.subr.mxu0 0.0
  %2587 = vmatpush1.msra.mxu0 0.0
  %2588 = vmatprep.subr.mxu0 0.0
  %2589 = vmatpush1.msra.mxu0 0.0
  %2590 = vmatprep.subr.mxu0 0.0
  %2591 = vmatpush1.msra.mxu0 0.0
  %2592 = vmatprep.subr.mxu0 0.0
  %2593 = vmatpush1.msra.mxu0 0.0
  %2594 = vmatprep.subr.mxu0 0.0
  %2595 = vmatpush1.msra.mxu0 0.0
  %2596 = vmatprep.subr.mxu0 0.0
  %2597 = vmatpush1.msra.mxu0 0.0
  %2598 = vmatprep.subr.mxu0 0.0
  %2599 = vmatpush1.msra.mxu0 0.0
  %2600 = vmatprep.subr.mxu0 0.0
  %2601 = vmatpush1.msra.mxu0 0.0
  %2602 = vmatprep.subr.mxu0 0.0
  %2603 = vmatpush1.msra.mxu0 0.0
  %2604 = vmatprep.subr.mxu0 0.0
  %2605 = vmatpush1.msra.mxu0 0.0
  %2606 = vmatprep.subr.mxu0 0.0
  %2607 = vmatpush1.msra.mxu0 0.0
  %2608 = vmatprep.subr.mxu0 0.0
  %2609 = vmatpush1.msra.mxu0 0.0
  %2610 = vmatprep.subr.mxu0 0.0
  %2611 = vmatpush1.msra.mxu0 0.0
  %2612 = vmatprep.subr.mxu0 0.0
  %2613 = vmatpush1.msra.mxu0 0.0
  %2614 = vmatprep.subr.mxu0 0.0
  %2615 = vmatpush1.msra.mxu0 0.0
  %2616 = vmatprep.subr.mxu0 0.0
  %2617 = vmatpush1.msra.mxu0 0.0
  %2618 = vmatprep.subr.mxu0 0.0
  %2619 = vmatpush1.msra.mxu0 0.0
  %2620 = vmatprep.subr.mxu0 0.0
  %2621 = vmatpush1.msra.mxu0 0.0
  %2622 = vmatprep.subr.mxu0 0.0
  %2623 = vmatpush1.msra.mxu0 0.0
  %2624 = vmatprep.subr.mxu0 0.0
  %2625 = vmatpush1.msra.mxu0 0.0
  %2626 = vmatprep.subr.mxu0 0.0
  %2627 = vmatpush1.msra.mxu0 0.0
  %2628 = vmatprep.subr.mxu0 0.0
  %2629 = vmatpush1.msra.mxu0 0.0
  %2630 = vmatprep.subr.mxu0 0.0
  %2631 = vmatpush1.msra.mxu0 0.0
  %2632 = vmatprep.subr.mxu0 0.0
  %2633 = vmatpush1.msra.mxu0 0.0
  %2634 = vmatprep.subr.mxu0 0.0
  %2635 = vmatpush1.msra.mxu0 0.0
  %2636 = vmatprep.subr.mxu0 0.0
  %2637 = vmatpush1.msra.mxu0 0.0
  %2638 = vmatprep.mubr.f32.mxu0 0.0
  %2639 = vmatmul.mubr.f32.gmra.mrb[0].mxu0 %v2572
  %v2640 = vpop.f32.mrb[0].mxu0
  %v2641 = vadd.f32 0.0, %v2640
  %v2642 = vpop.f32.mrb[0].mxu0
  %2643 = vdwg.mxu0
  %v2645 = vsel %vm402, %v2402, 0
  %2647 = vmatprep.subr.mxu0 0.0
  %2648 = vmatpush1.msra.mxu0 %v1924
  %2649 = vmatprep.subr.mxu0 0.0
  %2650 = vmatpush1.msra.mxu0 %v1925
  %2651 = vmatprep.subr.mxu0 0.0
  %2652 = vmatpush1.msra.mxu0 0.0
  %2653 = vmatprep.subr.mxu0 0.0
  %2654 = vmatpush1.msra.mxu0 0.0
  %2655 = vmatprep.subr.mxu0 0.0
  %2656 = vmatpush1.msra.mxu0 0.0
  %2657 = vmatprep.subr.mxu0 0.0
  %2658 = vmatpush1.msra.mxu0 0.0
  %2659 = vmatprep.subr.mxu0 0.0
  %2660 = vmatpush1.msra.mxu0 0.0
  %2661 = vmatprep.subr.mxu0 0.0
  %2662 = vmatpush1.msra.mxu0 0.0
  %2663 = vmatprep.subr.mxu0 0.0
  %2664 = vmatpush1.msra.mxu0 0.0
  %2665 = vmatprep.subr.mxu0 0.0
  %2666 = vmatpush1.msra.mxu0 0.0
  %2667 = vmatprep.subr.mxu0 0.0
  %2668 = vmatpush1.msra.mxu0 0.0
  %2669 = vmatprep.subr.mxu0 0.0
  %2670 = vmatpush1.msra.mxu0 0.0
  %2671 = vmatprep.subr.mxu0 0.0
  %2672 = vmatpush1.msra.mxu0 0.0
  %2673 = vmatprep.subr.mxu0 0.0
  %2674 = vmatpush1.msra.mxu0 0.0
  %2675 = vmatprep.subr.mxu0 0.0
  %2676 = vmatpush1.msra.mxu0 0.0
  %2677 = vmatprep.subr.mxu0 0.0
  %2678 = vmatpush1.msra.mxu0 0.0
  %2679 = vmatprep.subr.mxu0 0.0
  %2680 = vmatpush1.msra.mxu0 0.0
  %2681 = vmatprep.subr.mxu0 0.0
  %2682 = vmatpush1.msra.mxu0 0.0
  %2683 = vmatprep.subr.mxu0 0.0
  %2684 = vmatpush1.msra.mxu0 0.0
  %2685 = vmatprep.subr.mxu0 0.0
  %2686 = vmatpush1.msra.mxu0 0.0
  %2687 = vmatprep.subr.mxu0 0.0
  %2688 = vmatpush1.msra.mxu0 0.0
  %2689 = vmatprep.subr.mxu0 0.0
  %2690 = vmatpush1.msra.mxu0 0.0
  %2691 = vmatprep.subr.mxu0 0.0
  %2692 = vmatpush1.msra.mxu0 0.0
  %2693 = vmatprep.subr.mxu0 0.0
  %2694 = vmatpush1.msra.mxu0 0.0
  %2695 = vmatprep.subr.mxu0 0.0
  %2696 = vmatpush1.msra.mxu0 0.0
  %2697 = vmatprep.subr.mxu0 0.0
  %2698 = vmatpush1.msra.mxu0 0.0
  %2699 = vmatprep.subr.mxu0 0.0
  %2700 = vmatpush1.msra.mxu0 0.0
  %2701 = vmatprep.subr.mxu0 0.0
  %2702 = vmatpush1.msra.mxu0 0.0
  %2703 = vmatprep.subr.mxu0 0.0
  %2704 = vmatpush1.msra.mxu0 0.0
  %2705 = vmatprep.subr.mxu0 0.0
  %2706 = vmatpush1.msra.mxu0 0.0
  %2707 = vmatprep.subr.mxu0 0.0
  %2708 = vmatpush1.msra.mxu0 0.0
  %2709 = vmatprep.subr.mxu0 0.0
  %2710 = vmatpush1.msra.mxu0 0.0
  %2711 = vmatprep.mubr.f32.mxu0 0.0
  %2712 = vmatmul.mubr.f32.gmra.mrb[0].mxu0 %v2645
  %v2713 = vpop.f32.mrb[0].mxu0
  %v2714 = vadd.f32 %v2641, %v2713
  %v2715 = vpop.f32.mrb[0].mxu0
  %2716 = vdwg.mxu0
  %v2717 = vld [vmem:[%s41] sm:$0x1]
  %v2719 = vlaneseq
  %v2720 = vshrl.u32 %v2719, 7
  %v2721 = vsub.s32 0, %v2720
  %v2722 = vrot.slane %v2717, %v2721
  %v2724 = vadd.f32 %v2237, %v2722
  %v2725 = vadd.f32 %v2714, %v2722
  %v2726 = vadd.f32 %v1665, %v2724
  %v2727 = vadd.f32 %v1666, %v2725
  %v2728 = vld [vmem:[%s43] sm:$0x1]
  %v2729 = vld [vmem:[%s45] sm:$0x1]
  %v2730 = vsel %vm263, %v2726, 0.0
  %2731 = vadd.xlane.f32.xlu0 %v2730
  %v2732 = vpop.xlane.xlu0 %2731
  %v2733 = vsel %vm263, %v2727, 0.0
  %2734 = vadd.xlane.f32.xlu0 %v2733
  %v2735 = vpop.xlane.xlu0 %2734
  %v2736 = vmul.f32 %v2732, %v270
  %v2737 = vmul.f32 %v2735, %v270
  %v2738 = vsub.f32 %v2726, %v2736
  %v2739 = vsub.f32 %v2727, %v2737
  %v2740 = vmul.f32 %v2738, %v2738
  %v2741 = vmul.f32 %v2739, %v2739
  %v2742 = vsel %vm263, %v2740, 0.0
  %2743 = vadd.xlane.f32.xlu0 %v2742
  %v2744 = vpop.xlane.xlu0 %2743
  %v2745 = vsel %vm263, %v2741, 0.0
  %2746 = vadd.xlane.f32.xlu0 %v2745
  %v2747 = vpop.xlane.xlu0 %2746
  %v2748 = vmul.f32 %v2744, %v270
  %v2749 = vmul.f32 %v2747, %v270
  %v2750 = vadd.f32 %v2748, 1e-12
  %v2751 = vadd.f32 %v2749, 1e-12
  %v2752 = vrsqrt.pop %v2750
  %v2753 = vrsqrt.pop %v2751
  %v2754 = vmul.f32 %v2738, %v2752
  %v2755 = vmul.f32 %v2739, %v2753
  %v2757 = vlaneseq
  %v2758 = vshrl.u32 %v2757, 7
  %v2759 = vsub.s32 0, %v2758
  %v2760 = vrot.slane %v2728, %v2759
  %v2762 = vmul.f32 %v2754, %v2760
  %v2763 = vmul.f32 %v2755, %v2760
  %v2765 = vlaneseq
  %v2766 = vshrl.u32 %v2765, 7
  %v2767 = vsub.s32 0, %v2766
  %v2768 = vrot.slane %v2729, %v2767
  %v2770 = vadd.f32 %v2762, %v2768
  %v2771 = vadd.f32 %v2763, %v2768
  %v2772 = vld [vmem:[%s47] sm:$0xff]
  %v2773 = vld [vmem:[%s47 + $0x8] sm:$0xff]
  %v2774 = vld [vmem:[%s47 + $0x10] sm:$0xff]
  %v2775 = vld [vmem:[%s47 + $0x18] sm:$0xff]
  %v2776 = vld [vmem:[%s49] sm:$0x1]
  %v2778 = vlaneseq
  %v2779 = vshrl.u32 %v2778, 7
  %v2780 = vsub.s32 0, %v2779
  %v2781 = vrot.slane %v2776, %v2780
  %v2784 = vsel %vm263, %v2770, 0
  %v2787 = vsel %vm263, %v2771, 0
  %2789 = vmatprep.subr.mxu0 0.0
  %2790 = vmatpush1.msra.mxu0 %v2772
  %2791 = vmatprep.subr.mxu0 0.0
  %2792 = vmatpush1.msra.mxu0 %v2773
  %2793 = vmatprep.subr.mxu0 0.0
  %2794 = vmatpush1.msra.mxu0 %v2774
  %2795 = vmatprep.subr.mxu0 0.0
  %2796 = vmatpush1.msra.mxu0 %v2775
  %2797 = vmatprep.subr.mxu0 0.0
  %2798 = vmatpush1.msra.mxu0 0.0
  %2799 = vmatprep.subr.mxu0 0.0
  %2800 = vmatpush1.msra.mxu0 0.0
  %2801 = vmatprep.subr.mxu0 0.0
  %2802 = vmatpush1.msra.mxu0 0.0
  %2803 = vmatprep.subr.mxu0 0.0
  %2804 = vmatpush1.msra.mxu0 0.0
  %2805 = vmatprep.subr.mxu0 0.0
  %2806 = vmatpush1.msra.mxu0 0.0
  %2807 = vmatprep.subr.mxu0 0.0
  %2808 = vmatpush1.msra.mxu0 0.0
  %2809 = vmatprep.subr.mxu0 0.0
  %2810 = vmatpush1.msra.mxu0 0.0
  %2811 = vmatprep.subr.mxu0 0.0
  %2812 = vmatpush1.msra.mxu0 0.0
  %2813 = vmatprep.subr.mxu0 0.0
  %2814 = vmatpush1.msra.mxu0 0.0
  %2815 = vmatprep.subr.mxu0 0.0
  %2816 = vmatpush1.msra.mxu0 0.0
  %2817 = vmatprep.subr.mxu0 0.0
  %2818 = vmatpush1.msra.mxu0 0.0
  %2819 = vmatprep.subr.mxu0 0.0
  %2820 = vmatpush1.msra.mxu0 0.0
  %2821 = vmatprep.subr.mxu0 0.0
  %2822 = vmatpush1.msra.mxu0 0.0
  %2823 = vmatprep.subr.mxu0 0.0
  %2824 = vmatpush1.msra.mxu0 0.0
  %2825 = vmatprep.subr.mxu0 0.0
  %2826 = vmatpush1.msra.mxu0 0.0
  %2827 = vmatprep.subr.mxu0 0.0
  %2828 = vmatpush1.msra.mxu0 0.0
  %2829 = vmatprep.subr.mxu0 0.0
  %2830 = vmatpush1.msra.mxu0 0.0
  %2831 = vmatprep.subr.mxu0 0.0
  %2832 = vmatpush1.msra.mxu0 0.0
  %2833 = vmatprep.subr.mxu0 0.0
  %2834 = vmatpush1.msra.mxu0 0.0
  %2835 = vmatprep.subr.mxu0 0.0
  %2836 = vmatpush1.msra.mxu0 0.0
  %2837 = vmatprep.subr.mxu0 0.0
  %2838 = vmatpush1.msra.mxu0 0.0
  %2839 = vmatprep.subr.mxu0 0.0
  %2840 = vmatpush1.msra.mxu0 0.0
  %2841 = vmatprep.subr.mxu0 0.0
  %2842 = vmatpush1.msra.mxu0 0.0
  %2843 = vmatprep.subr.mxu0 0.0
  %2844 = vmatpush1.msra.mxu0 0.0
  %2845 = vmatprep.subr.mxu0 0.0
  %2846 = vmatpush1.msra.mxu0 0.0
  %2847 = vmatprep.subr.mxu0 0.0
  %2848 = vmatpush1.msra.mxu0 0.0
  %2849 = vmatprep.subr.mxu0 0.0
  %2850 = vmatpush1.msra.mxu0 0.0
  %2851 = vmatprep.subr.mxu0 0.0
  %2852 = vmatpush1.msra.mxu0 0.0
  %2853 = vmatprep.mubr.f32.mxu0 0.0
  %2854 = vmatmul.mubr.f32.gmra.mrb[0].mxu0 %v2784
  %v2855 = vpop.f32.mrb[0].mxu0
  %v2856 = vadd.f32 %v2781, %v2855
  %v2857 = vpop.f32.mrb[0].mxu0
  %2858 = vmatprep.mubr.f32.mxu0 0.0
  %2859 = vmatmul.mubr.f32.gmra.mrb[0].mxu0 %v2787
  %v2860 = vpop.f32.mrb[0].mxu0
  %v2861 = vadd.f32 %v2781, %v2860
  %v2862 = vpop.f32.mrb[0].mxu0
  %2863 = vdwg.mxu0
  %v2864 = vmul.f32 %v2856, 0.5
  %v2865 = vmul.f32 %v2861, 0.5
  %v2866 = vmul.f32 %v2856, 0.044715
  %v2867 = vmul.f32 %v2861, 0.044715
  %v2868 = vmul.f32 %v2866, %v2856
  %v2869 = vmul.f32 %v2867, %v2861
  %v2870 = vmul.f32 %v2868, %v2856
  %v2871 = vmul.f32 %v2869, %v2861
  %v2872 = vadd.f32 %v2856, %v2870
  %v2873 = vadd.f32 %v2861, %v2871
  %v2874 = vmul.f32 %v2872, 0.7978846
  %v2875 = vmul.f32 %v2873, 0.7978846
  %v2876 = vtanh.pop %v2874
  %v2877 = vtanh.pop %v2875
  %v2878 = vadd.f32 %v2876, 1.0
  %v2879 = vadd.f32 %v2877, 1.0
  %v2880 = vmul.f32 %v2864, %v2878
  %v2881 = vmul.f32 %v2865, %v2879
  %v2882 = vld [vmem:[%s51] sm:$0xff]
  %v2883 = vld [vmem:[%s51 + $0x8] sm:$0xff]
  %v2884 = vld [vmem:[%s51 + $0x10] sm:$0xff]
  %v2885 = vld [vmem:[%s51 + $0x18] sm:$0xff]
  %v2886 = vld [vmem:[%s51 + $0x20] sm:$0xff]
  %v2887 = vld [vmem:[%s51 + $0x28] sm:$0xff]
  %v2888 = vld [vmem:[%s51 + $0x30] sm:$0xff]
  %v2889 = vld [vmem:[%s51 + $0x38] sm:$0xff]
  %v2890 = vld [vmem:[%s53] sm:$0x1]
  %v2892 = vlaneseq
  %v2893 = vshrl.u32 %v2892, 7
  %v2894 = vsub.s32 0, %v2893
  %v2895 = vrot.slane %v2890, %v2894
  %v2898 = vsel %vm1539, %v2880, 0
  %v2901 = vsel %vm1539, %v2881, 0
  %2903 = vmatprep.subr.mxu0 0.0
  %2904 = vmatpush1.msra.mxu0 %v2882
  %2905 = vmatprep.subr.mxu0 0.0
  %2906 = vmatpush1.msra.mxu0 %v2883
  %2907 = vmatprep.subr.mxu0 0.0
  %2908 = vmatpush1.msra.mxu0 %v2884
  %2909 = vmatprep.subr.mxu0 0.0
  %2910 = vmatpush1.msra.mxu0 %v2885
  %2911 = vmatprep.subr.mxu0 0.0
  %2912 = vmatpush1.msra.mxu0 %v2886
  %2913 = vmatprep.subr.mxu0 0.0
  %2914 = vmatpush1.msra.mxu0 %v2887
  %2915 = vmatprep.subr.mxu0 0.0
  %2916 = vmatpush1.msra.mxu0 %v2888
  %2917 = vmatprep.subr.mxu0 0.0
  %2918 = vmatpush1.msra.mxu0 %v2889
  %2919 = vmatprep.subr.mxu0 0.0
  %2920 = vmatpush1.msra.mxu0 0.0
  %2921 = vmatprep.subr.mxu0 0.0
  %2922 = vmatpush1.msra.mxu0 0.0
  %2923 = vmatprep.subr.mxu0 0.0
  %2924 = vmatpush1.msra.mxu0 0.0
  %2925 = vmatprep.subr.mxu0 0.0
  %2926 = vmatpush1.msra.mxu0 0.0
  %2927 = vmatprep.subr.mxu0 0.0
  %2928 = vmatpush1.msra.mxu0 0.0
  %2929 = vmatprep.subr.mxu0 0.0
  %2930 = vmatpush1.msra.mxu0 0.0
  %2931 = vmatprep.subr.mxu0 0.0
  %2932 = vmatpush1.msra.mxu0 0.0
  %2933 = vmatprep.subr.mxu0 0.0
  %2934 = vmatpush1.msra.mxu0 0.0
  %2935 = vmatprep.subr.mxu0 0.0
  %2936 = vmatpush1.msra.mxu0 0.0
  %2937 = vmatprep.subr.mxu0 0.0
  %2938 = vmatpush1.msra.mxu0 0.0
  %2939 = vmatprep.subr.mxu0 0.0
  %2940 = vmatpush1.msra.mxu0 0.0
  %2941 = vmatprep.subr.mxu0 0.0
  %2942 = vmatpush1.msra.mxu0 0.0
  %2943 = vmatprep.subr.mxu0 0.0
  %2944 = vmatpush1.msra.mxu0 0.0
  %2945 = vmatprep.subr.mxu0 0.0
  %2946 = vmatpush1.msra.mxu0 0.0
  %2947 = vmatprep.subr.mxu0 0.0
  %2948 = vmatpush1.msra.mxu0 0.0
  %2949 = vmatprep.subr.mxu0 0.0
  %2950 = vmatpush1.msra.mxu0 0.0
  %2951 = vmatprep.subr.mxu0 0.0
  %2952 = vmatpush1.msra.mxu0 0.0
  %2953 = vmatprep.subr.mxu0 0.0
  %2954 = vmatpush1.msra.mxu0 0.0
  %2955 = vmatprep.subr.mxu0 0.0
  %2956 = vmatpush1.msra.mxu0 0.0
  %2957 = vmatprep.subr.mxu0 0.0
  %2958 = vmatpush1.msra.mxu0 0.0
  %2959 = vmatprep.subr.mxu0 0.0
  %2960 = vmatpush1.msra.mxu0 0.0
  %2961 = vmatprep.subr.mxu0 0.0
  %2962 = vmatpush1.msra.mxu0 0.0
  %2963 = vmatprep.subr.mxu0 0.0
  %2964 = vmatpush1.msra.mxu0 0.0
  %2965 = vmatprep.subr.mxu0 0.0
  %2966 = vmatpush1.msra.mxu0 0.0
  %2967 = vmatprep.mubr.f32.mxu0 0.0
  %2968 = vmatmul.mubr.f32.gmra.mrb[0].mxu0 %v2898
  %v2969 = vpop.f32.mrb[0].mxu0
  %v2970 = vadd.f32 %v2895, %v2969
  %v2971 = vpop.f32.mrb[0].mxu0
  %2972 = vmatprep.mubr.f32.mxu0 0.0
  %2973 = vmatmul.mubr.f32.gmra.mrb[0].mxu0 %v2901
  %v2974 = vpop.f32.mrb[0].mxu0
  %v2975 = vadd.f32 %v2895, %v2974
  %v2976 = vpop.f32.mrb[0].mxu0
  %2977 = vdwg.mxu0
  %v2978 = vadd.f32 %v2770, %v2970
  %v2979 = vadd.f32 %v2771, %v2975
  %v2980 = vld [vmem:[%s55] sm:$0x1]
  %v2981 = vld [vmem:[%s57] sm:$0x1]
  %v2982 = vsel %vm263, %v2978, 0.0
  %2983 = vadd.xlane.f32.xlu0 %v2982
  %v2984 = vpop.xlane.xlu0 %2983
  %v2985 = vsel %vm263, %v2979, 0.0
  %2986 = vadd.xlane.f32.xlu0 %v2985
  %v2987 = vpop.xlane.xlu0 %2986
  %v2988 = vmul.f32 %v2984, %v270
  %v2989 = vmul.f32 %v2987, %v270
  %v2990 = vsub.f32 %v2978, %v2988
  %v2991 = vsub.f32 %v2979, %v2989
  %v2992 = vmul.f32 %v2990, %v2990
  %v2993 = vmul.f32 %v2991, %v2991
  %v2994 = vsel %vm263, %v2992, 0.0
  %2995 = vadd.xlane.f32.xlu0 %v2994
  %v2996 = vpop.xlane.xlu0 %2995
  %v2997 = vsel %vm263, %v2993, 0.0
  %2998 = vadd.xlane.f32.xlu0 %v2997
  %v2999 = vpop.xlane.xlu0 %2998
  %v3000 = vmul.f32 %v2996, %v270
  %v3001 = vmul.f32 %v2999, %v270
  %v3002 = vadd.f32 %v3000, 1e-12
  %v3003 = vadd.f32 %v3001, 1e-12
  %v3004 = vrsqrt.pop %v3002
  %v3005 = vrsqrt.pop %v3003
  %v3006 = vmul.f32 %v2990, %v3004
  %v3007 = vmul.f32 %v2991, %v3005
  %v3009 = vlaneseq
  %v3010 = vshrl.u32 %v3009, 7
  %v3011 = vsub.s32 0, %v3010
  %v3012 = vrot.slane %v2980, %v3011
  %v3014 = vmul.f32 %v3006, %v3012
  %v3015 = vmul.f32 %v3007, %v3012
  %v3017 = vlaneseq
  %v3018 = vshrl.u32 %v3017, 7
  %v3019 = vsub.s32 0, %v3018
  %v3020 = vrot.slane %v2981, %v3019
  %v3022 = vadd.f32 %v3014, %v3020
  %v3023 = vadd.f32 %v3015, %v3020
  %v3025 = vrot.slane %v3023, 7
  %vm3027 = vcmask 1040384
  %v3028 = vsel %vm3027, %v3022, %v3025
  %v3029 = vld [vmem:[%s59] sm:$0xff]
  %v3030 = vld [vmem:[%s59 + $0x8] sm:$0xff]
  %v3031 = vld [vmem:[%s59 + $0x10] sm:$0xff]
  %v3032 = vld [vmem:[%s59 + $0x18] sm:$0xff]
  %v3033 = vld [vmem:[%s61] sm:$0x1]
  %v3035 = vlaneseq
  %v3036 = vshrl.u32 %v3035, 7
  %v3037 = vsub.s32 0, %v3036
  %v3038 = vrot.slane %v3033, %v3037
  %v3041 = vsel %vm263, %v3028, 0
  %3043 = vmatprep.subr.mxu0 0.0
  %3044 = vmatpush1.msra.mxu0 %v3029
  %3045 = vmatprep.subr.mxu0 0.0
  %3046 = vmatpush1.msra.mxu0 %v3030
  %3047 = vmatprep.subr.mxu0 0.0
  %3048 = vmatpush1.msra.mxu0 %v3031
  %3049 = vmatprep.subr.mxu0 0.0
  %3050 = vmatpush1.msra.mxu0 %v3032
  %3051 = vmatprep.subr.mxu0 0.0
  %3052 = vmatpush1.msra.mxu0 0.0
  %3053 = vmatprep.subr.mxu0 0.0
  %3054 = vmatpush1.msra.mxu0 0.0
  %3055 = vmatprep.subr.mxu0 0.0
  %3056 = vmatpush1.msra.mxu0 0.0
  %3057 = vmatprep.subr.mxu0 0.0
  %3058 = vmatpush1.msra.mxu0 0.0
  %3059 = vmatprep.subr.mxu0 0.0
  %3060 = vmatpush1.msra.mxu0 0.0
  %3061 = vmatprep.subr.mxu0 0.0
  %3062 = vmatpush1.msra.mxu0 0.0
  %3063 = vmatprep.subr.mxu0 0.0
  %3064 = vmatpush1.msra.mxu0 0.0
  %3065 = vmatprep.subr.mxu0 0.0
  %3066 = vmatpush1.msra.mxu0 0.0
  %3067 = vmatprep.subr.mxu0 0.0
  %3068 = vmatpush1.msra.mxu0 0.0
  %3069 = vmatprep.subr.mxu0 0.0
  %3070 = vmatpush1.msra.mxu0 0.0
  %3071 = vmatprep.subr.mxu0 0.0
  %3072 = vmatpush1.msra.mxu0 0.0
  %3073 = vmatprep.subr.mxu0 0.0
  %3074 = vmatpush1.msra.mxu0 0.0
  %3075 = vmatprep.subr.mxu0 0.0
  %3076 = vmatpush1.msra.mxu0 0.0
  %3077 = vmatprep.subr.mxu0 0.0
  %3078 = vmatpush1.msra.mxu0 0.0
  %3079 = vmatprep.subr.mxu0 0.0
  %3080 = vmatpush1.msra.mxu0 0.0
  %3081 = vmatprep.subr.mxu0 0.0
  %3082 = vmatpush1.msra.mxu0 0.0
  %3083 = vmatprep.subr.mxu0 0.0
  %3084 = vmatpush1.msra.mxu0 0.0
  %3085 = vmatprep.subr.mxu0 0.0
  %3086 = vmatpush1.msra.mxu0 0.0
  %3087 = vmatprep.subr.mxu0 0.0
  %3088 = vmatpush1.msra.mxu0 0.0
  %3089 = vmatprep.subr.mxu0 0.0
  %3090 = vmatpush1.msra.mxu0 0.0
  %3091 = vmatprep.subr.mxu0 0.0
  %3092 = vmatpush1.msra.mxu0 0.0
  %3093 = vmatprep.subr.mxu0 0.0
  %3094 = vmatpush1.msra.mxu0 0.0
  %3095 = vmatprep.subr.mxu0 0.0
  %3096 = vmatpush1.msra.mxu0 0.0
  %3097 = vmatprep.subr.mxu0 0.0
  %3098 = vmatpush1.msra.mxu0 0.0
  %3099 = vmatprep.subr.mxu0 0.0
  %3100 = vmatpush1.msra.mxu0 0.0
  %3101 = vmatprep.subr.mxu0 0.0
  %3102 = vmatpush1.msra.mxu0 0.0
  %3103 = vmatprep.subr.mxu0 0.0
  %3104 = vmatpush1.msra.mxu0 0.0
  %3105 = vmatprep.subr.mxu0 0.0
  %3106 = vmatpush1.msra.mxu0 0.0
  %3107 = vmatprep.mubr.f32.mxu0 0.0
  %3108 = vmatmul.mubr.f32.gmra.mrb[0].mxu0 %v3041
  %v3109 = vpop.f32.mrb[0].mxu0
  %v3110 = vadd.f32 %v3038, %v3109
  %v3111 = vpop.f32.mrb[0].mxu0
  %3112 = vdwg.mxu0
  %v3113 = vxor.u32 %v3110, 2147483648
  %v3114 = vmul.f32 %v3113, 1.442695
  %v3115 = vpow.pop %v3114
  %v3116 = vadd.f32 %v3115, 1.0
  %v3117 = vrcp.pop %v3116
  %v3118 = vmul.f32 1.0, %v3117
  %v3119 = vtanh.pop %v3110
  %3121 = vrot.lane.b32.xlu0 %v3119, 96
  %v3122 = vpop.permute.xlu0 %3121
  %v3124 = vmul.f32 %v3118, %v3122
  %v3125 = vtanh.pop %v3124
  %3127 = vrot.lane.b32.xlu0 %v3125, 48
  %v3128 = vpop.permute.xlu0 %3127
  %v3130 = vmul.f32 %v3118, %v3128
  %v3131 = vld [vmem:[%s63] sm:$0xff]
  %v3132 = vld [vmem:[%s63 + $0x8] sm:$0xff]
  %v3133 = vld [vmem:[%s63 + $0x10] sm:$0xff]
  %v3134 = vld [vmem:[%s63 + $0x18] sm:$0xff]
  %v3135 = vld [vmem:[%s65] sm:$0x1]
  %v3137 = vlaneseq
  %v3138 = vshrl.u32 %v3137, 7
  %v3139 = vsub.s32 0, %v3138
  %v3140 = vrot.slane %v3135, %v3139
  %3142 = vmatprep.subr.mxu0 0.0
  %3143 = vmatpush1.msra.mxu0 %v3131
  %3144 = vmatprep.subr.mxu0 0.0
  %3145 = vmatpush1.msra.mxu0 %v3132
  %3146 = vmatprep.subr.mxu0 0.0
  %3147 = vmatpush1.msra.mxu0 %v3133
  %3148 = vmatprep.subr.mxu0 0.0
  %3149 = vmatpush1.msra.mxu0 %v3134
  %3150 = vmatprep.subr.mxu0 0.0
  %3151 = vmatpush1.msra.mxu0 0.0
  %3152 = vmatprep.subr.mxu0 0.0
  %3153 = vmatpush1.msra.mxu0 0.0
  %3154 = vmatprep.subr.mxu0 0.0
  %3155 = vmatpush1.msra.mxu0 0.0
  %3156 = vmatprep.subr.mxu0 0.0
  %3157 = vmatpush1.msra.mxu0 0.0
  %3158 = vmatprep.subr.mxu0 0.0
  %3159 = vmatpush1.msra.mxu0 0.0
  %3160 = vmatprep.subr.mxu0 0.0
  %3161 = vmatpush1.msra.mxu0 0.0
  %3162 = vmatprep.subr.mxu0 0.0
  %3163 = vmatpush1.msra.mxu0 0.0
  %3164 = vmatprep.subr.mxu0 0.0
  %3165 = vmatpush1.msra.mxu0 0.0
  %3166 = vmatprep.subr.mxu0 0.0
  %3167 = vmatpush1.msra.mxu0 0.0
  %3168 = vmatprep.subr.mxu0 0.0
  %3169 = vmatpush1.msra.mxu0 0.0
  %3170 = vmatprep.subr.mxu0 0.0
  %3171 = vmatpush1.msra.mxu0 0.0
  %3172 = vmatprep.subr.mxu0 0.0
  %3173 = vmatpush1.msra.mxu0 0.0
  %3174 = vmatprep.subr.mxu0 0.0
  %3175 = vmatpush1.msra.mxu0 0.0
  %3176 = vmatprep.subr.mxu0 0.0
  %3177 = vmatpush1.msra.mxu0 0.0
  %3178 = vmatprep.subr.mxu0 0.0
  %3179 = vmatpush1.msra.mxu0 0.0
  %3180 = vmatprep.subr.mxu0 0.0
  %3181 = vmatpush1.msra.mxu0 0.0
  %3182 = vmatprep.subr.mxu0 0.0
  %3183 = vmatpush1.msra.mxu0 0.0
  %3184 = vmatprep.subr.mxu0 0.0
  %3185 = vmatpush1.msra.mxu0 0.0
  %3186 = vmatprep.subr.mxu0 0.0
  %3187 = vmatpush1.msra.mxu0 0.0
  %3188 = vmatprep.subr.mxu0 0.0
  %3189 = vmatpush1.msra.mxu0 0.0
  %3190 = vmatprep.subr.mxu0 0.0
  %3191 = vmatpush1.msra.mxu0 0.0
  %3192 = vmatprep.subr.mxu0 0.0
  %3193 = vmatpush1.msra.mxu0 0.0
  %3194 = vmatprep.subr.mxu0 0.0
  %3195 = vmatpush1.msra.mxu0 0.0
  %3196 = vmatprep.subr.mxu0 0.0
  %3197 = vmatpush1.msra.mxu0 0.0
  %3198 = vmatprep.subr.mxu0 0.0
  %3199 = vmatpush1.msra.mxu0 0.0
  %3200 = vmatprep.subr.mxu0 0.0
  %3201 = vmatpush1.msra.mxu0 0.0
  %3202 = vmatprep.subr.mxu0 0.0
  %3203 = vmatpush1.msra.mxu0 0.0
  %3204 = vmatprep.subr.mxu0 0.0
  %3205 = vmatpush1.msra.mxu0 0.0
  %3206 = vmatprep.mubr.f32.mxu0 0.0
  %3207 = vmatmul.mubr.f32.gmra.mrb[0].mxu0 %v3041
  %v3208 = vpop.f32.mrb[0].mxu0
  %v3209 = vadd.f32 %v3140, %v3208
  %v3210 = vpop.f32.mrb[0].mxu0
  %3211 = vdwg.mxu0
  %v3212 = vxor.u32 %v3209, 2147483648
  %v3213 = vmul.f32 %v3212, 1.442695
  %v3214 = vpow.pop %v3213
  %v3215 = vadd.f32 %v3214, 1.0
  %v3216 = vrcp.pop %v3215
  %v3217 = vmul.f32 1.0, %v3216
  %v3218 = vtanh.pop %v3209
  %3220 = vrot.lane.b32.xlu0 %v3218, 96
  %v3221 = vpop.permute.xlu0 %3220
  %v3223 = vmul.f32 %v3217, %v3221
  %v3224 = vtanh.pop %v3223
  %3226 = vrot.lane.b32.xlu0 %v3224, 48
  %v3227 = vpop.permute.xlu0 %3226
  %v3229 = vmul.f32 %v3217, %v3227
  %v3230 = vld [vmem:[%s67] sm:$0x1]
  %v3232 = vlaneseq
  %v3233 = vshrl.u32 %v3232, 7
  %v3234 = vsub.s32 0, %v3233
  %v3235 = vrot.slane %v3230, %v3234
  %3236 = vrot.lane.b32.xlu0 %v3235, 48
  %v3237 = vpop.permute.xlu0 %3236
  %v3239 = vmul.f32 %v3130, %v3237
  %3241 = vrot.lane.b32.xlu0 %v3239, 80
  %v3242 = vpop.permute.xlu0 %3241
  %vm3244 = vcmask 123904
  %v3245 = vsel %vm3244, %v3242, 0.0
  %3246 = vadd.xlane.f32.xlu0 %v3245
  %v3247 = vpop.xlane.xlu0 %3246
  %v3248 = vld [vmem:[%s69] sm:$0x1]
  %v3250 = vlaneseq
  %v3251 = vshrl.u32 %v3250, 7
  %v3252 = vsub.s32 0, %v3251
  %v3253 = vrot.slane %v3248, %v3252
  %3254 = vrot.lane.b32.xlu0 %v3253, 48
  %v3255 = vpop.permute.xlu0 %3254
  %v3257 = vmul.f32 %v3229, %v3255
  %3259 = vrot.lane.b32.xlu0 %v3257, 80
  %v3260 = vpop.permute.xlu0 %3259
  %v3262 = vsel %vm3244, %v3260, 0.0
  %3263 = vadd.xlane.f32.xlu0 %v3262
  %v3264 = vpop.xlane.xlu0 %3263
  %v3265 = vadd.f32 %v3247, %v3264
  %v3266 = vld [vmem:[#allocation2] sm:$0x1]
  %v3268 = vlaneseq
  %v3269 = vshrl.u32 %v3268, 7
  %v3270 = vsub.s32 0, %v3269
  %v3271 = vrot.slane %v3266, %v3270
  %v3273 = vadd.f32 %v3265, %v3271
  %vm3274 = vcmask 1024
  %3275 = vst.msk [vmem:[%s73] sm:$0x3] %vm3274, %v3273
  // Predicated region
  $region146: #{forward.1} parent=0 // pred_check
    _
  $region147: #{forward.1} parent=0 // pred_check_branch
    %3277 = sbr.rel (0) target = $region149
  $region148: #{forward.1} parent=0 // pred_region
    _
  $region149: #{forward.1} parent=0 // pred_fallthru
    _
  // Predicated region
  $region150: #{forward.1} parent=0 // pred_check
    _
  $region151: #{forward.1} parent=0 // pred_check_branch
    %3279 = sbr.rel (0) target = $region153
  $region152: #{forward.1} parent=0 // pred_region
    _
  $region153: #{forward.1} parent=0 // pred_fallthru
    _

</llo_original>
